<compile_context>
chip_gen: v7x
topology: tpu7x:2x2x1
jax: 0.10.0
libtpu: 0.0.40
codegen_flags: <defaults>
</compile_context>

<pallas_src>
import functools
import math

import jax
import jax.numpy as jnp
from jax.experimental import pallas as pl
from jax.experimental.pallas import tpu as pltpu


def _attn_kernel(xa_ref, src1_ref, m1_ref, src2_ref, m2_ref, o_ref, *, tile_b):
    # xa_ref  : (C, 64)          xa[a, k*8+j] = scale * X[a,k,j]      (resident)
    # src1_ref: (8, tile_b*64)   src1[j, bb*64+i*8+k] = X[b,i,j]      (streamed, compact)
    # m1_ref  : (64, tile_b*64)  m1[k'*8+j, c] = (k' == c % 8)        (resident 0/1 mask)
    # src2_ref: (tile_b, 8, 256) compact per-key stage-2 source       (streamed)
    # m2_ref  : (128, 256)       m2[r, c] = ((r%64)//8 == (c%64)//8)  (resident 0/1 mask)
    # o_ref   : (C, tile_b*64)   out[a, bb*64 + i*8 + q]              (lane-dense slab)
    xa = xa_ref[...]

    # Build the fused stage-1 RHS (kron-structured, 7/8 zeros) in VMEM from the
    # compact source instead of streaming the inflated table from HBM:
    #   r1[k'*8+j, bb*64+i*8+k] = X[b,i,j] * delta(k', k)
    r1 = jnp.concatenate([src1_ref[...]] * 8, axis=0) * m1_ref[...]   # (64, tile_b*64)

    # Fused stage-1 matmul: scaled logits for every query `a` and all tile_b
    # keys of this block at once (N = tile_b*64 >= 256 -> full MXU width).
    s_all = jnp.dot(xa, r1, preferred_element_type=jnp.float32)       # (C, tile_b*64)

    m2 = m2_ref[...]
    for p in range(tile_b // 2):                 # short static unroll over key pairs
        s = s_all[:, p * 128:(p + 1) * 128]      # (C, 128) pair logits, vreg-aligned
        # Per-(a, pair) max: constant over every softmax group -> result exact.
        mx = jnp.max(s, axis=-1, keepdims=True)
        e = jnp.exp(s - mx)                                            # (C, 128)

        # Stage-2 RHS for this pair, built in VMEM from compact sources:
        #   cols   0:128  block-diag(kron(I8, X[b0]), kron(I8, X[b1]))  -> numerator
        #   cols 128:256  block-diag(kron(I8, ones),  kron(I8, ones))   -> denominator
        # (denominator rides along in the same weight load: zero extra pushes)
        t0 = jnp.concatenate([src2_ref[2 * p]] * 8, axis=0)            # (64, 256)
        t1 = jnp.concatenate([src2_ref[2 * p + 1]] * 8, axis=0)        # (64, 256)
        r2 = jnp.concatenate([t0, t1], axis=0) * m2                    # (128, 256)

        res = jnp.dot(e, r2, preferred_element_type=jnp.float32)       # (C, 256)
        num = res[:, :128]                          # lanes (bb-in-pair, i, q)
        den = jnp.maximum(res[:, 128:], 1e-30)      # guard all-underflow rows
        # TODO(synk): dropout(p=0.1) is training-mode RNG in the PyTorch module;
        # treated as identity (eval semantics).
        o_ref[:, p * 128:(p + 1) * 128] = (num / den).astype(o_ref.dtype)


def model_forward(x, dim=1):
    """x: (1, C, 8, 8) float32 -> (C, C, 8, 8) float32."""
    B, C, H, W = x.shape
    assert B == 1, "forward semantics require batch size 1"
    assert (H, W) == (8, 8), "kernel specialized to 8x8 spatial maps"
    assert C % 2 == 0 and C >= 4
    HW = H * W                                   # 64
    dt = x.dtype
    scale = float(math.sqrt(dim))                # qk.div(1/sqrt(dim)) == qk * sqrt(dim)

    X = x[0]                                     # (C, 8, 8)

    # tile_b keys per grid step; capped at C//2 so the grid length is >= 2
    # (second v7x TensorCore gets work via the "parallel" axis).
    tile_b = next(t for t in (16, 8, 4, 2) if C % t == 0 and C // t >= 2)
    grid = (C // tile_b,)
    n1 = tile_b * HW

    # -------- wrapper-side compact operands (only O(C*64) data crosses HBM) -----
    xa = X.reshape(C, HW)                        # xa[a, k*8+j] = X[a,k,j]
    if scale != 1.0:
        xa = xa * scale

    # src1[j, b*64 + i*8 + k] = X[b, i, j]   (value independent of k)
    src1 = jnp.broadcast_to(jnp.transpose(X, (2, 0, 1))[:, :, :, None],
                            (8, C, 8, 8)).reshape(8, C * HW)

    # m1[k'*8 + j, c] = (k' == c % 8)
    m1 = ((jnp.arange(HW)[:, None] // 8)
          == (jnp.arange(n1)[None, :] % 8)).astype(dt)

    # src2[b, k, c]: cols [64*(b%2), 64*(b%2)+64) hold X[b, k, c%8] (numerator),
    # cols [128+64*(b%2), 192+64*(b%2)) hold 1.0 (denominator), rest are 0.
    lane = jnp.arange(4 * HW)
    xt = X[:, :, lane % 8]                                   # (C, 8, 256)
    par = (jnp.arange(C) % 2)[:, None]                       # (C, 1)
    num_keep = ((lane[None, :] // HW) == par) & (lane[None, :] < 2 * HW)
    den_keep = (((lane[None, :] - 2 * HW) // HW) == par) & (lane[None, :] >= 2 * HW)
    src2 = (jnp.where(num_keep[:, None, :], xt, 0.0)
            + den_keep[:, None, :].astype(dt))               # (C, 8, 256)

    # m2[r, c] = ((r % 64)//8 == (c % 64)//8)   (kron(I8, ones(8,8)) pattern)
    m2 = (((jnp.arange(2 * HW)[:, None] % HW) // 8)
          == ((jnp.arange(4 * HW)[None, :] % HW) // 8)).astype(dt)

    kernel = functools.partial(_attn_kernel, tile_b=tile_b)

    flat = pl.pallas_call(
        kernel,
        out_shape=jax.ShapeDtypeStruct((C, C * HW), dt),
        grid_spec=pltpu.PrefetchScalarGridSpec(
            num_scalar_prefetch=0,
            grid=grid,
            in_specs=[
                pl.BlockSpec((C, HW), lambda g: (0, 0)),                 # xa   (resident)
                pl.BlockSpec((8, n1), lambda g: (0, g)),                 # src1 (streamed)
                pl.BlockSpec((HW, n1), lambda g: (0, 0)),                # m1   (resident)
                pl.BlockSpec((tile_b, 8, 4 * HW), lambda g: (g, 0, 0)),  # src2 (streamed)
                pl.BlockSpec((2 * HW, 4 * HW), lambda g: (0, 0)),        # m2   (resident)
            ],
            out_specs=pl.BlockSpec((C, n1), lambda g: (0, g)),
        ),
        compiler_params=pltpu.CompilerParams(
            dimension_semantics=("parallel",)),
        cost_estimate=pl.CostEstimate(
            flops=2 * C * HW * C * HW + (C // 2) * 2 * C * (2 * HW) * (4 * HW),
            transcendentals=C * C * HW,
            bytes_accessed=4 * (C * C * HW + C * HW + 8 * C * HW
                                + C * 8 * 4 * HW + HW * n1 + 2 * HW * 4 * HW),
        ),
    )(xa, src1, m1, src2, m2)

    # Free metadata reshape: lanes were written in exact (b, i, q) order.
    return flat.reshape(C, C, H, W)


def _reference(x, dim=1):
    X = x[0]
    scale = math.sqrt(dim)
    qk = jnp.einsum('bij,akj->abik', X, X, precision='highest') * scale
    p = jax.nn.softmax(qk, axis=-1)
    return jnp.einsum('abik,bkq->abiq', p, X, precision='highest')


if __name__ == "__main__":
    # Small shape consistent with the module (original was (1, 256, 8, 8)).
    key = jax.random.PRNGKey(0)
    x = jax.random.normal(key, (1, 64, 8, 8), dtype=jnp.float32)

    out = jax.block_until_ready(model_forward(x))

    ref = _reference(x)
    assert out.shape == (64, 64, 8, 8), out.shape
    # Tolerance accounts for MXU multi-pass f32 matmuls inside the kernel.
    err = float(jnp.max(jnp.abs(out - ref)))
    assert err < 1e-4, err
    print("KERNEL_OK")
</pallas_src>

<mosaic_0001>
module attributes {stable_mosaic.version = 11 : i64} {
  func.func @_attn_kernel(%arg0: i32, %arg1: memref<64x64xf32, #tpu.memory_space<vmem>>, %arg2: memref<8x1024xf32, #tpu.memory_space<vmem>>, %arg3: memref<64x1024xf32, #tpu.memory_space<vmem>>, %arg4: memref<16x8x256xf32, #tpu.memory_space<vmem>>, %arg5: memref<128x256xf32, #tpu.memory_space<vmem>>, %arg6: memref<64x1024xf32, #tpu.memory_space<vmem>>) attributes {dimension_semantics = [#tpu.dimension_semantics<parallel>], iteration_bounds = array<i64: 4>, scalar_prefetch = 0 : i64, scratch_operands = 0 : i64, tpu.core_type = #tpu.core_type<tc>, window_params = [{pipeline_mode = #tpu.pipeline_mode<synchronous>, transform_indices = @transform_0, window_bounds = array<i64: 64, 64>}, {transform_indices = @transform_1, window_bounds = array<i64: 8, 1024>}, {pipeline_mode = #tpu.pipeline_mode<synchronous>, transform_indices = @transform_2, window_bounds = array<i64: 64, 1024>}, {transform_indices = @transform_3, window_bounds = array<i64: 16, 8, 256>}, {pipeline_mode = #tpu.pipeline_mode<synchronous>, transform_indices = @transform_4, window_bounds = array<i64: 128, 256>}, {transform_indices = @transform_5, window_bounds = array<i64: 64, 1024>}]} {
    %c0 = arith.constant 0 : index
    %c0_0 = arith.constant 0 : index
    %0 = vector.load %arg1[%c0, %c0_0] : memref<64x64xf32, #tpu.memory_space<vmem>>, vector<64x64xf32>
    %c0_1 = arith.constant 0 : index
    %c0_2 = arith.constant 0 : index
    %1 = vector.load %arg2[%c0_1, %c0_2] : memref<8x1024xf32, #tpu.memory_space<vmem>>, vector<8x1024xf32>
    %2 = tpu.concatenate %1, %1, %1, %1, %1, %1, %1, %1 in 0 : vector<8x1024xf32>, vector<8x1024xf32>, vector<8x1024xf32>, vector<8x1024xf32>, vector<8x1024xf32>, vector<8x1024xf32>, vector<8x1024xf32>, vector<8x1024xf32> -> vector<64x1024xf32>
    %c0_3 = arith.constant 0 : index
    %c0_4 = arith.constant 0 : index
    %3 = vector.load %arg3[%c0_3, %c0_4] : memref<64x1024xf32, #tpu.memory_space<vmem>>, vector<64x1024xf32>
    %4 = arith.mulf %2, %3 : vector<64x1024xf32>
    %cst = arith.constant dense<0.000000e+00> : vector<64x1024xf32>
    %5 = tpu.matmul %0, %4, %cst {dimension_numbers = #tpu.dot_dimension_numbers<[1], [0], [0], [1], [0, 0, 1, 1], [], []>} : vector<64x64xf32>, vector<64x1024xf32>, vector<64x1024xf32> -> vector<64x1024xf32>
    %c0_5 = arith.constant 0 : index
    %c0_6 = arith.constant 0 : index
    %6 = vector.load %arg5[%c0_5, %c0_6] : memref<128x256xf32, #tpu.memory_space<vmem>>, vector<128x256xf32>
    %7 = vector.extract_strided_slice %5 {offsets = [0, 0], sizes = [64, 128], strides = [1, 1]} : vector<64x1024xf32> to vector<64x128xf32>
    %cst_7 = arith.constant dense<0xFF800000> : vector<64xf32>
    %8 = vector.multi_reduction <maximumf>, %7, %cst_7 [1] : vector<64x128xf32> to vector<64xf32>
    %9 = vector.shape_cast %8 : vector<64xf32> to vector<64x1xf32>
    %10 = vector.broadcast %9 : vector<64x1xf32> to vector<64x128xf32>
    %11 = arith.subf %7, %10 : vector<64x128xf32>
    %12 = math.exp %11 : vector<64x128xf32>
    %c0_8 = arith.constant 0 : index
    %c0_9 = arith.constant 0 : index
    %c0_10 = arith.constant 0 : index
    %13 = vector.load %arg4[%c0_8, %c0_9, %c0_10] : memref<16x8x256xf32, #tpu.memory_space<vmem>>, vector<1x8x256xf32>
    %14 = vector.shape_cast %13 : vector<1x8x256xf32> to vector<8x256xf32>
    %15 = tpu.concatenate %14, %14, %14, %14, %14, %14, %14, %14 in 0 : vector<8x256xf32>, vector<8x256xf32>, vector<8x256xf32>, vector<8x256xf32>, vector<8x256xf32>, vector<8x256xf32>, vector<8x256xf32>, vector<8x256xf32> -> vector<64x256xf32>
    %c1 = arith.constant 1 : index
    %c0_11 = arith.constant 0 : index
    %c0_12 = arith.constant 0 : index
    %16 = vector.load %arg4[%c1, %c0_11, %c0_12] : memref<16x8x256xf32, #tpu.memory_space<vmem>>, vector<1x8x256xf32>
    %17 = vector.shape_cast %16 : vector<1x8x256xf32> to vector<8x256xf32>
    %18 = tpu.concatenate %17, %17, %17, %17, %17, %17, %17, %17 in 0 : vector<8x256xf32>, vector<8x256xf32>, vector<8x256xf32>, vector<8x256xf32>, vector<8x256xf32>, vector<8x256xf32>, vector<8x256xf32>, vector<8x256xf32> -> vector<64x256xf32>
    %19 = tpu.concatenate %15, %18 in 0 : vector<64x256xf32>, vector<64x256xf32> -> vector<128x256xf32>
    %20 = arith.mulf %19, %6 : vector<128x256xf32>
    %cst_13 = arith.constant dense<0.000000e+00> : vector<64x256xf32>
    %21 = tpu.matmul %12, %20, %cst_13 {dimension_numbers = #tpu.dot_dimension_numbers<[1], [0], [0], [1], [0, 0, 1, 1], [], []>} : vector<64x128xf32>, vector<128x256xf32>, vector<64x256xf32> -> vector<64x256xf32>
    %22 = vector.extract_strided_slice %21 {offsets = [0, 0], sizes = [64, 128], strides = [1, 1]} : vector<64x256xf32> to vector<64x128xf32>
    %23 = vector.extract_strided_slice %21 {offsets = [0, 128], sizes = [64, 128], strides = [1, 1]} : vector<64x256xf32> to vector<64x128xf32>
    %cst_14 = arith.constant 1.000000e-30 : f32
    %24 = vector.broadcast %cst_14 : f32 to vector<64x128xf32>
    %25 = arith.maximumf %23, %24 : vector<64x128xf32>
    %26 = arith.divf %22, %25 : vector<64x128xf32>
    %c0_15 = arith.constant 0 : index
    %c0_16 = arith.constant 0 : index
    %27 = vector.load %arg6[%c0_15, %c0_16] : memref<64x1024xf32, #tpu.memory_space<vmem>>, vector<64x128xf32>
    tpu.vector_store %arg6[%c0_15, %c0_16], %26 {strides = array<i32>} : memref<64x1024xf32, #tpu.memory_space<vmem>>, vector<64x128xf32>,
    %28 = vector.extract_strided_slice %5 {offsets = [0, 128], sizes = [64, 128], strides = [1, 1]} : vector<64x1024xf32> to vector<64x128xf32>
    %cst_17 = arith.constant dense<0xFF800000> : vector<64xf32>
    %29 = vector.multi_reduction <maximumf>, %28, %cst_17 [1] : vector<64x128xf32> to vector<64xf32>
    %30 = vector.shape_cast %29 : vector<64xf32> to vector<64x1xf32>
    %31 = vector.broadcast %30 : vector<64x1xf32> to vector<64x128xf32>
    %32 = arith.subf %28, %31 : vector<64x128xf32>
    %33 = math.exp %32 : vector<64x128xf32>
    %c2 = arith.constant 2 : index
    %c0_18 = arith.constant 0 : index
    %c0_19 = arith.constant 0 : index
    %34 = vector.load %arg4[%c2, %c0_18, %c0_19] : memref<16x8x256xf32, #tpu.memory_space<vmem>>, vector<1x8x256xf32>
    %35 = vector.shape_cast %34 : vector<1x8x256xf32> to vector<8x256xf32>
    %36 = tpu.concatenate %35, %35, %35, %35, %35, %35, %35, %35 in 0 : vector<8x256xf32>, vector<8x256xf32>, vector<8x256xf32>, vector<8x256xf32>, vector<8x256xf32>, vector<8x256xf32>, vector<8x256xf32>, vector<8x256xf32> -> vector<64x256xf32>
    %c3 = arith.constant 3 : index
    %c0_20 = arith.constant 0 : index
    %c0_21 = arith.constant 0 : index
    %37 = vector.load %arg4[%c3, %c0_20, %c0_21] : memref<16x8x256xf32, #tpu.memory_space<vmem>>, vector<1x8x256xf32>
    %38 = vector.shape_cast %37 : vector<1x8x256xf32> to vector<8x256xf32>
    %39 = tpu.concatenate %38, %38, %38, %38, %38, %38, %38, %38 in 0 : vector<8x256xf32>, vector<8x256xf32>, vector<8x256xf32>, vector<8x256xf32>, vector<8x256xf32>, vector<8x256xf32>, vector<8x256xf32>, vector<8x256xf32> -> vector<64x256xf32>
    %40 = tpu.concatenate %36, %39 in 0 : vector<64x256xf32>, vector<64x256xf32> -> vector<128x256xf32>
    %41 = arith.mulf %40, %6 : vector<128x256xf32>
    %cst_22 = arith.constant dense<0.000000e+00> : vector<64x256xf32>
    %42 = tpu.matmul %33, %41, %cst_22 {dimension_numbers = #tpu.dot_dimension_numbers<[1], [0], [0], [1], [0, 0, 1, 1], [], []>} : vector<64x128xf32>, vector<128x256xf32>, vector<64x256xf32> -> vector<64x256xf32>
    %43 = vector.extract_strided_slice %42 {offsets = [0, 0], sizes = [64, 128], strides = [1, 1]} : vector<64x256xf32> to vector<64x128xf32>
    %44 = vector.extract_strided_slice %42 {offsets = [0, 128], sizes = [64, 128], strides = [1, 1]} : vector<64x256xf32> to vector<64x128xf32>
    %cst_23 = arith.constant 1.000000e-30 : f32
    %45 = vector.broadcast %cst_23 : f32 to vector<64x128xf32>
    %46 = arith.maximumf %44, %45 : vector<64x128xf32>
    %47 = arith.divf %43, %46 : vector<64x128xf32>
    %c0_24 = arith.constant 0 : index
    %c128 = arith.constant 128 : index
    %48 = vector.load %arg6[%c0_24, %c128] : memref<64x1024xf32, #tpu.memory_space<vmem>>, vector<64x128xf32>
    tpu.vector_store %arg6[%c0_24, %c128], %47 {strides = array<i32>} : memref<64x1024xf32, #tpu.memory_space<vmem>>, vector<64x128xf32>,
    %49 = vector.extract_strided_slice %5 {offsets = [0, 256], sizes = [64, 128], strides = [1, 1]} : vector<64x1024xf32> to vector<64x128xf32>
    %cst_25 = arith.constant dense<0xFF800000> : vector<64xf32>
    %50 = vector.multi_reduction <maximumf>, %49, %cst_25 [1] : vector<64x128xf32> to vector<64xf32>
    %51 = vector.shape_cast %50 : vector<64xf32> to vector<64x1xf32>
    %52 = vector.broadcast %51 : vector<64x1xf32> to vector<64x128xf32>
    %53 = arith.subf %49, %52 : vector<64x128xf32>
    %54 = math.exp %53 : vector<64x128xf32>
    %c4 = arith.constant 4 : index
    %c0_26 = arith.constant 0 : index
    %c0_27 = arith.constant 0 : index
    %55 = vector.load %arg4[%c4, %c0_26, %c0_27] : memref<16x8x256xf32, #tpu.memory_space<vmem>>, vector<1x8x256xf32>
    %56 = vector.shape_cast %55 : vector<1x8x256xf32> to vector<8x256xf32>
    %57 = tpu.concatenate %56, %56, %56, %56, %56, %56, %56, %56 in 0 : vector<8x256xf32>, vector<8x256xf32>, vector<8x256xf32>, vector<8x256xf32>, vector<8x256xf32>, vector<8x256xf32>, vector<8x256xf32>, vector<8x256xf32> -> vector<64x256xf32>
    %c5 = arith.constant 5 : index
    %c0_28 = arith.constant 0 : index
    %c0_29 = arith.constant 0 : index
    %58 = vector.load %arg4[%c5, %c0_28, %c0_29] : memref<16x8x256xf32, #tpu.memory_space<vmem>>, vector<1x8x256xf32>
    %59 = vector.shape_cast %58 : vector<1x8x256xf32> to vector<8x256xf32>
    %60 = tpu.concatenate %59, %59, %59, %59, %59, %59, %59, %59 in 0 : vector<8x256xf32>, vector<8x256xf32>, vector<8x256xf32>, vector<8x256xf32>, vector<8x256xf32>, vector<8x256xf32>, vector<8x256xf32>, vector<8x256xf32> -> vector<64x256xf32>
    %61 = tpu.concatenate %57, %60 in 0 : vector<64x256xf32>, vector<64x256xf32> -> vector<128x256xf32>
    %62 = arith.mulf %61, %6 : vector<128x256xf32>
    %cst_30 = arith.constant dense<0.000000e+00> : vector<64x256xf32>
    %63 = tpu.matmul %54, %62, %cst_30 {dimension_numbers = #tpu.dot_dimension_numbers<[1], [0], [0], [1], [0, 0, 1, 1], [], []>} : vector<64x128xf32>, vector<128x256xf32>, vector<64x256xf32> -> vector<64x256xf32>
    %64 = vector.extract_strided_slice %63 {offsets = [0, 0], sizes = [64, 128], strides = [1, 1]} : vector<64x256xf32> to vector<64x128xf32>
    %65 = vector.extract_strided_slice %63 {offsets = [0, 128], sizes = [64, 128], strides = [1, 1]} : vector<64x256xf32> to vector<64x128xf32>
    %cst_31 = arith.constant 1.000000e-30 : f32
    %66 = vector.broadcast %cst_31 : f32 to vector<64x128xf32>
    %67 = arith.maximumf %65, %66 : vector<64x128xf32>
    %68 = arith.divf %64, %67 : vector<64x128xf32>
    %c0_32 = arith.constant 0 : index
    %c256 = arith.constant 256 : index
    %69 = vector.load %arg6[%c0_32, %c256] : memref<64x1024xf32, #tpu.memory_space<vmem>>, vector<64x128xf32>
    tpu.vector_store %arg6[%c0_32, %c256], %68 {strides = array<i32>} : memref<64x1024xf32, #tpu.memory_space<vmem>>, vector<64x128xf32>,
    %70 = vector.extract_strided_slice %5 {offsets = [0, 384], sizes = [64, 128], strides = [1, 1]} : vector<64x1024xf32> to vector<64x128xf32>
    %cst_33 = arith.constant dense<0xFF800000> : vector<64xf32>
    %71 = vector.multi_reduction <maximumf>, %70, %cst_33 [1] : vector<64x128xf32> to vector<64xf32>
    %72 = vector.shape_cast %71 : vector<64xf32> to vector<64x1xf32>
    %73 = vector.broadcast %72 : vector<64x1xf32> to vector<64x128xf32>
    %74 = arith.subf %70, %73 : vector<64x128xf32>
    %75 = math.exp %74 : vector<64x128xf32>
    %c6 = arith.constant 6 : index
    %c0_34 = arith.constant 0 : index
    %c0_35 = arith.constant 0 : index
    %76 = vector.load %arg4[%c6, %c0_34, %c0_35] : memref<16x8x256xf32, #tpu.memory_space<vmem>>, vector<1x8x256xf32>
    %77 = vector.shape_cast %76 : vector<1x8x256xf32> to vector<8x256xf32>
    %78 = tpu.concatenate %77, %77, %77, %77, %77, %77, %77, %77 in 0 : vector<8x256xf32>, vector<8x256xf32>, vector<8x256xf32>, vector<8x256xf32>, vector<8x256xf32>, vector<8x256xf32>, vector<8x256xf32>, vector<8x256xf32> -> vector<64x256xf32>
    %c7 = arith.constant 7 : index
    %c0_36 = arith.constant 0 : index
    %c0_37 = arith.constant 0 : index
    %79 = vector.load %arg4[%c7, %c0_36, %c0_37] : memref<16x8x256xf32, #tpu.memory_space<vmem>>, vector<1x8x256xf32>
    %80 = vector.shape_cast %79 : vector<1x8x256xf32> to vector<8x256xf32>
    %81 = tpu.concatenate %80, %80, %80, %80, %80, %80, %80, %80 in 0 : vector<8x256xf32>, vector<8x256xf32>, vector<8x256xf32>, vector<8x256xf32>, vector<8x256xf32>, vector<8x256xf32>, vector<8x256xf32>, vector<8x256xf32> -> vector<64x256xf32>
    %82 = tpu.concatenate %78, %81 in 0 : vector<64x256xf32>, vector<64x256xf32> -> vector<128x256xf32>
    %83 = arith.mulf %82, %6 : vector<128x256xf32>
    %cst_38 = arith.constant dense<0.000000e+00> : vector<64x256xf32>
    %84 = tpu.matmul %75, %83, %cst_38 {dimension_numbers = #tpu.dot_dimension_numbers<[1], [0], [0], [1], [0, 0, 1, 1], [], []>} : vector<64x128xf32>, vector<128x256xf32>, vector<64x256xf32> -> vector<64x256xf32>
    %85 = vector.extract_strided_slice %84 {offsets = [0, 0], sizes = [64, 128], strides = [1, 1]} : vector<64x256xf32> to vector<64x128xf32>
    %86 = vector.extract_strided_slice %84 {offsets = [0, 128], sizes = [64, 128], strides = [1, 1]} : vector<64x256xf32> to vector<64x128xf32>
    %cst_39 = arith.constant 1.000000e-30 : f32
    %87 = vector.broadcast %cst_39 : f32 to vector<64x128xf32>
    %88 = arith.maximumf %86, %87 : vector<64x128xf32>
    %89 = arith.divf %85, %88 : vector<64x128xf32>
    %c0_40 = arith.constant 0 : index
    %c384 = arith.constant 384 : index
    %90 = vector.load %arg6[%c0_40, %c384] : memref<64x1024xf32, #tpu.memory_space<vmem>>, vector<64x128xf32>
    tpu.vector_store %arg6[%c0_40, %c384], %89 {strides = array<i32>} : memref<64x1024xf32, #tpu.memory_space<vmem>>, vector<64x128xf32>,
    %91 = vector.extract_strided_slice %5 {offsets = [0, 512], sizes = [64, 128], strides = [1, 1]} : vector<64x1024xf32> to vector<64x128xf32>
    %cst_41 = arith.constant dense<0xFF800000> : vector<64xf32>
    %92 = vector.multi_reduction <maximumf>, %91, %cst_41 [1] : vector<64x128xf32> to vector<64xf32>
    %93 = vector.shape_cast %92 : vector<64xf32> to vector<64x1xf32>
    %94 = vector.broadcast %93 : vector<64x1xf32> to vector<64x128xf32>
    %95 = arith.subf %91, %94 : vector<64x128xf32>
    %96 = math.exp %95 : vector<64x128xf32>
    %c8 = arith.constant 8 : index
    %c0_42 = arith.constant 0 : index
    %c0_43 = arith.constant 0 : index
    %97 = vector.load %arg4[%c8, %c0_42, %c0_43] : memref<16x8x256xf32, #tpu.memory_space<vmem>>, vector<1x8x256xf32>
    %98 = vector.shape_cast %97 : vector<1x8x256xf32> to vector<8x256xf32>
    %99 = tpu.concatenate %98, %98, %98, %98, %98, %98, %98, %98 in 0 : vector<8x256xf32>, vector<8x256xf32>, vector<8x256xf32>, vector<8x256xf32>, vector<8x256xf32>, vector<8x256xf32>, vector<8x256xf32>, vector<8x256xf32> -> vector<64x256xf32>
    %c9 = arith.constant 9 : index
    %c0_44 = arith.constant 0 : index
    %c0_45 = arith.constant 0 : index
    %100 = vector.load %arg4[%c9, %c0_44, %c0_45] : memref<16x8x256xf32, #tpu.memory_space<vmem>>, vector<1x8x256xf32>
    %101 = vector.shape_cast %100 : vector<1x8x256xf32> to vector<8x256xf32>
    %102 = tpu.concatenate %101, %101, %101, %101, %101, %101, %101, %101 in 0 : vector<8x256xf32>, vector<8x256xf32>, vector<8x256xf32>, vector<8x256xf32>, vector<8x256xf32>, vector<8x256xf32>, vector<8x256xf32>, vector<8x256xf32> -> vector<64x256xf32>
    %103 = tpu.concatenate %99, %102 in 0 : vector<64x256xf32>, vector<64x256xf32> -> vector<128x256xf32>
    %104 = arith.mulf %103, %6 : vector<128x256xf32>
    %cst_46 = arith.constant dense<0.000000e+00> : vector<64x256xf32>
    %105 = tpu.matmul %96, %104, %cst_46 {dimension_numbers = #tpu.dot_dimension_numbers<[1], [0], [0], [1], [0, 0, 1, 1], [], []>} : vector<64x128xf32>, vector<128x256xf32>, vector<64x256xf32> -> vector<64x256xf32>
    %106 = vector.extract_strided_slice %105 {offsets = [0, 0], sizes = [64, 128], strides = [1, 1]} : vector<64x256xf32> to vector<64x128xf32>
    %107 = vector.extract_strided_slice %105 {offsets = [0, 128], sizes = [64, 128], strides = [1, 1]} : vector<64x256xf32> to vector<64x128xf32>
    %cst_47 = arith.constant 1.000000e-30 : f32
    %108 = vector.broadcast %cst_47 : f32 to vector<64x128xf32>
    %109 = arith.maximumf %107, %108 : vector<64x128xf32>
    %110 = arith.divf %106, %109 : vector<64x128xf32>
    %c0_48 = arith.constant 0 : index
    %c512 = arith.constant 512 : index
    %111 = vector.load %arg6[%c0_48, %c512] : memref<64x1024xf32, #tpu.memory_space<vmem>>, vector<64x128xf32>
    tpu.vector_store %arg6[%c0_48, %c512], %110 {strides = array<i32>} : memref<64x1024xf32, #tpu.memory_space<vmem>>, vector<64x128xf32>,
    %112 = vector.extract_strided_slice %5 {offsets = [0, 640], sizes = [64, 128], strides = [1, 1]} : vector<64x1024xf32> to vector<64x128xf32>
    %cst_49 = arith.constant dense<0xFF800000> : vector<64xf32>
    %113 = vector.multi_reduction <maximumf>, %112, %cst_49 [1] : vector<64x128xf32> to vector<64xf32>
    %114 = vector.shape_cast %113 : vector<64xf32> to vector<64x1xf32>
    %115 = vector.broadcast %114 : vector<64x1xf32> to vector<64x128xf32>
    %116 = arith.subf %112, %115 : vector<64x128xf32>
    %117 = math.exp %116 : vector<64x128xf32>
    %c10 = arith.constant 10 : index
    %c0_50 = arith.constant 0 : index
    %c0_51 = arith.constant 0 : index
    %118 = vector.load %arg4[%c10, %c0_50, %c0_51] : memref<16x8x256xf32, #tpu.memory_space<vmem>>, vector<1x8x256xf32>
    %119 = vector.shape_cast %118 : vector<1x8x256xf32> to vector<8x256xf32>
    %120 = tpu.concatenate %119, %119, %119, %119, %119, %119, %119, %119 in 0 : vector<8x256xf32>, vector<8x256xf32>, vector<8x256xf32>, vector<8x256xf32>, vector<8x256xf32>, vector<8x256xf32>, vector<8x256xf32>, vector<8x256xf32> -> vector<64x256xf32>
    %c11 = arith.constant 11 : index
    %c0_52 = arith.constant 0 : index
    %c0_53 = arith.constant 0 : index
    %121 = vector.load %arg4[%c11, %c0_52, %c0_53] : memref<16x8x256xf32, #tpu.memory_space<vmem>>, vector<1x8x256xf32>
    %122 = vector.shape_cast %121 : vector<1x8x256xf32> to vector<8x256xf32>
    %123 = tpu.concatenate %122, %122, %122, %122, %122, %122, %122, %122 in 0 : vector<8x256xf32>, vector<8x256xf32>, vector<8x256xf32>, vector<8x256xf32>, vector<8x256xf32>, vector<8x256xf32>, vector<8x256xf32>, vector<8x256xf32> -> vector<64x256xf32>
    %124 = tpu.concatenate %120, %123 in 0 : vector<64x256xf32>, vector<64x256xf32> -> vector<128x256xf32>
    %125 = arith.mulf %124, %6 : vector<128x256xf32>
    %cst_54 = arith.constant dense<0.000000e+00> : vector<64x256xf32>
    %126 = tpu.matmul %117, %125, %cst_54 {dimension_numbers = #tpu.dot_dimension_numbers<[1], [0], [0], [1], [0, 0, 1, 1], [], []>} : vector<64x128xf32>, vector<128x256xf32>, vector<64x256xf32> -> vector<64x256xf32>
    %127 = vector.extract_strided_slice %126 {offsets = [0, 0], sizes = [64, 128], strides = [1, 1]} : vector<64x256xf32> to vector<64x128xf32>
    %128 = vector.extract_strided_slice %126 {offsets = [0, 128], sizes = [64, 128], strides = [1, 1]} : vector<64x256xf32> to vector<64x128xf32>
    %cst_55 = arith.constant 1.000000e-30 : f32
    %129 = vector.broadcast %cst_55 : f32 to vector<64x128xf32>
    %130 = arith.maximumf %128, %129 : vector<64x128xf32>
    %131 = arith.divf %127, %130 : vector<64x128xf32>
    %c0_56 = arith.constant 0 : index
    %c640 = arith.constant 640 : index
    %132 = vector.load %arg6[%c0_56, %c640] : memref<64x1024xf32, #tpu.memory_space<vmem>>, vector<64x128xf32>
    tpu.vector_store %arg6[%c0_56, %c640], %131 {strides = array<i32>} : memref<64x1024xf32, #tpu.memory_space<vmem>>, vector<64x128xf32>,
    %133 = vector.extract_strided_slice %5 {offsets = [0, 768], sizes = [64, 128], strides = [1, 1]} : vector<64x1024xf32> to vector<64x128xf32>
    %cst_57 = arith.constant dense<0xFF800000> : vector<64xf32>
    %134 = vector.multi_reduction <maximumf>, %133, %cst_57 [1] : vector<64x128xf32> to vector<64xf32>
    %135 = vector.shape_cast %134 : vector<64xf32> to vector<64x1xf32>
    %136 = vector.broadcast %135 : vector<64x1xf32> to vector<64x128xf32>
    %137 = arith.subf %133, %136 : vector<64x128xf32>
    %138 = math.exp %137 : vector<64x128xf32>
    %c12 = arith.constant 12 : index
    %c0_58 = arith.constant 0 : index
    %c0_59 = arith.constant 0 : index
    %139 = vector.load %arg4[%c12, %c0_58, %c0_59] : memref<16x8x256xf32, #tpu.memory_space<vmem>>, vector<1x8x256xf32>
    %140 = vector.shape_cast %139 : vector<1x8x256xf32> to vector<8x256xf32>
    %141 = tpu.concatenate %140, %140, %140, %140, %140, %140, %140, %140 in 0 : vector<8x256xf32>, vector<8x256xf32>, vector<8x256xf32>, vector<8x256xf32>, vector<8x256xf32>, vector<8x256xf32>, vector<8x256xf32>, vector<8x256xf32> -> vector<64x256xf32>
    %c13 = arith.constant 13 : index
    %c0_60 = arith.constant 0 : index
    %c0_61 = arith.constant 0 : index
    %142 = vector.load %arg4[%c13, %c0_60, %c0_61] : memref<16x8x256xf32, #tpu.memory_space<vmem>>, vector<1x8x256xf32>
    %143 = vector.shape_cast %142 : vector<1x8x256xf32> to vector<8x256xf32>
    %144 = tpu.concatenate %143, %143, %143, %143, %143, %143, %143, %143 in 0 : vector<8x256xf32>, vector<8x256xf32>, vector<8x256xf32>, vector<8x256xf32>, vector<8x256xf32>, vector<8x256xf32>, vector<8x256xf32>, vector<8x256xf32> -> vector<64x256xf32>
    %145 = tpu.concatenate %141, %144 in 0 : vector<64x256xf32>, vector<64x256xf32> -> vector<128x256xf32>
    %146 = arith.mulf %145, %6 : vector<128x256xf32>
    %cst_62 = arith.constant dense<0.000000e+00> : vector<64x256xf32>
    %147 = tpu.matmul %138, %146, %cst_62 {dimension_numbers = #tpu.dot_dimension_numbers<[1], [0], [0], [1], [0, 0, 1, 1], [], []>} : vector<64x128xf32>, vector<128x256xf32>, vector<64x256xf32> -> vector<64x256xf32>
    %148 = vector.extract_strided_slice %147 {offsets = [0, 0], sizes = [64, 128], strides = [1, 1]} : vector<64x256xf32> to vector<64x128xf32>
    %149 = vector.extract_strided_slice %147 {offsets = [0, 128], sizes = [64, 128], strides = [1, 1]} : vector<64x256xf32> to vector<64x128xf32>
    %cst_63 = arith.constant 1.000000e-30 : f32
    %150 = vector.broadcast %cst_63 : f32 to vector<64x128xf32>
    %151 = arith.maximumf %149, %150 : vector<64x128xf32>
    %152 = arith.divf %148, %151 : vector<64x128xf32>
    %c0_64 = arith.constant 0 : index
    %c768 = arith.constant 768 : index
    %153 = vector.load %arg6[%c0_64, %c768] : memref<64x1024xf32, #tpu.memory_space<vmem>>, vector<64x128xf32>
    tpu.vector_store %arg6[%c0_64, %c768], %152 {strides = array<i32>} : memref<64x1024xf32, #tpu.memory_space<vmem>>, vector<64x128xf32>,
    %154 = vector.extract_strided_slice %5 {offsets = [0, 896], sizes = [64, 128], strides = [1, 1]} : vector<64x1024xf32> to vector<64x128xf32>
    %cst_65 = arith.constant dense<0xFF800000> : vector<64xf32>
    %155 = vector.multi_reduction <maximumf>, %154, %cst_65 [1] : vector<64x128xf32> to vector<64xf32>
    %156 = vector.shape_cast %155 : vector<64xf32> to vector<64x1xf32>
    %157 = vector.broadcast %156 : vector<64x1xf32> to vector<64x128xf32>
    %158 = arith.subf %154, %157 : vector<64x128xf32>
    %159 = math.exp %158 : vector<64x128xf32>
    %c14 = arith.constant 14 : index
    %c0_66 = arith.constant 0 : index
    %c0_67 = arith.constant 0 : index
    %160 = vector.load %arg4[%c14, %c0_66, %c0_67] : memref<16x8x256xf32, #tpu.memory_space<vmem>>, vector<1x8x256xf32>
    %161 = vector.shape_cast %160 : vector<1x8x256xf32> to vector<8x256xf32>
    %162 = tpu.concatenate %161, %161, %161, %161, %161, %161, %161, %161 in 0 : vector<8x256xf32>, vector<8x256xf32>, vector<8x256xf32>, vector<8x256xf32>, vector<8x256xf32>, vector<8x256xf32>, vector<8x256xf32>, vector<8x256xf32> -> vector<64x256xf32>
    %c15 = arith.constant 15 : index
    %c0_68 = arith.constant 0 : index
    %c0_69 = arith.constant 0 : index
    %163 = vector.load %arg4[%c15, %c0_68, %c0_69] : memref<16x8x256xf32, #tpu.memory_space<vmem>>, vector<1x8x256xf32>
    %164 = vector.shape_cast %163 : vector<1x8x256xf32> to vector<8x256xf32>
    %165 = tpu.concatenate %164, %164, %164, %164, %164, %164, %164, %164 in 0 : vector<8x256xf32>, vector<8x256xf32>, vector<8x256xf32>, vector<8x256xf32>, vector<8x256xf32>, vector<8x256xf32>, vector<8x256xf32>, vector<8x256xf32> -> vector<64x256xf32>
    %166 = tpu.concatenate %162, %165 in 0 : vector<64x256xf32>, vector<64x256xf32> -> vector<128x256xf32>
    %167 = arith.mulf %166, %6 : vector<128x256xf32>
    %cst_70 = arith.constant dense<0.000000e+00> : vector<64x256xf32>
    %168 = tpu.matmul %159, %167, %cst_70 {dimension_numbers = #tpu.dot_dimension_numbers<[1], [0], [0], [1], [0, 0, 1, 1], [], []>} : vector<64x128xf32>, vector<128x256xf32>, vector<64x256xf32> -> vector<64x256xf32>
    %169 = vector.extract_strided_slice %168 {offsets = [0, 0], sizes = [64, 128], strides = [1, 1]} : vector<64x256xf32> to vector<64x128xf32>
    %170 = vector.extract_strided_slice %168 {offsets = [0, 128], sizes = [64, 128], strides = [1, 1]} : vector<64x256xf32> to vector<64x128xf32>
    %cst_71 = arith.constant 1.000000e-30 : f32
    %171 = vector.broadcast %cst_71 : f32 to vector<64x128xf32>
    %172 = arith.maximumf %170, %171 : vector<64x128xf32>
    %173 = arith.divf %169, %172 : vector<64x128xf32>
    %c0_72 = arith.constant 0 : index
    %c896 = arith.constant 896 : index
    %174 = vector.load %arg6[%c0_72, %c896] : memref<64x1024xf32, #tpu.memory_space<vmem>>, vector<64x128xf32>
    tpu.vector_store %arg6[%c0_72, %c896], %173 {strides = array<i32>} : memref<64x1024xf32, #tpu.memory_space<vmem>>, vector<64x128xf32>,
    return
  }
  func.func @transform_0(%arg0: i32) -> (i32, i32) {
    %c0_i32 = arith.constant 0 : i32
    %c0_i32_0 = arith.constant 0 : i32
    %c0_i32_1 = arith.constant 0 : i32
    return %c0_i32, %c0_i32_0 : i32, i32
  }
  func.func @transform_1(%arg0: i32) -> (i32, i32) {
    %c0_i32 = arith.constant 0 : i32
    %c0_i32_0 = arith.constant 0 : i32
    return %c0_i32, %arg0 : i32, i32
  }
  func.func @transform_2(%arg0: i32) -> (i32, i32) {
    %c0_i32 = arith.constant 0 : i32
    %c0_i32_0 = arith.constant 0 : i32
    %c0_i32_1 = arith.constant 0 : i32
    return %c0_i32, %c0_i32_0 : i32, i32
  }
  func.func @transform_3(%arg0: i32) -> (i32, i32, i32) {
    %c0_i32 = arith.constant 0 : i32
    %c0_i32_0 = arith.constant 0 : i32
    %c0_i32_1 = arith.constant 0 : i32
    return %arg0, %c0_i32, %c0_i32_0 : i32, i32, i32
  }
  func.func @transform_4(%arg0: i32) -> (i32, i32) {
    %c0_i32 = arith.constant 0 : i32
    %c0_i32_0 = arith.constant 0 : i32
    %c0_i32_1 = arith.constant 0 : i32
    return %c0_i32, %c0_i32_0 : i32, i32
  }
  func.func @transform_5(%arg0: i32) -> (i32, i32) {
    %c0_i32 = arith.constant 0 : i32
    %c0_i32_0 = arith.constant 0 : i32
    return %c0_i32, %arg0 : i32, i32
  }
}

</mosaic_0001>

<llo_original>
// kernel: tpu_custom_call.1
$region0: #{tpu_custom_call.1}
  #allocation0 [shape = 'u32[]', space=smem, size = 0x4, offset = 0x4, fixed_abs, tag = 'smem constant byte address 0x4 - core index']
  #allocation1 [shape = 'u32[144,128]{1,0:T(1,128)}', space=vmem, size = 0x12000, scoped, tag = 'internal scratch']
  %s0 = inlined_call_operand.hbm [shape: f32[64,64], index: 0, kind: input, shape index: {}]
  %s1 = inlined_call_operand.hbm [shape: f32[8,4096], index: 1, kind: input, shape index: {}]
  %s2 = inlined_call_operand.hbm [shape: f32[64,1024], index: 2, kind: input, shape index: {}]
  %s3 = inlined_call_operand.hbm [shape: f32[64,8,256], index: 3, kind: input, shape index: {}]
  %s4 = inlined_call_operand.hbm [shape: f32[128,256], index: 4, kind: input, shape index: {}]
  %s5 = inlined_call_operand.hbm [shape: f32[64,4096], index: 5, kind: output, shape index: {}]
  %s6 = sld [smem:[#allocation0]]
  $region73: #{tpu_custom_call.1} parent=0
    _
  %s8 = ssub.s32 1, %s6
  %s9 = scalar_select 0, %s8, %s6
  $region1: #{tpu_custom_call.1} parent=0
    #allocation2 [shape = 'u8[32768]{0}', space=vmem, size = 0x8000, scoped, tag = 'input window, operand 0, single buffered']
    #allocation3 [shape = 's32[2]{0}', space=sflag, size = 0x8, scoped, tag = 'scoped memory for tpu_custom_call.1']
    #allocation4 [shape = 's32[2]{0}', space=sflag, size = 0x8, scoped, tag = 'scoped memory for tpu_custom_call.1']
    #allocation5 [shape = 'u8[65536]{0}', space=vmem, size = 0x10000, scoped, tag = 'input window, operand 1']
    #allocation6 [shape = 's32[2]{0}', space=sflag, size = 0x8, scoped, tag = 'scoped memory for tpu_custom_call.1']
    #allocation7 [shape = 'u8[262144]{0}', space=vmem, size = 0x40000, scoped, tag = 'input window, operand 2, single buffered']
    #allocation8 [shape = 'u8[262144]{0}', space=vmem, size = 0x40000, scoped, tag = 'input window, operand 3']
    #allocation9 [shape = 's32[2]{0}', space=sflag, size = 0x8, scoped, tag = 'scoped memory for tpu_custom_call.1']
    #allocation10 [shape = 'u8[131072]{0}', space=vmem, size = 0x20000, scoped, tag = 'input window, operand 4, single buffered']
    #allocation11 [shape = 'u8[524288]{0}', space=vmem, size = 0x80000, scoped, tag = 'output window, operand 0']
    %10 = vsyncpa [#allocation3], 0
    %11 = vsyncpa [#allocation6], 0
    %s12 = scalar_lea.sflag [#allocation6], 1
    %13 = vsyncpa %s12, 0
    %14 = vsyncpa [#allocation9], 0
    %s15 = scalar_lea.sflag [#allocation9], 1
    %16 = vsyncpa %s15, 0
    %17 = vsyncpa [#allocation4], 0
    %s18 = scalar_lea.sflag [#allocation4], 1
    %19 = vsyncpa %s18, 0
    loop: start=0, step=1, limit=6
    $region2: #{tpu_custom_call.1} parent=1 // loop_pre_header
      _
    $region3: #{tpu_custom_call.1} parent=1 // loop_header
      %s21 = sphi 0, %s25
      %p22 = scmp.ge.s32.totalorder %s21, 6
      %s29 = sphi 0, %s29
      %s31 = sphi 0, %s29
      %s32 = sphi 0, %s31
      %s46 = sphi 0, %s32
      %s52 = sphi 0, %s54
      %s55 = sphi 0, %s52
      %s56 = sphi 0, %s55
      %s72 = sphi 0, %s56
      %s76 = sphi 0, %s76
      %s78 = sphi 0, %s76
      %s79 = sphi 0, %s78
      %s93 = sphi 0, %s79
      %s99 = sphi 0, %s101
      %s102 = sphi 0, %s99
      %s103 = sphi 0, %s102
      %s119 = sphi 0, %s103
      %s123 = sphi 0, %s123
      %s125 = sphi 0, %s123
      %s126 = sphi 0, %s125
      %s140 = sphi 0, %s126
      %s146 = sphi 0, %s148
      %s149 = sphi 0, %s146
      %s150 = sphi 0, %s149
      %s166 = sphi 0, %s150
    $region4: #{tpu_custom_call.1} parent=1 // loop_header_branch
      %24 = sbr.rel (%p22) target = $region8
    $region5: #{tpu_custom_call.1} parent=1 // loop_body
      %s26 = ssub.s32 %s21, 1
      %s27 = ssub.s32 %s21, 2
      %s28 = sadd.s32 %s21, 1
      %s30 = sadd.s32 %s29, 1
      %p33 = scmp.eq.s32.totalorder %s21, 3
      %p34 = scmp.ne.s32.totalorder %s29, %s31
      %p35 = scmp.eq.s32.totalorder %s21, 0
      %p36 = por %p34, %p35
      %p37 = scmp.ne.s32.totalorder %s29, %s31
      %p38 = scmp.eq.s32.totalorder %s26, 3
      %p39 = por %p37, %p38
      %p40 = scmp.ne.s32.totalorder %s31, %s32
      %p41 = scmp.eq.s32.totalorder %s26, 0
      %p42 = por %p40, %p41
      %p43 = scmp.ne.s32.totalorder %s31, %s32
      %p44 = scmp.eq.s32.totalorder %s27, 3
      %p45 = por %p43, %p44
      %p47 = scmp.ne.s32.totalorder %s32, %s46
      %p48 = scmp.eq.s32.totalorder %s27, 0
      %p49 = por %p47, %p48
      %s50 = ssub.s32 %s21, %s28
      %p51 = scmp.eq.s32.totalorder %s50, 0
      %s53 = sadd.s32 %s52, 1
      %s54 = scalar_select %p51, %s52, %s53
      %p57 = pneg %p51
      %p58 = scmp.eq.s32.totalorder %s21, 3
      %p59 = por %p57, %p58
      %p60 = scmp.ne.s32.totalorder %s52, %s55
      %p61 = scmp.eq.s32.totalorder %s21, 0
      %p62 = por %p60, %p61
      %p63 = scmp.ne.s32.totalorder %s52, %s55
      %p64 = scmp.eq.s32.totalorder %s26, 3
      %p65 = por %p63, %p64
      %p66 = scmp.ne.s32.totalorder %s55, %s56
      %p67 = scmp.eq.s32.totalorder %s26, 0
      %p68 = por %p66, %p67
      %p69 = scmp.ne.s32.totalorder %s55, %s56
      %p70 = scmp.eq.s32.totalorder %s27, 3
      %p71 = por %p69, %p70
      %p73 = scmp.ne.s32.totalorder %s56, %s72
      %p74 = scmp.eq.s32.totalorder %s27, 0
      %p75 = por %p73, %p74
      %s77 = sadd.s32 %s76, 1
      %p80 = scmp.eq.s32.totalorder %s21, 3
      %p81 = scmp.ne.s32.totalorder %s76, %s78
      %p82 = scmp.eq.s32.totalorder %s21, 0
      %p83 = por %p81, %p82
      %p84 = scmp.ne.s32.totalorder %s76, %s78
      %p85 = scmp.eq.s32.totalorder %s26, 3
      %p86 = por %p84, %p85
      %p87 = scmp.ne.s32.totalorder %s78, %s79
      %p88 = scmp.eq.s32.totalorder %s26, 0
      %p89 = por %p87, %p88
      %p90 = scmp.ne.s32.totalorder %s78, %s79
      %p91 = scmp.eq.s32.totalorder %s27, 3
      %p92 = por %p90, %p91
      %p94 = scmp.ne.s32.totalorder %s79, %s93
      %p95 = scmp.eq.s32.totalorder %s27, 0
      %p96 = por %p94, %p95
      %s97 = ssub.s32 %s21, %s28
      %p98 = scmp.eq.s32.totalorder %s97, 0
      %s100 = sadd.s32 %s99, 1
      %s101 = scalar_select %p98, %s99, %s100
      %p104 = pneg %p98
      %p105 = scmp.eq.s32.totalorder %s21, 3
      %p106 = por %p104, %p105
      %p107 = scmp.ne.s32.totalorder %s99, %s102
      %p108 = scmp.eq.s32.totalorder %s21, 0
      %p109 = por %p107, %p108
      %p110 = scmp.ne.s32.totalorder %s99, %s102
      %p111 = scmp.eq.s32.totalorder %s26, 3
      %p112 = por %p110, %p111
      %p113 = scmp.ne.s32.totalorder %s102, %s103
      %p114 = scmp.eq.s32.totalorder %s26, 0
      %p115 = por %p113, %p114
      %p116 = scmp.ne.s32.totalorder %s102, %s103
      %p117 = scmp.eq.s32.totalorder %s27, 3
      %p118 = por %p116, %p117
      %p120 = scmp.ne.s32.totalorder %s103, %s119
      %p121 = scmp.eq.s32.totalorder %s27, 0
      %p122 = por %p120, %p121
      %s124 = sadd.s32 %s123, 1
      %p127 = scmp.eq.s32.totalorder %s21, 3
      %p128 = scmp.ne.s32.totalorder %s123, %s125
      %p129 = scmp.eq.s32.totalorder %s21, 0
      %p130 = por %p128, %p129
      %p131 = scmp.ne.s32.totalorder %s123, %s125
      %p132 = scmp.eq.s32.totalorder %s26, 3
      %p133 = por %p131, %p132
      %p134 = scmp.ne.s32.totalorder %s125, %s126
      %p135 = scmp.eq.s32.totalorder %s26, 0
      %p136 = por %p134, %p135
      %p137 = scmp.ne.s32.totalorder %s125, %s126
      %p138 = scmp.eq.s32.totalorder %s27, 3
      %p139 = por %p137, %p138
      %p141 = scmp.ne.s32.totalorder %s126, %s140
      %p142 = scmp.eq.s32.totalorder %s27, 0
      %p143 = por %p141, %p142
      %s144 = ssub.s32 %s21, %s28
      %p145 = scmp.eq.s32.totalorder %s144, 0
      %s147 = sadd.s32 %s146, 1
      %s148 = scalar_select %p145, %s146, %s147
      %p151 = pneg %p145
      %p152 = scmp.eq.s32.totalorder %s21, 3
      %p153 = por %p151, %p152
      %p154 = scmp.ne.s32.totalorder %s146, %s149
      %p155 = scmp.eq.s32.totalorder %s21, 0
      %p156 = por %p154, %p155
      %p157 = scmp.ne.s32.totalorder %s146, %s149
      %p158 = scmp.eq.s32.totalorder %s26, 3
      %p159 = por %p157, %p158
      %p160 = scmp.ne.s32.totalorder %s149, %s150
      %p161 = scmp.eq.s32.totalorder %s26, 0
      %p162 = por %p160, %p161
      %p163 = scmp.ne.s32.totalorder %s149, %s150
      %p164 = scmp.eq.s32.totalorder %s27, 3
      %p165 = por %p163, %p164
      %p167 = scmp.ne.s32.totalorder %s150, %s166
      %p168 = scmp.eq.s32.totalorder %s27, 0
      %p169 = por %p167, %p168
      %p170 = scmp.le.s32.totalorder 1, %s21
      %p171 = scmp.lt.s32.totalorder %s21, 5
      %p172 = pnand %p170, %p171
      %p173 = pneg %p172
      // Predicated region
      $region9: #{tpu_custom_call.1} parent=5 // pred_check
        _
      $region10: #{tpu_custom_call.1} parent=5 // pred_check_branch
        %175 = sbr.rel (%p172) target = $region12
      $region11: #{tpu_custom_call.1} parent=5 // pred_region
        %s176 = ssub.s32 %s21, 1
        // Predicated region
        $region13: #{tpu_custom_call.1} parent=11 // pred_check
          %p177 = pneg %p42
        $region14: #{tpu_custom_call.1} parent=11 // pred_check_branch
          %179 = sbr.rel (%p177) target = $region16
        $region15: #{tpu_custom_call.1} parent=11 // pred_region
          %s181 = ssub.s32 1024, 1024
          %182 = vsyncadd [#allocation3], %s181
          %s183 = sshll.u32 [#allocation2], 4
          %s184 = int_to_ptr.vmem [resolvable:$true] %s183
          %189 = dma.hbm_to_vmem [thread:$0]  %s0, 1024, %s184, [#allocation3], 128, 128, 8
        $region16: #{tpu_custom_call.1} parent=11 // pred_fallthru
          _
        // Predicated region
        $region17: #{tpu_custom_call.1} parent=11 // pred_check
          %p190 = pneg %p89
        $region18: #{tpu_custom_call.1} parent=11 // pred_check_branch
          %192 = sbr.rel (%p190) target = $region20
        $region19: #{tpu_custom_call.1} parent=11 // pred_region
          %s194 = ssub.s32 8192, 8192
          %195 = vsyncadd [#allocation6], %s194
          %s196 = sshll.u32 [#allocation7], 4
          %s197 = int_to_ptr.vmem [resolvable:$true] %s196
          %202 = dma.hbm_to_vmem [thread:$0]  %s2, 8192, %s197, [#allocation6], 1024, 1024, 64
        $region20: #{tpu_custom_call.1} parent=11 // pred_fallthru
          _
        // Predicated region
        $region21: #{tpu_custom_call.1} parent=11 // pred_check
          %p203 = pneg %p136
        $region22: #{tpu_custom_call.1} parent=11 // pred_check_branch
          %205 = sbr.rel (%p203) target = $region24
        $region23: #{tpu_custom_call.1} parent=11 // pred_region
          %s207 = ssub.s32 4096, 4096
          %208 = vsyncadd [#allocation9], %s207
          %s209 = sshll.u32 [#allocation10], 4
          %s210 = int_to_ptr.vmem [resolvable:$true] %s209
          %215 = dma.hbm_to_vmem [thread:$0]  %s4, 4096, %s210, [#allocation9], 256, 256, 16
        $region24: #{tpu_custom_call.1} parent=11 // pred_fallthru
          _
      $region12: #{tpu_custom_call.1} parent=5 // pred_fallthru
        _
      %p216 = scmp.lt.s32.totalorder %s21, 4
      // Predicated region
      $region25: #{tpu_custom_call.1} parent=5 // pred_check
        %p217 = pneg %p216
      $region26: #{tpu_custom_call.1} parent=5 // pred_check_branch
        %219 = sbr.rel (%p217) target = $region28
      $region27: #{tpu_custom_call.1} parent=5 // pred_region
        // Predicated region
        $region29: #{tpu_custom_call.1} parent=27 // pred_check
          %p220 = pneg %p62
        $region30: #{tpu_custom_call.1} parent=27 // pred_check_branch
          %222 = sbr.rel (%p220) target = $region32
        $region31: #{tpu_custom_call.1} parent=27 // pred_region
          %s223 = sand.u32 %s21, 1
          %s224 = scalar_lea.sflag [#allocation6], %s223
          %s225 = sand.u32 %s52, 1
          %s226 = smul.addr %s225, 64
          %s227 = scalar_lea.vmem [#allocation5], %s226
          %s228 = smul.u32 8, %s21
          %s230 = ssub.s32 1024, 1024
          %231 = vsyncadd %s224, %s230
          %s232 = smul.addr %s228, 128
          %s233 = scalar_lea.hbm %s1, %s232
          %s235 = sshll.u32 %s227, 4
          %s236 = int_to_ptr.vmem [resolvable:$true] %s235
          %238 = dma.hbm_to_vmem [thread:$0]  %s233, 1024, %s236, %s224
        $region32: #{tpu_custom_call.1} parent=27 // pred_fallthru
          _
        // Predicated region
        $region33: #{tpu_custom_call.1} parent=27 // pred_check
          %p239 = pneg %p109
        $region34: #{tpu_custom_call.1} parent=27 // pred_check_branch
          %241 = sbr.rel (%p239) target = $region36
        $region35: #{tpu_custom_call.1} parent=27 // pred_region
          %s242 = sand.u32 %s21, 1
          %s243 = scalar_lea.sflag [#allocation9], %s242
          %s244 = sand.u32 %s99, 1
          %s245 = smul.addr %s244, 256
          %s246 = scalar_lea.vmem [#allocation8], %s245
          %s247 = smul.u32 16, %s21
          %s249 = ssub.s32 4096, 4096
          %250 = vsyncadd %s243, %s249
          %s251 = smul.addr %s247, 2
          %s252 = smul.addr %s251, 128
          %s253 = scalar_lea.hbm %s3, %s252
          %s254 = sshll.u32 %s246, 4
          %s255 = int_to_ptr.vmem [resolvable:$true] %s254
          %260 = dma.hbm_to_vmem [thread:$0]  %s253, 4096, %s255, %s243, 256, 256, 16
        $region36: #{tpu_custom_call.1} parent=27 // pred_fallthru
          _
      $region28: #{tpu_custom_call.1} parent=5 // pred_fallthru
        _
      %p261 = scmp.le.s32.totalorder 1, %s21
      %p262 = scmp.lt.s32.totalorder %s21, 5
      %p263 = pnand %p261, %p262
      %p264 = pneg %p263
      // Predicated region
      $region37: #{tpu_custom_call.1} parent=5 // pred_check
        _
      $region38: #{tpu_custom_call.1} parent=5 // pred_check_branch
        %266 = sbr.rel (%p263) target = $region40
      $region39: #{tpu_custom_call.1} parent=5 // pred_region
        %s267 = ssub.s32 %s21, 1
        // Predicated region
        $region41: #{tpu_custom_call.1} parent=39 // pred_check
          %p268 = pneg %p42
        $region42: #{tpu_custom_call.1} parent=39 // pred_check_branch
          %270 = sbr.rel (%p268) target = $region44
        $region43: #{tpu_custom_call.1} parent=39 // pred_region
          %271 = dma.done [#allocation3], 1024
        $region44: #{tpu_custom_call.1} parent=39 // pred_fallthru
          _
        %s272 = sand.u32 %s26, 1
        %s273 = scalar_lea.sflag [#allocation6], %s272
        %s274 = sand.u32 %s55, 1
        %s275 = smul.addr %s274, 64
        %s276 = scalar_lea.vmem [#allocation5], %s275
        // Predicated region
        $region45: #{tpu_custom_call.1} parent=39 // pred_check
          %p277 = pneg %p68
        $region46: #{tpu_custom_call.1} parent=39 // pred_check_branch
          %279 = sbr.rel (%p277) target = $region48
        $region47: #{tpu_custom_call.1} parent=39 // pred_region
          %280 = dma.done %s273, 1024
        $region48: #{tpu_custom_call.1} parent=39 // pred_fallthru
          _
        // Predicated region
        $region49: #{tpu_custom_call.1} parent=39 // pred_check
          %p281 = pneg %p89
        $region50: #{tpu_custom_call.1} parent=39 // pred_check_branch
          %283 = sbr.rel (%p281) target = $region52
        $region51: #{tpu_custom_call.1} parent=39 // pred_region
          %284 = dma.done [#allocation6], 8192
        $region52: #{tpu_custom_call.1} parent=39 // pred_fallthru
          _
        %s285 = sand.u32 %s26, 1
        %s286 = scalar_lea.sflag [#allocation9], %s285
        %s287 = sand.u32 %s102, 1
        %s288 = smul.addr %s287, 256
        %s289 = scalar_lea.vmem [#allocation8], %s288
        // Predicated region
        $region53: #{tpu_custom_call.1} parent=39 // pred_check
          %p290 = pneg %p115
        $region54: #{tpu_custom_call.1} parent=39 // pred_check_branch
          %292 = sbr.rel (%p290) target = $region56
        $region55: #{tpu_custom_call.1} parent=39 // pred_region
          %293 = dma.done %s286, 4096
        $region56: #{tpu_custom_call.1} parent=39 // pred_fallthru
          _
        // Predicated region
        $region57: #{tpu_custom_call.1} parent=39 // pred_check
          %p294 = pneg %p136
        $region58: #{tpu_custom_call.1} parent=39 // pred_check_branch
          %296 = sbr.rel (%p294) target = $region60
        $region59: #{tpu_custom_call.1} parent=39 // pred_region
          %297 = dma.done [#allocation9], 4096
        $region60: #{tpu_custom_call.1} parent=39 // pred_fallthru
          _
        %p298 = pneg %p42
        %p299 = pneg %p39
        %s300 = sand.u32 %s26, 1
        %s301 = scalar_lea.sflag [#allocation6], %s300
        %s302 = sand.u32 %s55, 1
        %s303 = smul.addr %s302, 64
        %s304 = scalar_lea.vmem [#allocation5], %s303
        %p305 = pneg %p68
        %p306 = pneg %p65
        %p307 = pneg %p89
        %p308 = pneg %p86
        %s309 = sand.u32 %s26, 1
        %s310 = scalar_lea.sflag [#allocation9], %s309
        %s311 = sand.u32 %s102, 1
        %s312 = smul.addr %s311, 256
        %s313 = scalar_lea.vmem [#allocation8], %s312
        %p314 = pneg %p115
        %p315 = pneg %p112
        %p316 = pneg %p136
        %p317 = pneg %p133
        %p318 = pneg %p162
        %p319 = pneg %p159
        %s320 = sand.u32 %s149, 1
        %s321 = scalar_lea.sflag [#allocation4], %s320
        %s322 = sand.u32 %s149, 1
        %s323 = smul.addr %s322, 512
        %s324 = scalar_lea.vmem [#allocation11], %s323
        %s325 = smul.u32 8, %s26
        %s326 = smul.u32 16, %s26
        %s327 = smul.u32 8, %s26
        %v328 = vld [vmem:[#allocation2] sm:$0xff]
        %v329 = vld [vmem:[#allocation2 + $0x8] sm:$0xff]
        %v330 = vld [vmem:[#allocation2 + $0x10] sm:$0xff]
        %v331 = vld [vmem:[#allocation2 + $0x18] sm:$0xff]
        %v332 = vld [vmem:[#allocation2 + $0x20] sm:$0xff]
        %v333 = vld [vmem:[#allocation2 + $0x28] sm:$0xff]
        %v334 = vld [vmem:[#allocation2 + $0x30] sm:$0xff]
        %v335 = vld [vmem:[#allocation2 + $0x38] sm:$0xff]
        %v336 = vld [vmem:[%s276] sm:$0xff]
        %v337 = vld [vmem:[%s276 + $0x8] sm:$0xff]
        %v338 = vld [vmem:[%s276 + $0x10] sm:$0xff]
        %v339 = vld [vmem:[%s276 + $0x18] sm:$0xff]
        %v340 = vld [vmem:[%s276 + $0x20] sm:$0xff]
        %v341 = vld [vmem:[%s276 + $0x28] sm:$0xff]
        %v342 = vld [vmem:[%s276 + $0x30] sm:$0xff]
        %v343 = vld [vmem:[%s276 + $0x38] sm:$0xff]
        %v344 = vld [vmem:[#allocation7] sm:$0xff]
        %v345 = vld [vmem:[#allocation7 + $0x8] sm:$0xff]
        %v346 = vld [vmem:[#allocation7 + $0x10] sm:$0xff]
        %v347 = vld [vmem:[#allocation7 + $0x18] sm:$0xff]
        %v348 = vld [vmem:[#allocation7 + $0x20] sm:$0xff]
        %v349 = vld [vmem:[#allocation7 + $0x28] sm:$0xff]
        %v350 = vld [vmem:[#allocation7 + $0x30] sm:$0xff]
        %v351 = vld [vmem:[#allocation7 + $0x38] sm:$0xff]
        %v352 = vld [vmem:[#allocation7 + $0x40] sm:$0xff]
        %v353 = vld [vmem:[#allocation7 + $0x48] sm:$0xff]
        %v354 = vld [vmem:[#allocation7 + $0x50] sm:$0xff]
        %v355 = vld [vmem:[#allocation7 + $0x58] sm:$0xff]
        %v356 = vld [vmem:[#allocation7 + $0x60] sm:$0xff]
        %v357 = vld [vmem:[#allocation7 + $0x68] sm:$0xff]
        %v358 = vld [vmem:[#allocation7 + $0x70] sm:$0xff]
        %v359 = vld [vmem:[#allocation7 + $0x78] sm:$0xff]
        %v360 = vld [vmem:[#allocation7 + $0x80] sm:$0xff]
        %v361 = vld [vmem:[#allocation7 + $0x88] sm:$0xff]
        %v362 = vld [vmem:[#allocation7 + $0x90] sm:$0xff]
        %v363 = vld [vmem:[#allocation7 + $0x98] sm:$0xff]
        %v364 = vld [vmem:[#allocation7 + $0xa0] sm:$0xff]
        %v365 = vld [vmem:[#allocation7 + $0xa8] sm:$0xff]
        %v366 = vld [vmem:[#allocation7 + $0xb0] sm:$0xff]
        %v367 = vld [vmem:[#allocation7 + $0xb8] sm:$0xff]
        %v368 = vld [vmem:[#allocation7 + $0xc0] sm:$0xff]
        %v369 = vld [vmem:[#allocation7 + $0xc8] sm:$0xff]
        %v370 = vld [vmem:[#allocation7 + $0xd0] sm:$0xff]
        %v371 = vld [vmem:[#allocation7 + $0xd8] sm:$0xff]
        %v372 = vld [vmem:[#allocation7 + $0xe0] sm:$0xff]
        %v373 = vld [vmem:[#allocation7 + $0xe8] sm:$0xff]
        %v374 = vld [vmem:[#allocation7 + $0xf0] sm:$0xff]
        %v375 = vld [vmem:[#allocation7 + $0xf8] sm:$0xff]
        %v376 = vld [vmem:[#allocation7 + $0x100] sm:$0xff]
        %v377 = vld [vmem:[#allocation7 + $0x108] sm:$0xff]
        %v378 = vld [vmem:[#allocation7 + $0x110] sm:$0xff]
        %v379 = vld [vmem:[#allocation7 + $0x118] sm:$0xff]
        %v380 = vld [vmem:[#allocation7 + $0x120] sm:$0xff]
        %v381 = vld [vmem:[#allocation7 + $0x128] sm:$0xff]
        %v382 = vld [vmem:[#allocation7 + $0x130] sm:$0xff]
        %v383 = vld [vmem:[#allocation7 + $0x138] sm:$0xff]
        %v384 = vld [vmem:[#allocation7 + $0x140] sm:$0xff]
        %v385 = vld [vmem:[#allocation7 + $0x148] sm:$0xff]
        %v386 = vld [vmem:[#allocation7 + $0x150] sm:$0xff]
        %v387 = vld [vmem:[#allocation7 + $0x158] sm:$0xff]
        %v388 = vld [vmem:[#allocation7 + $0x160] sm:$0xff]
        %v389 = vld [vmem:[#allocation7 + $0x168] sm:$0xff]
        %v390 = vld [vmem:[#allocation7 + $0x170] sm:$0xff]
        %v391 = vld [vmem:[#allocation7 + $0x178] sm:$0xff]
        %v392 = vld [vmem:[#allocation7 + $0x180] sm:$0xff]
        %v393 = vld [vmem:[#allocation7 + $0x188] sm:$0xff]
        %v394 = vld [vmem:[#allocation7 + $0x190] sm:$0xff]
        %v395 = vld [vmem:[#allocation7 + $0x198] sm:$0xff]
        %v396 = vld [vmem:[#allocation7 + $0x1a0] sm:$0xff]
        %v397 = vld [vmem:[#allocation7 + $0x1a8] sm:$0xff]
        %v398 = vld [vmem:[#allocation7 + $0x1b0] sm:$0xff]
        %v399 = vld [vmem:[#allocation7 + $0x1b8] sm:$0xff]
        %v400 = vld [vmem:[#allocation7 + $0x1c0] sm:$0xff]
        %v401 = vld [vmem:[#allocation7 + $0x1c8] sm:$0xff]
        %v402 = vld [vmem:[#allocation7 + $0x1d0] sm:$0xff]
        %v403 = vld [vmem:[#allocation7 + $0x1d8] sm:$0xff]
        %v404 = vld [vmem:[#allocation7 + $0x1e0] sm:$0xff]
        %v405 = vld [vmem:[#allocation7 + $0x1e8] sm:$0xff]
        %v406 = vld [vmem:[#allocation7 + $0x1f0] sm:$0xff]
        %v407 = vld [vmem:[#allocation7 + $0x1f8] sm:$0xff]
        %v408 = vmul.f32 %v336, %v344
        %v409 = vmul.f32 %v337, %v345
        %v410 = vmul.f32 %v338, %v346
        %v411 = vmul.f32 %v339, %v347
        %v412 = vmul.f32 %v340, %v348
        %v413 = vmul.f32 %v341, %v349
        %v414 = vmul.f32 %v342, %v350
        %v415 = vmul.f32 %v343, %v351
        %v416 = vmul.f32 %v336, %v352
        %v417 = vmul.f32 %v337, %v353
        %v418 = vmul.f32 %v338, %v354
        %v419 = vmul.f32 %v339, %v355
        %v420 = vmul.f32 %v340, %v356
        %v421 = vmul.f32 %v341, %v357
        %v422 = vmul.f32 %v342, %v358
        %v423 = vmul.f32 %v343, %v359
        %v424 = vmul.f32 %v336, %v360
        %v425 = vmul.f32 %v337, %v361
        %v426 = vmul.f32 %v338, %v362
        %v427 = vmul.f32 %v339, %v363
        %v428 = vmul.f32 %v340, %v364
        %v429 = vmul.f32 %v341, %v365
        %v430 = vmul.f32 %v342, %v366
        %v431 = vmul.f32 %v343, %v367
        %v432 = vmul.f32 %v336, %v368
        %v433 = vmul.f32 %v337, %v369
        %v434 = vmul.f32 %v338, %v370
        %v435 = vmul.f32 %v339, %v371
        %v436 = vmul.f32 %v340, %v372
        %v437 = vmul.f32 %v341, %v373
        %v438 = vmul.f32 %v342, %v374
        %v439 = vmul.f32 %v343, %v375
        %v440 = vmul.f32 %v336, %v376
        %v441 = vmul.f32 %v337, %v377
        %v442 = vmul.f32 %v338, %v378
        %v443 = vmul.f32 %v339, %v379
        %v444 = vmul.f32 %v340, %v380
        %v445 = vmul.f32 %v341, %v381
        %v446 = vmul.f32 %v342, %v382
        %v447 = vmul.f32 %v343, %v383
        %v448 = vmul.f32 %v336, %v384
        %v449 = vmul.f32 %v337, %v385
        %v450 = vmul.f32 %v338, %v386
        %v451 = vmul.f32 %v339, %v387
        %v452 = vmul.f32 %v340, %v388
        %v453 = vmul.f32 %v341, %v389
        %v454 = vmul.f32 %v342, %v390
        %v455 = vmul.f32 %v343, %v391
        %v456 = vmul.f32 %v336, %v392
        %v457 = vmul.f32 %v337, %v393
        %v458 = vmul.f32 %v338, %v394
        %v459 = vmul.f32 %v339, %v395
        %v460 = vmul.f32 %v340, %v396
        %v461 = vmul.f32 %v341, %v397
        %v462 = vmul.f32 %v342, %v398
        %v463 = vmul.f32 %v343, %v399
        %v464 = vmul.f32 %v336, %v400
        %v465 = vmul.f32 %v337, %v401
        %v466 = vmul.f32 %v338, %v402
        %v467 = vmul.f32 %v339, %v403
        %v468 = vmul.f32 %v340, %v404
        %v469 = vmul.f32 %v341, %v405
        %v470 = vmul.f32 %v342, %v406
        %v471 = vmul.f32 %v343, %v407
        %vm472 = vcmask 523264
        %v474 = vsel %vm472, %v328, 0
        %v477 = vsel %vm472, %v329, 0
        %v480 = vsel %vm472, %v330, 0
        %v483 = vsel %vm472, %v331, 0
        %v486 = vsel %vm472, %v332, 0
        %v489 = vsel %vm472, %v333, 0
        %v492 = vsel %vm472, %v334, 0
        %v495 = vsel %vm472, %v335, 0
        %497 = vmatprep.subr.mxu0 %v409
        %498 = vmatpush1.msra.mxu0 %v408
        %499 = vmatprep.subr.mxu0 %v417
        %500 = vmatpush1.msra.mxu0 %v416
        %501 = vmatprep.subr.mxu0 %v425
        %502 = vmatpush1.msra.mxu0 %v424
        %503 = vmatprep.subr.mxu0 %v433
        %504 = vmatpush1.msra.mxu0 %v432
        %505 = vmatprep.subr.mxu0 %v441
        %506 = vmatpush1.msra.mxu0 %v440
        %507 = vmatprep.subr.mxu0 %v449
        %508 = vmatpush1.msra.mxu0 %v448
        %509 = vmatprep.subr.mxu0 %v457
        %510 = vmatpush1.msra.mxu0 %v456
        %511 = vmatprep.subr.mxu0 %v465
        %512 = vmatpush1.msra.mxu0 %v464
        %513 = vmatprep.subr.mxu0 0.0
        %514 = vmatpush1.msra.mxu0 0.0
        %515 = vmatprep.subr.mxu0 0.0
        %516 = vmatpush1.msra.mxu0 0.0
        %517 = vmatprep.subr.mxu0 0.0
        %518 = vmatpush1.msra.mxu0 0.0
        %519 = vmatprep.subr.mxu0 0.0
        %520 = vmatpush1.msra.mxu0 0.0
        %521 = vmatprep.subr.mxu0 0.0
        %522 = vmatpush1.msra.mxu0 0.0
        %523 = vmatprep.subr.mxu0 0.0
        %524 = vmatpush1.msra.mxu0 0.0
        %525 = vmatprep.subr.mxu0 0.0
        %526 = vmatpush1.msra.mxu0 0.0
        %527 = vmatprep.subr.mxu0 0.0
        %528 = vmatpush1.msra.mxu0 0.0
        %529 = vmatprep.subr.mxu0 0.0
        %530 = vmatpush1.msra.mxu0 0.0
        %531 = vmatprep.subr.mxu0 0.0
        %532 = vmatpush1.msra.mxu0 0.0
        %533 = vmatprep.subr.mxu0 0.0
        %534 = vmatpush1.msra.mxu0 0.0
        %535 = vmatprep.subr.mxu0 0.0
        %536 = vmatpush1.msra.mxu0 0.0
        %537 = vmatprep.subr.mxu0 0.0
        %538 = vmatpush1.msra.mxu0 0.0
        %539 = vmatprep.subr.mxu0 0.0
        %540 = vmatpush1.msra.mxu0 0.0
        %541 = vmatprep.subr.mxu0 0.0
        %542 = vmatpush1.msra.mxu0 0.0
        %543 = vmatprep.subr.mxu0 0.0
        %544 = vmatpush1.msra.mxu0 0.0
        %545 = vmatprep.subr.mxu0 0.0
        %546 = vmatpush1.msra.mxu0 0.0
        %547 = vmatprep.subr.mxu0 0.0
        %548 = vmatpush1.msra.mxu0 0.0
        %549 = vmatprep.subr.mxu0 0.0
        %550 = vmatpush1.msra.mxu0 0.0
        %551 = vmatprep.subr.mxu0 0.0
        %552 = vmatpush1.msra.mxu0 0.0
        %553 = vmatprep.subr.mxu0 0.0
        %554 = vmatpush1.msra.mxu0 0.0
        %555 = vmatprep.subr.mxu0 0.0
        %556 = vmatpush1.msra.mxu0 0.0
        %557 = vmatprep.subr.mxu0 0.0
        %558 = vmatpush1.msra.mxu0 0.0
        %559 = vmatprep.subr.mxu0 0.0
        %560 = vmatpush1.msra.mxu0 0.0
        %561 = vmatprep.mubr.f32.mxu0 0.0
        %562 = vmatmul.mubr.f32.gmra.mrb[0].mxu0 %v474
        %v563 = vpop.f32.mrb[0].mxu0
        %v564 = vadd.f32 0.0, %v563
        %v565 = vpop.f32.mrb[0].mxu0
        %v566 = vadd.f32 0.0, %v565
        %567 = vmatprep.mubr.f32.mxu0 0.0
        %568 = vmatmul.mubr.f32.gmra.mrb[0].mxu0 %v477
        %v569 = vpop.f32.mrb[0].mxu0
        %v570 = vadd.f32 0.0, %v569
        %v571 = vpop.f32.mrb[0].mxu0
        %v572 = vadd.f32 0.0, %v571
        %573 = vmatprep.mubr.f32.mxu0 0.0
        %574 = vmatmul.mubr.f32.gmra.mrb[0].mxu0 %v480
        %v575 = vpop.f32.mrb[0].mxu0
        %v576 = vadd.f32 0.0, %v575
        %v577 = vpop.f32.mrb[0].mxu0
        %v578 = vadd.f32 0.0, %v577
        %579 = vmatprep.mubr.f32.mxu0 0.0
        %580 = vmatmul.mubr.f32.gmra.mrb[0].mxu0 %v483
        %v581 = vpop.f32.mrb[0].mxu0
        %v582 = vadd.f32 0.0, %v581
        %v583 = vpop.f32.mrb[0].mxu0
        %v584 = vadd.f32 0.0, %v583
        %585 = vmatprep.mubr.f32.mxu0 0.0
        %586 = vmatmul.mubr.f32.gmra.mrb[0].mxu0 %v486
        %v587 = vpop.f32.mrb[0].mxu0
        %v588 = vadd.f32 0.0, %v587
        %v589 = vpop.f32.mrb[0].mxu0
        %v590 = vadd.f32 0.0, %v589
        %591 = vmatprep.mubr.f32.mxu0 0.0
        %592 = vmatmul.mubr.f32.gmra.mrb[0].mxu0 %v489
        %v593 = vpop.f32.mrb[0].mxu0
        %v594 = vadd.f32 0.0, %v593
        %v595 = vpop.f32.mrb[0].mxu0
        %v596 = vadd.f32 0.0, %v595
        %597 = vmatprep.mubr.f32.mxu0 0.0
        %598 = vmatmul.mubr.f32.gmra.mrb[0].mxu0 %v492
        %v599 = vpop.f32.mrb[0].mxu0
        %v600 = vadd.f32 0.0, %v599
        %v601 = vpop.f32.mrb[0].mxu0
        %v602 = vadd.f32 0.0, %v601
        %603 = vmatprep.mubr.f32.mxu0 0.0
        %604 = vmatmul.mubr.f32.gmra.mrb[0].mxu0 %v495
        %v605 = vpop.f32.mrb[0].mxu0
        %v606 = vadd.f32 0.0, %v605
        %v607 = vpop.f32.mrb[0].mxu0
        %v608 = vadd.f32 0.0, %v607
        %609 = vdwg.mxu0
        %610 = vmatprep.subr.mxu0 %v411
        %611 = vmatpush1.msra.mxu0 %v410
        %612 = vmatprep.subr.mxu0 %v419
        %613 = vmatpush1.msra.mxu0 %v418
        %614 = vmatprep.subr.mxu0 %v427
        %615 = vmatpush1.msra.mxu0 %v426
        %616 = vmatprep.subr.mxu0 %v435
        %617 = vmatpush1.msra.mxu0 %v434
        %618 = vmatprep.subr.mxu0 %v443
        %619 = vmatpush1.msra.mxu0 %v442
        %620 = vmatprep.subr.mxu0 %v451
        %621 = vmatpush1.msra.mxu0 %v450
        %622 = vmatprep.subr.mxu0 %v459
        %623 = vmatpush1.msra.mxu0 %v458
        %624 = vmatprep.subr.mxu0 %v467
        %625 = vmatpush1.msra.mxu0 %v466
        %626 = vmatprep.subr.mxu0 0.0
        %627 = vmatpush1.msra.mxu0 0.0
        %628 = vmatprep.subr.mxu0 0.0
        %629 = vmatpush1.msra.mxu0 0.0
        %630 = vmatprep.subr.mxu0 0.0
        %631 = vmatpush1.msra.mxu0 0.0
        %632 = vmatprep.subr.mxu0 0.0
        %633 = vmatpush1.msra.mxu0 0.0
        %634 = vmatprep.subr.mxu0 0.0
        %635 = vmatpush1.msra.mxu0 0.0
        %636 = vmatprep.subr.mxu0 0.0
        %637 = vmatpush1.msra.mxu0 0.0
        %638 = vmatprep.subr.mxu0 0.0
        %639 = vmatpush1.msra.mxu0 0.0
        %640 = vmatprep.subr.mxu0 0.0
        %641 = vmatpush1.msra.mxu0 0.0
        %642 = vmatprep.subr.mxu0 0.0
        %643 = vmatpush1.msra.mxu0 0.0
        %644 = vmatprep.subr.mxu0 0.0
        %645 = vmatpush1.msra.mxu0 0.0
        %646 = vmatprep.subr.mxu0 0.0
        %647 = vmatpush1.msra.mxu0 0.0
        %648 = vmatprep.subr.mxu0 0.0
        %649 = vmatpush1.msra.mxu0 0.0
        %650 = vmatprep.subr.mxu0 0.0
        %651 = vmatpush1.msra.mxu0 0.0
        %652 = vmatprep.subr.mxu0 0.0
        %653 = vmatpush1.msra.mxu0 0.0
        %654 = vmatprep.subr.mxu0 0.0
        %655 = vmatpush1.msra.mxu0 0.0
        %656 = vmatprep.subr.mxu0 0.0
        %657 = vmatpush1.msra.mxu0 0.0
        %658 = vmatprep.subr.mxu0 0.0
        %659 = vmatpush1.msra.mxu0 0.0
        %660 = vmatprep.subr.mxu0 0.0
        %661 = vmatpush1.msra.mxu0 0.0
        %662 = vmatprep.subr.mxu0 0.0
        %663 = vmatpush1.msra.mxu0 0.0
        %664 = vmatprep.subr.mxu0 0.0
        %665 = vmatpush1.msra.mxu0 0.0
        %666 = vmatprep.subr.mxu0 0.0
        %667 = vmatpush1.msra.mxu0 0.0
        %668 = vmatprep.subr.mxu0 0.0
        %669 = vmatpush1.msra.mxu0 0.0
        %670 = vmatprep.subr.mxu0 0.0
        %671 = vmatpush1.msra.mxu0 0.0
        %672 = vmatprep.subr.mxu0 0.0
        %673 = vmatpush1.msra.mxu0 0.0
        %674 = vmatprep.mubr.f32.mxu0 0.0
        %675 = vmatmul.mubr.f32.gmra.mrb[0].mxu0 %v474
        %v676 = vpop.f32.mrb[0].mxu0
        %v677 = vadd.f32 0.0, %v676
        %v678 = vpop.f32.mrb[0].mxu0
        %v679 = vadd.f32 0.0, %v678
        %680 = vmatprep.mubr.f32.mxu0 0.0
        %681 = vmatmul.mubr.f32.gmra.mrb[0].mxu0 %v477
        %v682 = vpop.f32.mrb[0].mxu0
        %v683 = vadd.f32 0.0, %v682
        %v684 = vpop.f32.mrb[0].mxu0
        %v685 = vadd.f32 0.0, %v684
        %686 = vmatprep.mubr.f32.mxu0 0.0
        %687 = vmatmul.mubr.f32.gmra.mrb[0].mxu0 %v480
        %v688 = vpop.f32.mrb[0].mxu0
        %v689 = vadd.f32 0.0, %v688
        %v690 = vpop.f32.mrb[0].mxu0
        %v691 = vadd.f32 0.0, %v690
        %692 = vmatprep.mubr.f32.mxu0 0.0
        %693 = vmatmul.mubr.f32.gmra.mrb[0].mxu0 %v483
        %v694 = vpop.f32.mrb[0].mxu0
        %v695 = vadd.f32 0.0, %v694
        %v696 = vpop.f32.mrb[0].mxu0
        %v697 = vadd.f32 0.0, %v696
        %698 = vmatprep.mubr.f32.mxu0 0.0
        %699 = vmatmul.mubr.f32.gmra.mrb[0].mxu0 %v486
        %v700 = vpop.f32.mrb[0].mxu0
        %v701 = vadd.f32 0.0, %v700
        %v702 = vpop.f32.mrb[0].mxu0
        %v703 = vadd.f32 0.0, %v702
        %704 = vmatprep.mubr.f32.mxu0 0.0
        %705 = vmatmul.mubr.f32.gmra.mrb[0].mxu0 %v489
        %v706 = vpop.f32.mrb[0].mxu0
        %v707 = vadd.f32 0.0, %v706
        %v708 = vpop.f32.mrb[0].mxu0
        %v709 = vadd.f32 0.0, %v708
        %710 = vmatprep.mubr.f32.mxu0 0.0
        %711 = vmatmul.mubr.f32.gmra.mrb[0].mxu0 %v492
        %v712 = vpop.f32.mrb[0].mxu0
        %v713 = vadd.f32 0.0, %v712
        %v714 = vpop.f32.mrb[0].mxu0
        %v715 = vadd.f32 0.0, %v714
        %716 = vmatprep.mubr.f32.mxu0 0.0
        %717 = vmatmul.mubr.f32.gmra.mrb[0].mxu0 %v495
        %v718 = vpop.f32.mrb[0].mxu0
        %v719 = vadd.f32 0.0, %v718
        %v720 = vpop.f32.mrb[0].mxu0
        %v721 = vadd.f32 0.0, %v720
        %722 = vdwg.mxu0
        %723 = vmatprep.subr.mxu0 %v413
        %724 = vmatpush1.msra.mxu0 %v412
        %725 = vmatprep.subr.mxu0 %v421
        %726 = vmatpush1.msra.mxu0 %v420
        %727 = vmatprep.subr.mxu0 %v429
        %728 = vmatpush1.msra.mxu0 %v428
        %729 = vmatprep.subr.mxu0 %v437
        %730 = vmatpush1.msra.mxu0 %v436
        %731 = vmatprep.subr.mxu0 %v445
        %732 = vmatpush1.msra.mxu0 %v444
        %733 = vmatprep.subr.mxu0 %v453
        %734 = vmatpush1.msra.mxu0 %v452
        %735 = vmatprep.subr.mxu0 %v461
        %736 = vmatpush1.msra.mxu0 %v460
        %737 = vmatprep.subr.mxu0 %v469
        %738 = vmatpush1.msra.mxu0 %v468
        %739 = vmatprep.subr.mxu0 0.0
        %740 = vmatpush1.msra.mxu0 0.0
        %741 = vmatprep.subr.mxu0 0.0
        %742 = vmatpush1.msra.mxu0 0.0
        %743 = vmatprep.subr.mxu0 0.0
        %744 = vmatpush1.msra.mxu0 0.0
        %745 = vmatprep.subr.mxu0 0.0
        %746 = vmatpush1.msra.mxu0 0.0
        %747 = vmatprep.subr.mxu0 0.0
        %748 = vmatpush1.msra.mxu0 0.0
        %749 = vmatprep.subr.mxu0 0.0
        %750 = vmatpush1.msra.mxu0 0.0
        %751 = vmatprep.subr.mxu0 0.0
        %752 = vmatpush1.msra.mxu0 0.0
        %753 = vmatprep.subr.mxu0 0.0
        %754 = vmatpush1.msra.mxu0 0.0
        %755 = vmatprep.subr.mxu0 0.0
        %756 = vmatpush1.msra.mxu0 0.0
        %757 = vmatprep.subr.mxu0 0.0
        %758 = vmatpush1.msra.mxu0 0.0
        %759 = vmatprep.subr.mxu0 0.0
        %760 = vmatpush1.msra.mxu0 0.0
        %761 = vmatprep.subr.mxu0 0.0
        %762 = vmatpush1.msra.mxu0 0.0
        %763 = vmatprep.subr.mxu0 0.0
        %764 = vmatpush1.msra.mxu0 0.0
        %765 = vmatprep.subr.mxu0 0.0
        %766 = vmatpush1.msra.mxu0 0.0
        %767 = vmatprep.subr.mxu0 0.0
        %768 = vmatpush1.msra.mxu0 0.0
        %769 = vmatprep.subr.mxu0 0.0
        %770 = vmatpush1.msra.mxu0 0.0
        %771 = vmatprep.subr.mxu0 0.0
        %772 = vmatpush1.msra.mxu0 0.0
        %773 = vmatprep.subr.mxu0 0.0
        %774 = vmatpush1.msra.mxu0 0.0
        %775 = vmatprep.subr.mxu0 0.0
        %776 = vmatpush1.msra.mxu0 0.0
        %777 = vmatprep.subr.mxu0 0.0
        %778 = vmatpush1.msra.mxu0 0.0
        %779 = vmatprep.subr.mxu0 0.0
        %780 = vmatpush1.msra.mxu0 0.0
        %781 = vmatprep.subr.mxu0 0.0
        %782 = vmatpush1.msra.mxu0 0.0
        %783 = vmatprep.subr.mxu0 0.0
        %784 = vmatpush1.msra.mxu0 0.0
        %785 = vmatprep.subr.mxu0 0.0
        %786 = vmatpush1.msra.mxu0 0.0
        %787 = vmatprep.mubr.f32.mxu0 0.0
        %788 = vmatmul.mubr.f32.gmra.mrb[0].mxu0 %v474
        %v789 = vpop.f32.mrb[0].mxu0
        %v790 = vadd.f32 0.0, %v789
        %v791 = vpop.f32.mrb[0].mxu0
        %v792 = vadd.f32 0.0, %v791
        %793 = vmatprep.mubr.f32.mxu0 0.0
        %794 = vmatmul.mubr.f32.gmra.mrb[0].mxu0 %v477
        %v795 = vpop.f32.mrb[0].mxu0
        %v796 = vadd.f32 0.0, %v795
        %v797 = vpop.f32.mrb[0].mxu0
        %v798 = vadd.f32 0.0, %v797
        %799 = vmatprep.mubr.f32.mxu0 0.0
        %800 = vmatmul.mubr.f32.gmra.mrb[0].mxu0 %v480
        %v801 = vpop.f32.mrb[0].mxu0
        %v802 = vadd.f32 0.0, %v801
        %v803 = vpop.f32.mrb[0].mxu0
        %v804 = vadd.f32 0.0, %v803
        %805 = vmatprep.mubr.f32.mxu0 0.0
        %806 = vmatmul.mubr.f32.gmra.mrb[0].mxu0 %v483
        %v807 = vpop.f32.mrb[0].mxu0
        %v808 = vadd.f32 0.0, %v807
        %v809 = vpop.f32.mrb[0].mxu0
        %v810 = vadd.f32 0.0, %v809
        %811 = vmatprep.mubr.f32.mxu0 0.0
        %812 = vmatmul.mubr.f32.gmra.mrb[0].mxu0 %v486
        %v813 = vpop.f32.mrb[0].mxu0
        %v814 = vadd.f32 0.0, %v813
        %v815 = vpop.f32.mrb[0].mxu0
        %v816 = vadd.f32 0.0, %v815
        %817 = vmatprep.mubr.f32.mxu0 0.0
        %818 = vmatmul.mubr.f32.gmra.mrb[0].mxu0 %v489
        %v819 = vpop.f32.mrb[0].mxu0
        %v820 = vadd.f32 0.0, %v819
        %v821 = vpop.f32.mrb[0].mxu0
        %v822 = vadd.f32 0.0, %v821
        %823 = vmatprep.mubr.f32.mxu0 0.0
        %824 = vmatmul.mubr.f32.gmra.mrb[0].mxu0 %v492
        %v825 = vpop.f32.mrb[0].mxu0
        %v826 = vadd.f32 0.0, %v825
        %v827 = vpop.f32.mrb[0].mxu0
        %v828 = vadd.f32 0.0, %v827
        %829 = vmatprep.mubr.f32.mxu0 0.0
        %830 = vmatmul.mubr.f32.gmra.mrb[0].mxu0 %v495
        %v831 = vpop.f32.mrb[0].mxu0
        %v832 = vadd.f32 0.0, %v831
        %v833 = vpop.f32.mrb[0].mxu0
        %v834 = vadd.f32 0.0, %v833
        %835 = vdwg.mxu0
        %836 = vmatprep.subr.mxu0 %v415
        %837 = vmatpush1.msra.mxu0 %v414
        %838 = vmatprep.subr.mxu0 %v423
        %839 = vmatpush1.msra.mxu0 %v422
        %840 = vmatprep.subr.mxu0 %v431
        %841 = vmatpush1.msra.mxu0 %v430
        %842 = vmatprep.subr.mxu0 %v439
        %843 = vmatpush1.msra.mxu0 %v438
        %844 = vmatprep.subr.mxu0 %v447
        %845 = vmatpush1.msra.mxu0 %v446
        %846 = vmatprep.subr.mxu0 %v455
        %847 = vmatpush1.msra.mxu0 %v454
        %848 = vmatprep.subr.mxu0 %v463
        %849 = vmatpush1.msra.mxu0 %v462
        %850 = vmatprep.subr.mxu0 %v471
        %851 = vmatpush1.msra.mxu0 %v470
        %852 = vmatprep.subr.mxu0 0.0
        %853 = vmatpush1.msra.mxu0 0.0
        %854 = vmatprep.subr.mxu0 0.0
        %855 = vmatpush1.msra.mxu0 0.0
        %856 = vmatprep.subr.mxu0 0.0
        %857 = vmatpush1.msra.mxu0 0.0
        %858 = vmatprep.subr.mxu0 0.0
        %859 = vmatpush1.msra.mxu0 0.0
        %860 = vmatprep.subr.mxu0 0.0
        %861 = vmatpush1.msra.mxu0 0.0
        %862 = vmatprep.subr.mxu0 0.0
        %863 = vmatpush1.msra.mxu0 0.0
        %864 = vmatprep.subr.mxu0 0.0
        %865 = vmatpush1.msra.mxu0 0.0
        %866 = vmatprep.subr.mxu0 0.0
        %867 = vmatpush1.msra.mxu0 0.0
        %868 = vmatprep.subr.mxu0 0.0
        %869 = vmatpush1.msra.mxu0 0.0
        %870 = vmatprep.subr.mxu0 0.0
        %871 = vmatpush1.msra.mxu0 0.0
        %872 = vmatprep.subr.mxu0 0.0
        %873 = vmatpush1.msra.mxu0 0.0
        %874 = vmatprep.subr.mxu0 0.0
        %875 = vmatpush1.msra.mxu0 0.0
        %876 = vmatprep.subr.mxu0 0.0
        %877 = vmatpush1.msra.mxu0 0.0
        %878 = vmatprep.subr.mxu0 0.0
        %879 = vmatpush1.msra.mxu0 0.0
        %880 = vmatprep.subr.mxu0 0.0
        %881 = vmatpush1.msra.mxu0 0.0
        %882 = vmatprep.subr.mxu0 0.0
        %883 = vmatpush1.msra.mxu0 0.0
        %884 = vmatprep.subr.mxu0 0.0
        %885 = vmatpush1.msra.mxu0 0.0
        %886 = vmatprep.subr.mxu0 0.0
        %887 = vmatpush1.msra.mxu0 0.0
        %888 = vmatprep.subr.mxu0 0.0
        %889 = vmatpush1.msra.mxu0 0.0
        %890 = vmatprep.subr.mxu0 0.0
        %891 = vmatpush1.msra.mxu0 0.0
        %892 = vmatprep.subr.mxu0 0.0
        %893 = vmatpush1.msra.mxu0 0.0
        %894 = vmatprep.subr.mxu0 0.0
        %895 = vmatpush1.msra.mxu0 0.0
        %896 = vmatprep.subr.mxu0 0.0
        %897 = vmatpush1.msra.mxu0 0.0
        %898 = vmatprep.subr.mxu0 0.0
        %899 = vmatpush1.msra.mxu0 0.0
        %900 = vmatprep.mubr.f32.mxu0 0.0
        %901 = vmatmul.mubr.f32.gmra.mrb[0].mxu0 %v474
        %v902 = vpop.f32.mrb[0].mxu0
        %v903 = vadd.f32 0.0, %v902
        %v904 = vpop.f32.mrb[0].mxu0
        %v905 = vadd.f32 0.0, %v904
        %906 = vmatprep.mubr.f32.mxu0 0.0
        %907 = vmatmul.mubr.f32.gmra.mrb[0].mxu0 %v477
        %v908 = vpop.f32.mrb[0].mxu0
        %v909 = vadd.f32 0.0, %v908
        %v910 = vpop.f32.mrb[0].mxu0
        %v911 = vadd.f32 0.0, %v910
        %912 = vmatprep.mubr.f32.mxu0 0.0
        %913 = vmatmul.mubr.f32.gmra.mrb[0].mxu0 %v480
        %v914 = vpop.f32.mrb[0].mxu0
        %v915 = vadd.f32 0.0, %v914
        %v916 = vpop.f32.mrb[0].mxu0
        %v917 = vadd.f32 0.0, %v916
        %918 = vmatprep.mubr.f32.mxu0 0.0
        %919 = vmatmul.mubr.f32.gmra.mrb[0].mxu0 %v483
        %v920 = vpop.f32.mrb[0].mxu0
        %v921 = vadd.f32 0.0, %v920
        %v922 = vpop.f32.mrb[0].mxu0
        %v923 = vadd.f32 0.0, %v922
        %924 = vmatprep.mubr.f32.mxu0 0.0
        %925 = vmatmul.mubr.f32.gmra.mrb[0].mxu0 %v486
        %v926 = vpop.f32.mrb[0].mxu0
        %v927 = vadd.f32 0.0, %v926
        %v928 = vpop.f32.mrb[0].mxu0
        %v929 = vadd.f32 0.0, %v928
        %930 = vmatprep.mubr.f32.mxu0 0.0
        %931 = vmatmul.mubr.f32.gmra.mrb[0].mxu0 %v489
        %v932 = vpop.f32.mrb[0].mxu0
        %v933 = vadd.f32 0.0, %v932
        %v934 = vpop.f32.mrb[0].mxu0
        %v935 = vadd.f32 0.0, %v934
        %936 = vmatprep.mubr.f32.mxu0 0.0
        %937 = vmatmul.mubr.f32.gmra.mrb[0].mxu0 %v492
        %v938 = vpop.f32.mrb[0].mxu0
        %v939 = vadd.f32 0.0, %v938
        %v940 = vpop.f32.mrb[0].mxu0
        %v941 = vadd.f32 0.0, %v940
        %942 = vmatprep.mubr.f32.mxu0 0.0
        %943 = vmatmul.mubr.f32.gmra.mrb[0].mxu0 %v495
        %v944 = vpop.f32.mrb[0].mxu0
        %v945 = vadd.f32 0.0, %v944
        %v946 = vpop.f32.mrb[0].mxu0
        %v947 = vadd.f32 0.0, %v946
        %948 = vdwg.mxu0
        %v949 = vld [vmem:[#allocation10] sm:$0xff]
        %v950 = vld [vmem:[#allocation10 + $0x8] sm:$0xff]
        %v951 = vld [vmem:[#allocation10 + $0x10] sm:$0xff]
        %v952 = vld [vmem:[#allocation10 + $0x18] sm:$0xff]
        %v953 = vld [vmem:[#allocation10 + $0x20] sm:$0xff]
        %v954 = vld [vmem:[#allocation10 + $0x28] sm:$0xff]
        %v955 = vld [vmem:[#allocation10 + $0x30] sm:$0xff]
        %v956 = vld [vmem:[#allocation10 + $0x38] sm:$0xff]
        %v957 = vld [vmem:[#allocation10 + $0x40] sm:$0xff]
        %v958 = vld [vmem:[#allocation10 + $0x48] sm:$0xff]
        %v959 = vld [vmem:[#allocation10 + $0x50] sm:$0xff]
        %v960 = vld [vmem:[#allocation10 + $0x58] sm:$0xff]
        %v961 = vld [vmem:[#allocation10 + $0x60] sm:$0xff]
        %v962 = vld [vmem:[#allocation10 + $0x68] sm:$0xff]
        %v963 = vld [vmem:[#allocation10 + $0x70] sm:$0xff]
        %v964 = vld [vmem:[#allocation10 + $0x78] sm:$0xff]
        %v965 = vld [vmem:[#allocation10 + $0x80] sm:$0xff]
        %v966 = vld [vmem:[#allocation10 + $0x88] sm:$0xff]
        %v967 = vld [vmem:[#allocation10 + $0x90] sm:$0xff]
        %v968 = vld [vmem:[#allocation10 + $0x98] sm:$0xff]
        %v969 = vld [vmem:[#allocation10 + $0xa0] sm:$0xff]
        %v970 = vld [vmem:[#allocation10 + $0xa8] sm:$0xff]
        %v971 = vld [vmem:[#allocation10 + $0xb0] sm:$0xff]
        %v972 = vld [vmem:[#allocation10 + $0xb8] sm:$0xff]
        %v973 = vld [vmem:[#allocation10 + $0xc0] sm:$0xff]
        %v974 = vld [vmem:[#allocation10 + $0xc8] sm:$0xff]
        %v975 = vld [vmem:[#allocation10 + $0xd0] sm:$0xff]
        %v976 = vld [vmem:[#allocation10 + $0xd8] sm:$0xff]
        %v977 = vld [vmem:[#allocation10 + $0xe0] sm:$0xff]
        %v978 = vld [vmem:[#allocation10 + $0xe8] sm:$0xff]
        %v979 = vld [vmem:[#allocation10 + $0xf0] sm:$0xff]
        %v980 = vld [vmem:[#allocation10 + $0xf8] sm:$0xff]
        %981 = vmax.xlane.f32.xlu0 %v564
        %v982 = vpop.xlane.xlu0 %981
        %983 = vmax.xlane.f32.xlu0 %v570
        %v984 = vpop.xlane.xlu0 %983
        %985 = vmax.xlane.f32.xlu0 %v576
        %v986 = vpop.xlane.xlu0 %985
        %987 = vmax.xlane.f32.xlu0 %v582
        %v988 = vpop.xlane.xlu0 %987
        %989 = vmax.xlane.f32.xlu0 %v588
        %v990 = vpop.xlane.xlu0 %989
        %991 = vmax.xlane.f32.xlu0 %v594
        %v992 = vpop.xlane.xlu0 %991
        %993 = vmax.xlane.f32.xlu0 %v600
        %v994 = vpop.xlane.xlu0 %993
        %995 = vmax.xlane.f32.xlu0 %v606
        %v996 = vpop.xlane.xlu0 %995
        %v997 = vsub.f32 %v564, %v982
        %v998 = vsub.f32 %v570, %v984
        %v999 = vsub.f32 %v576, %v986
        %v1000 = vsub.f32 %v582, %v988
        %v1001 = vsub.f32 %v588, %v990
        %v1002 = vsub.f32 %v594, %v992
        %v1003 = vsub.f32 %v600, %v994
        %v1004 = vsub.f32 %v606, %v996
        %v1005 = vmul.f32 %v997, 1.442695
        %v1006 = vpow.pop %v1005
        %v1007 = vmul.f32 %v998, 1.442695
        %v1008 = vpow.pop %v1007
        %v1009 = vmul.f32 %v999, 1.442695
        %v1010 = vpow.pop %v1009
        %v1011 = vmul.f32 %v1000, 1.442695
        %v1012 = vpow.pop %v1011
        %v1013 = vmul.f32 %v1001, 1.442695
        %v1014 = vpow.pop %v1013
        %v1015 = vmul.f32 %v1002, 1.442695
        %v1016 = vpow.pop %v1015
        %v1017 = vmul.f32 %v1003, 1.442695
        %v1018 = vpow.pop %v1017
        %v1019 = vmul.f32 %v1004, 1.442695
        %v1020 = vpow.pop %v1019
        %v1021 = vld [vmem:[%s289] sm:$0xff]
        %v1022 = vld [vmem:[%s289 + $0x8] sm:$0xff]
        %s1023 = scalar_lea.vmem %s289, 16 [#allocation8]
        %v1024 = vld [vmem:[%s1023] sm:$0xff]
        %v1025 = vld [vmem:[%s1023 + $0x8] sm:$0xff]
        %v1026 = vmul.f32 %v1021, %v949
        %v1027 = vmul.f32 %v1022, %v950
        %v1028 = vmul.f32 %v1021, %v951
        %v1029 = vmul.f32 %v1022, %v952
        %v1030 = vmul.f32 %v1021, %v953
        %v1031 = vmul.f32 %v1022, %v954
        %v1032 = vmul.f32 %v1021, %v955
        %v1033 = vmul.f32 %v1022, %v956
        %v1034 = vmul.f32 %v1021, %v957
        %v1035 = vmul.f32 %v1022, %v958
        %v1036 = vmul.f32 %v1021, %v959
        %v1037 = vmul.f32 %v1022, %v960
        %v1038 = vmul.f32 %v1021, %v961
        %v1039 = vmul.f32 %v1022, %v962
        %v1040 = vmul.f32 %v1021, %v963
        %v1041 = vmul.f32 %v1022, %v964
        %v1042 = vmul.f32 %v1024, %v965
        %v1043 = vmul.f32 %v1025, %v966
        %v1044 = vmul.f32 %v1024, %v967
        %v1045 = vmul.f32 %v1025, %v968
        %v1046 = vmul.f32 %v1024, %v969
        %v1047 = vmul.f32 %v1025, %v970
        %v1048 = vmul.f32 %v1024, %v971
        %v1049 = vmul.f32 %v1025, %v972
        %v1050 = vmul.f32 %v1024, %v973
        %v1051 = vmul.f32 %v1025, %v974
        %v1052 = vmul.f32 %v1024, %v975
        %v1053 = vmul.f32 %v1025, %v976
        %v1054 = vmul.f32 %v1024, %v977
        %v1055 = vmul.f32 %v1025, %v978
        %v1056 = vmul.f32 %v1024, %v979
        %v1057 = vmul.f32 %v1025, %v980
        %1058 = vmatprep.subr.mxu0 %v1027
        %1059 = vmatpush1.msra.mxu0 %v1026
        %1060 = vmatprep.subr.mxu0 %v1029
        %1061 = vmatpush1.msra.mxu0 %v1028
        %1062 = vmatprep.subr.mxu0 %v1031
        %1063 = vmatpush1.msra.mxu0 %v1030
        %1064 = vmatprep.subr.mxu0 %v1033
        %1065 = vmatpush1.msra.mxu0 %v1032
        %1066 = vmatprep.subr.mxu0 %v1035
        %1067 = vmatpush1.msra.mxu0 %v1034
        %1068 = vmatprep.subr.mxu0 %v1037
        %1069 = vmatpush1.msra.mxu0 %v1036
        %1070 = vmatprep.subr.mxu0 %v1039
        %1071 = vmatpush1.msra.mxu0 %v1038
        %1072 = vmatprep.subr.mxu0 %v1041
        %1073 = vmatpush1.msra.mxu0 %v1040
        %1074 = vmatprep.subr.mxu0 %v1043
        %1075 = vmatpush1.msra.mxu0 %v1042
        %1076 = vmatprep.subr.mxu0 %v1045
        %1077 = vmatpush1.msra.mxu0 %v1044
        %1078 = vmatprep.subr.mxu0 %v1047
        %1079 = vmatpush1.msra.mxu0 %v1046
        %1080 = vmatprep.subr.mxu0 %v1049
        %1081 = vmatpush1.msra.mxu0 %v1048
        %1082 = vmatprep.subr.mxu0 %v1051
        %1083 = vmatpush1.msra.mxu0 %v1050
        %1084 = vmatprep.subr.mxu0 %v1053
        %1085 = vmatpush1.msra.mxu0 %v1052
        %1086 = vmatprep.subr.mxu0 %v1055
        %1087 = vmatpush1.msra.mxu0 %v1054
        %1088 = vmatprep.subr.mxu0 %v1057
        %1089 = vmatpush1.msra.mxu0 %v1056
        %1090 = vmatprep.subr.mxu0 0.0
        %1091 = vmatpush1.msra.mxu0 0.0
        %1092 = vmatprep.subr.mxu0 0.0
        %1093 = vmatpush1.msra.mxu0 0.0
        %1094 = vmatprep.subr.mxu0 0.0
        %1095 = vmatpush1.msra.mxu0 0.0
        %1096 = vmatprep.subr.mxu0 0.0
        %1097 = vmatpush1.msra.mxu0 0.0
        %1098 = vmatprep.subr.mxu0 0.0
        %1099 = vmatpush1.msra.mxu0 0.0
        %1100 = vmatprep.subr.mxu0 0.0
        %1101 = vmatpush1.msra.mxu0 0.0
        %1102 = vmatprep.subr.mxu0 0.0
        %1103 = vmatpush1.msra.mxu0 0.0
        %1104 = vmatprep.subr.mxu0 0.0
        %1105 = vmatpush1.msra.mxu0 0.0
        %1106 = vmatprep.subr.mxu0 0.0
        %1107 = vmatpush1.msra.mxu0 0.0
        %1108 = vmatprep.subr.mxu0 0.0
        %1109 = vmatpush1.msra.mxu0 0.0
        %1110 = vmatprep.subr.mxu0 0.0
        %1111 = vmatpush1.msra.mxu0 0.0
        %1112 = vmatprep.subr.mxu0 0.0
        %1113 = vmatpush1.msra.mxu0 0.0
        %1114 = vmatprep.subr.mxu0 0.0
        %1115 = vmatpush1.msra.mxu0 0.0
        %1116 = vmatprep.subr.mxu0 0.0
        %1117 = vmatpush1.msra.mxu0 0.0
        %1118 = vmatprep.subr.mxu0 0.0
        %1119 = vmatpush1.msra.mxu0 0.0
        %1120 = vmatprep.subr.mxu0 0.0
        %1121 = vmatpush1.msra.mxu0 0.0
        %1122 = vmatprep.mubr.f32.mxu0 0.0
        %1123 = vmatmul.mubr.f32.gmra.mrb[0].mxu0 %v1006
        %v1124 = vpop.f32.mrb[0].mxu0
        %v1125 = vadd.f32 0.0, %v1124
        %v1126 = vpop.f32.mrb[0].mxu0
        %v1127 = vadd.f32 0.0, %v1126
        %1128 = vmatprep.mubr.f32.mxu0 0.0
        %1129 = vmatmul.mubr.f32.gmra.mrb[0].mxu0 %v1008
        %v1130 = vpop.f32.mrb[0].mxu0
        %v1131 = vadd.f32 0.0, %v1130
        %v1132 = vpop.f32.mrb[0].mxu0
        %v1133 = vadd.f32 0.0, %v1132
        %1134 = vmatprep.mubr.f32.mxu0 0.0
        %1135 = vmatmul.mubr.f32.gmra.mrb[0].mxu0 %v1010
        %v1136 = vpop.f32.mrb[0].mxu0
        %v1137 = vadd.f32 0.0, %v1136
        %v1138 = vpop.f32.mrb[0].mxu0
        %v1139 = vadd.f32 0.0, %v1138
        %1140 = vmatprep.mubr.f32.mxu0 0.0
        %1141 = vmatmul.mubr.f32.gmra.mrb[0].mxu0 %v1012
        %v1142 = vpop.f32.mrb[0].mxu0
        %v1143 = vadd.f32 0.0, %v1142
        %v1144 = vpop.f32.mrb[0].mxu0
        %v1145 = vadd.f32 0.0, %v1144
        %1146 = vmatprep.mubr.f32.mxu0 0.0
        %1147 = vmatmul.mubr.f32.gmra.mrb[0].mxu0 %v1014
        %v1148 = vpop.f32.mrb[0].mxu0
        %v1149 = vadd.f32 0.0, %v1148
        %v1150 = vpop.f32.mrb[0].mxu0
        %v1151 = vadd.f32 0.0, %v1150
        %1152 = vmatprep.mubr.f32.mxu0 0.0
        %1153 = vmatmul.mubr.f32.gmra.mrb[0].mxu0 %v1016
        %v1154 = vpop.f32.mrb[0].mxu0
        %v1155 = vadd.f32 0.0, %v1154
        %v1156 = vpop.f32.mrb[0].mxu0
        %v1157 = vadd.f32 0.0, %v1156
        %1158 = vmatprep.mubr.f32.mxu0 0.0
        %1159 = vmatmul.mubr.f32.gmra.mrb[0].mxu0 %v1018
        %v1160 = vpop.f32.mrb[0].mxu0
        %v1161 = vadd.f32 0.0, %v1160
        %v1162 = vpop.f32.mrb[0].mxu0
        %v1163 = vadd.f32 0.0, %v1162
        %1164 = vmatprep.mubr.f32.mxu0 0.0
        %1165 = vmatmul.mubr.f32.gmra.mrb[0].mxu0 %v1020
        %v1166 = vpop.f32.mrb[0].mxu0
        %v1167 = vadd.f32 0.0, %v1166
        %v1168 = vpop.f32.mrb[0].mxu0
        %v1169 = vadd.f32 0.0, %v1168
        %1170 = vdwg.mxu0
        %v1171 = vmax.f32 %v1127, 1e-30
        %v1172 = vmax.f32 %v1133, 1e-30
        %v1173 = vmax.f32 %v1139, 1e-30
        %v1174 = vmax.f32 %v1145, 1e-30
        %v1175 = vmax.f32 %v1151, 1e-30
        %v1176 = vmax.f32 %v1157, 1e-30
        %v1177 = vmax.f32 %v1163, 1e-30
        %v1178 = vmax.f32 %v1169, 1e-30
        %v1179 = vrcp.pop %v1171
        %v1180 = vmul.f32 %v1125, %v1179
        %v1181 = vrcp.pop %v1172
        %v1182 = vmul.f32 %v1131, %v1181
        %v1183 = vrcp.pop %v1173
        %v1184 = vmul.f32 %v1137, %v1183
        %v1185 = vrcp.pop %v1174
        %v1186 = vmul.f32 %v1143, %v1185
        %v1187 = vrcp.pop %v1175
        %v1188 = vmul.f32 %v1149, %v1187
        %v1189 = vrcp.pop %v1176
        %v1190 = vmul.f32 %v1155, %v1189
        %v1191 = vrcp.pop %v1177
        %v1192 = vmul.f32 %v1161, %v1191
        %v1193 = vrcp.pop %v1178
        %v1194 = vmul.f32 %v1167, %v1193
        %1195 = vst [vmem:[%s324] sm:$0xff] %v1180
        %1196 = vst [vmem:[%s324 + $0x40] sm:$0xff] %v1182
        %1197 = vst [vmem:[%s324 + $0x80] sm:$0xff] %v1184
        %1198 = vst [vmem:[%s324 + $0xc0] sm:$0xff] %v1186
        %1199 = vst [vmem:[%s324 + $0x100] sm:$0xff] %v1188
        %1200 = vst [vmem:[%s324 + $0x140] sm:$0xff] %v1190
        %1201 = vst [vmem:[%s324 + $0x180] sm:$0xff] %v1192
        %1202 = vst [vmem:[%s324 + $0x1c0] sm:$0xff] %v1194
        %1203 = vmax.xlane.f32.xlu0 %v566
        %v1204 = vpop.xlane.xlu0 %1203
        %1205 = vmax.xlane.f32.xlu0 %v572
        %v1206 = vpop.xlane.xlu0 %1205
        %1207 = vmax.xlane.f32.xlu0 %v578
        %v1208 = vpop.xlane.xlu0 %1207
        %1209 = vmax.xlane.f32.xlu0 %v584
        %v1210 = vpop.xlane.xlu0 %1209
        %1211 = vmax.xlane.f32.xlu0 %v590
        %v1212 = vpop.xlane.xlu0 %1211
        %1213 = vmax.xlane.f32.xlu0 %v596
        %v1214 = vpop.xlane.xlu0 %1213
        %1215 = vmax.xlane.f32.xlu0 %v602
        %v1216 = vpop.xlane.xlu0 %1215
        %1217 = vmax.xlane.f32.xlu0 %v608
        %v1218 = vpop.xlane.xlu0 %1217
        %v1219 = vsub.f32 %v566, %v1204
        %v1220 = vsub.f32 %v572, %v1206
        %v1221 = vsub.f32 %v578, %v1208
        %v1222 = vsub.f32 %v584, %v1210
        %v1223 = vsub.f32 %v590, %v1212
        %v1224 = vsub.f32 %v596, %v1214
        %v1225 = vsub.f32 %v602, %v1216
        %v1226 = vsub.f32 %v608, %v1218
        %v1227 = vmul.f32 %v1219, 1.442695
        %v1228 = vpow.pop %v1227
        %v1229 = vmul.f32 %v1220, 1.442695
        %v1230 = vpow.pop %v1229
        %v1231 = vmul.f32 %v1221, 1.442695
        %v1232 = vpow.pop %v1231
        %v1233 = vmul.f32 %v1222, 1.442695
        %v1234 = vpow.pop %v1233
        %v1235 = vmul.f32 %v1223, 1.442695
        %v1236 = vpow.pop %v1235
        %v1237 = vmul.f32 %v1224, 1.442695
        %v1238 = vpow.pop %v1237
        %v1239 = vmul.f32 %v1225, 1.442695
        %v1240 = vpow.pop %v1239
        %v1241 = vmul.f32 %v1226, 1.442695
        %v1242 = vpow.pop %v1241
        %s1243 = scalar_lea.vmem %s289, 32 [#allocation8]
        %v1244 = vld [vmem:[%s1243] sm:$0xff]
        %v1245 = vld [vmem:[%s1243 + $0x8] sm:$0xff]
        %s1246 = scalar_lea.vmem %s289, 48 [#allocation8]
        %v1247 = vld [vmem:[%s1246] sm:$0xff]
        %v1248 = vld [vmem:[%s1246 + $0x8] sm:$0xff]
        %v1249 = vmul.f32 %v1244, %v949
        %v1250 = vmul.f32 %v1245, %v950
        %v1251 = vmul.f32 %v1244, %v951
        %v1252 = vmul.f32 %v1245, %v952
        %v1253 = vmul.f32 %v1244, %v953
        %v1254 = vmul.f32 %v1245, %v954
        %v1255 = vmul.f32 %v1244, %v955
        %v1256 = vmul.f32 %v1245, %v956
        %v1257 = vmul.f32 %v1244, %v957
        %v1258 = vmul.f32 %v1245, %v958
        %v1259 = vmul.f32 %v1244, %v959
        %v1260 = vmul.f32 %v1245, %v960
        %v1261 = vmul.f32 %v1244, %v961
        %v1262 = vmul.f32 %v1245, %v962
        %v1263 = vmul.f32 %v1244, %v963
        %v1264 = vmul.f32 %v1245, %v964
        %v1265 = vmul.f32 %v1247, %v965
        %v1266 = vmul.f32 %v1248, %v966
        %v1267 = vmul.f32 %v1247, %v967
        %v1268 = vmul.f32 %v1248, %v968
        %v1269 = vmul.f32 %v1247, %v969
        %v1270 = vmul.f32 %v1248, %v970
        %v1271 = vmul.f32 %v1247, %v971
        %v1272 = vmul.f32 %v1248, %v972
        %v1273 = vmul.f32 %v1247, %v973
        %v1274 = vmul.f32 %v1248, %v974
        %v1275 = vmul.f32 %v1247, %v975
        %v1276 = vmul.f32 %v1248, %v976
        %v1277 = vmul.f32 %v1247, %v977
        %v1278 = vmul.f32 %v1248, %v978
        %v1279 = vmul.f32 %v1247, %v979
        %v1280 = vmul.f32 %v1248, %v980
        %1281 = vmatprep.subr.mxu0 %v1250
        %1282 = vmatpush1.msra.mxu0 %v1249
        %1283 = vmatprep.subr.mxu0 %v1252
        %1284 = vmatpush1.msra.mxu0 %v1251
        %1285 = vmatprep.subr.mxu0 %v1254
        %1286 = vmatpush1.msra.mxu0 %v1253
        %1287 = vmatprep.subr.mxu0 %v1256
        %1288 = vmatpush1.msra.mxu0 %v1255
        %1289 = vmatprep.subr.mxu0 %v1258
        %1290 = vmatpush1.msra.mxu0 %v1257
        %1291 = vmatprep.subr.mxu0 %v1260
        %1292 = vmatpush1.msra.mxu0 %v1259
        %1293 = vmatprep.subr.mxu0 %v1262
        %1294 = vmatpush1.msra.mxu0 %v1261
        %1295 = vmatprep.subr.mxu0 %v1264
        %1296 = vmatpush1.msra.mxu0 %v1263
        %1297 = vmatprep.subr.mxu0 %v1266
        %1298 = vmatpush1.msra.mxu0 %v1265
        %1299 = vmatprep.subr.mxu0 %v1268
        %1300 = vmatpush1.msra.mxu0 %v1267
        %1301 = vmatprep.subr.mxu0 %v1270
        %1302 = vmatpush1.msra.mxu0 %v1269
        %1303 = vmatprep.subr.mxu0 %v1272
        %1304 = vmatpush1.msra.mxu0 %v1271
        %1305 = vmatprep.subr.mxu0 %v1274
        %1306 = vmatpush1.msra.mxu0 %v1273
        %1307 = vmatprep.subr.mxu0 %v1276
        %1308 = vmatpush1.msra.mxu0 %v1275
        %1309 = vmatprep.subr.mxu0 %v1278
        %1310 = vmatpush1.msra.mxu0 %v1277
        %1311 = vmatprep.subr.mxu0 %v1280
        %1312 = vmatpush1.msra.mxu0 %v1279
        %1313 = vmatprep.subr.mxu0 0.0
        %1314 = vmatpush1.msra.mxu0 0.0
        %1315 = vmatprep.subr.mxu0 0.0
        %1316 = vmatpush1.msra.mxu0 0.0
        %1317 = vmatprep.subr.mxu0 0.0
        %1318 = vmatpush1.msra.mxu0 0.0
        %1319 = vmatprep.subr.mxu0 0.0
        %1320 = vmatpush1.msra.mxu0 0.0
        %1321 = vmatprep.subr.mxu0 0.0
        %1322 = vmatpush1.msra.mxu0 0.0
        %1323 = vmatprep.subr.mxu0 0.0
        %1324 = vmatpush1.msra.mxu0 0.0
        %1325 = vmatprep.subr.mxu0 0.0
        %1326 = vmatpush1.msra.mxu0 0.0
        %1327 = vmatprep.subr.mxu0 0.0
        %1328 = vmatpush1.msra.mxu0 0.0
        %1329 = vmatprep.subr.mxu0 0.0
        %1330 = vmatpush1.msra.mxu0 0.0
        %1331 = vmatprep.subr.mxu0 0.0
        %1332 = vmatpush1.msra.mxu0 0.0
        %1333 = vmatprep.subr.mxu0 0.0
        %1334 = vmatpush1.msra.mxu0 0.0
        %1335 = vmatprep.subr.mxu0 0.0
        %1336 = vmatpush1.msra.mxu0 0.0
        %1337 = vmatprep.subr.mxu0 0.0
        %1338 = vmatpush1.msra.mxu0 0.0
        %1339 = vmatprep.subr.mxu0 0.0
        %1340 = vmatpush1.msra.mxu0 0.0
        %1341 = vmatprep.subr.mxu0 0.0
        %1342 = vmatpush1.msra.mxu0 0.0
        %1343 = vmatprep.subr.mxu0 0.0
        %1344 = vmatpush1.msra.mxu0 0.0
        %1345 = vmatprep.mubr.f32.mxu0 0.0
        %1346 = vmatmul.mubr.f32.gmra.mrb[0].mxu0 %v1228
        %v1347 = vpop.f32.mrb[0].mxu0
        %v1348 = vadd.f32 0.0, %v1347
        %v1349 = vpop.f32.mrb[0].mxu0
        %v1350 = vadd.f32 0.0, %v1349
        %1351 = vmatprep.mubr.f32.mxu0 0.0
        %1352 = vmatmul.mubr.f32.gmra.mrb[0].mxu0 %v1230
        %v1353 = vpop.f32.mrb[0].mxu0
        %v1354 = vadd.f32 0.0, %v1353
        %v1355 = vpop.f32.mrb[0].mxu0
        %v1356 = vadd.f32 0.0, %v1355
        %1357 = vmatprep.mubr.f32.mxu0 0.0
        %1358 = vmatmul.mubr.f32.gmra.mrb[0].mxu0 %v1232
        %v1359 = vpop.f32.mrb[0].mxu0
        %v1360 = vadd.f32 0.0, %v1359
        %v1361 = vpop.f32.mrb[0].mxu0
        %v1362 = vadd.f32 0.0, %v1361
        %1363 = vmatprep.mubr.f32.mxu0 0.0
        %1364 = vmatmul.mubr.f32.gmra.mrb[0].mxu0 %v1234
        %v1365 = vpop.f32.mrb[0].mxu0
        %v1366 = vadd.f32 0.0, %v1365
        %v1367 = vpop.f32.mrb[0].mxu0
        %v1368 = vadd.f32 0.0, %v1367
        %1369 = vmatprep.mubr.f32.mxu0 0.0
        %1370 = vmatmul.mubr.f32.gmra.mrb[0].mxu0 %v1236
        %v1371 = vpop.f32.mrb[0].mxu0
        %v1372 = vadd.f32 0.0, %v1371
        %v1373 = vpop.f32.mrb[0].mxu0
        %v1374 = vadd.f32 0.0, %v1373
        %1375 = vmatprep.mubr.f32.mxu0 0.0
        %1376 = vmatmul.mubr.f32.gmra.mrb[0].mxu0 %v1238
        %v1377 = vpop.f32.mrb[0].mxu0
        %v1378 = vadd.f32 0.0, %v1377
        %v1379 = vpop.f32.mrb[0].mxu0
        %v1380 = vadd.f32 0.0, %v1379
        %1381 = vmatprep.mubr.f32.mxu0 0.0
        %1382 = vmatmul.mubr.f32.gmra.mrb[0].mxu0 %v1240
        %v1383 = vpop.f32.mrb[0].mxu0
        %v1384 = vadd.f32 0.0, %v1383
        %v1385 = vpop.f32.mrb[0].mxu0
        %v1386 = vadd.f32 0.0, %v1385
        %1387 = vmatprep.mubr.f32.mxu0 0.0
        %1388 = vmatmul.mubr.f32.gmra.mrb[0].mxu0 %v1242
        %v1389 = vpop.f32.mrb[0].mxu0
        %v1390 = vadd.f32 0.0, %v1389
        %v1391 = vpop.f32.mrb[0].mxu0
        %v1392 = vadd.f32 0.0, %v1391
        %1393 = vdwg.mxu0
        %v1394 = vmax.f32 %v1350, 1e-30
        %v1395 = vmax.f32 %v1356, 1e-30
        %v1396 = vmax.f32 %v1362, 1e-30
        %v1397 = vmax.f32 %v1368, 1e-30
        %v1398 = vmax.f32 %v1374, 1e-30
        %v1399 = vmax.f32 %v1380, 1e-30
        %v1400 = vmax.f32 %v1386, 1e-30
        %v1401 = vmax.f32 %v1392, 1e-30
        %v1402 = vrcp.pop %v1394
        %v1403 = vmul.f32 %v1348, %v1402
        %v1404 = vrcp.pop %v1395
        %v1405 = vmul.f32 %v1354, %v1404
        %v1406 = vrcp.pop %v1396
        %v1407 = vmul.f32 %v1360, %v1406
        %v1408 = vrcp.pop %v1397
        %v1409 = vmul.f32 %v1366, %v1408
        %v1410 = vrcp.pop %v1398
        %v1411 = vmul.f32 %v1372, %v1410
        %v1412 = vrcp.pop %v1399
        %v1413 = vmul.f32 %v1378, %v1412
        %v1414 = vrcp.pop %v1400
        %v1415 = vmul.f32 %v1384, %v1414
        %v1416 = vrcp.pop %v1401
        %v1417 = vmul.f32 %v1390, %v1416
        %1418 = vst [vmem:[%s324 + $0x8] sm:$0xff] %v1403
        %1419 = vst [vmem:[%s324 + $0x48] sm:$0xff] %v1405
        %1420 = vst [vmem:[%s324 + $0x88] sm:$0xff] %v1407
        %1421 = vst [vmem:[%s324 + $0xc8] sm:$0xff] %v1409
        %1422 = vst [vmem:[%s324 + $0x108] sm:$0xff] %v1411
        %1423 = vst [vmem:[%s324 + $0x148] sm:$0xff] %v1413
        %1424 = vst [vmem:[%s324 + $0x188] sm:$0xff] %v1415
        %1425 = vst [vmem:[%s324 + $0x1c8] sm:$0xff] %v1417
        %1426 = vmax.xlane.f32.xlu0 %v677
        %v1427 = vpop.xlane.xlu0 %1426
        %1428 = vmax.xlane.f32.xlu0 %v683
        %v1429 = vpop.xlane.xlu0 %1428
        %1430 = vmax.xlane.f32.xlu0 %v689
        %v1431 = vpop.xlane.xlu0 %1430
        %1432 = vmax.xlane.f32.xlu0 %v695
        %v1433 = vpop.xlane.xlu0 %1432
        %1434 = vmax.xlane.f32.xlu0 %v701
        %v1435 = vpop.xlane.xlu0 %1434
        %1436 = vmax.xlane.f32.xlu0 %v707
        %v1437 = vpop.xlane.xlu0 %1436
        %1438 = vmax.xlane.f32.xlu0 %v713
        %v1439 = vpop.xlane.xlu0 %1438
        %1440 = vmax.xlane.f32.xlu0 %v719
        %v1441 = vpop.xlane.xlu0 %1440
        %v1442 = vsub.f32 %v677, %v1427
        %v1443 = vsub.f32 %v683, %v1429
        %v1444 = vsub.f32 %v689, %v1431
        %v1445 = vsub.f32 %v695, %v1433
        %v1446 = vsub.f32 %v701, %v1435
        %v1447 = vsub.f32 %v707, %v1437
        %v1448 = vsub.f32 %v713, %v1439
        %v1449 = vsub.f32 %v719, %v1441
        %v1450 = vmul.f32 %v1442, 1.442695
        %v1451 = vpow.pop %v1450
        %v1452 = vmul.f32 %v1443, 1.442695
        %v1453 = vpow.pop %v1452
        %v1454 = vmul.f32 %v1444, 1.442695
        %v1455 = vpow.pop %v1454
        %v1456 = vmul.f32 %v1445, 1.442695
        %v1457 = vpow.pop %v1456
        %v1458 = vmul.f32 %v1446, 1.442695
        %v1459 = vpow.pop %v1458
        %v1460 = vmul.f32 %v1447, 1.442695
        %v1461 = vpow.pop %v1460
        %v1462 = vmul.f32 %v1448, 1.442695
        %v1463 = vpow.pop %v1462
        %v1464 = vmul.f32 %v1449, 1.442695
        %v1465 = vpow.pop %v1464
        %s1466 = scalar_lea.vmem %s289, 64 [#allocation8]
        %v1467 = vld [vmem:[%s1466] sm:$0xff]
        %v1468 = vld [vmem:[%s1466 + $0x8] sm:$0xff]
        %s1469 = scalar_lea.vmem %s289, 80 [#allocation8]
        %v1470 = vld [vmem:[%s1469] sm:$0xff]
        %v1471 = vld [vmem:[%s1469 + $0x8] sm:$0xff]
        %v1472 = vmul.f32 %v1467, %v949
        %v1473 = vmul.f32 %v1468, %v950
        %v1474 = vmul.f32 %v1467, %v951
        %v1475 = vmul.f32 %v1468, %v952
        %v1476 = vmul.f32 %v1467, %v953
        %v1477 = vmul.f32 %v1468, %v954
        %v1478 = vmul.f32 %v1467, %v955
        %v1479 = vmul.f32 %v1468, %v956
        %v1480 = vmul.f32 %v1467, %v957
        %v1481 = vmul.f32 %v1468, %v958
        %v1482 = vmul.f32 %v1467, %v959
        %v1483 = vmul.f32 %v1468, %v960
        %v1484 = vmul.f32 %v1467, %v961
        %v1485 = vmul.f32 %v1468, %v962
        %v1486 = vmul.f32 %v1467, %v963
        %v1487 = vmul.f32 %v1468, %v964
        %v1488 = vmul.f32 %v1470, %v965
        %v1489 = vmul.f32 %v1471, %v966
        %v1490 = vmul.f32 %v1470, %v967
        %v1491 = vmul.f32 %v1471, %v968
        %v1492 = vmul.f32 %v1470, %v969
        %v1493 = vmul.f32 %v1471, %v970
        %v1494 = vmul.f32 %v1470, %v971
        %v1495 = vmul.f32 %v1471, %v972
        %v1496 = vmul.f32 %v1470, %v973
        %v1497 = vmul.f32 %v1471, %v974
        %v1498 = vmul.f32 %v1470, %v975
        %v1499 = vmul.f32 %v1471, %v976
        %v1500 = vmul.f32 %v1470, %v977
        %v1501 = vmul.f32 %v1471, %v978
        %v1502 = vmul.f32 %v1470, %v979
        %v1503 = vmul.f32 %v1471, %v980
        %1504 = vmatprep.subr.mxu0 %v1473
        %1505 = vmatpush1.msra.mxu0 %v1472
        %1506 = vmatprep.subr.mxu0 %v1475
        %1507 = vmatpush1.msra.mxu0 %v1474
        %1508 = vmatprep.subr.mxu0 %v1477
        %1509 = vmatpush1.msra.mxu0 %v1476
        %1510 = vmatprep.subr.mxu0 %v1479
        %1511 = vmatpush1.msra.mxu0 %v1478
        %1512 = vmatprep.subr.mxu0 %v1481
        %1513 = vmatpush1.msra.mxu0 %v1480
        %1514 = vmatprep.subr.mxu0 %v1483
        %1515 = vmatpush1.msra.mxu0 %v1482
        %1516 = vmatprep.subr.mxu0 %v1485
        %1517 = vmatpush1.msra.mxu0 %v1484
        %1518 = vmatprep.subr.mxu0 %v1487
        %1519 = vmatpush1.msra.mxu0 %v1486
        %1520 = vmatprep.subr.mxu0 %v1489
        %1521 = vmatpush1.msra.mxu0 %v1488
        %1522 = vmatprep.subr.mxu0 %v1491
        %1523 = vmatpush1.msra.mxu0 %v1490
        %1524 = vmatprep.subr.mxu0 %v1493
        %1525 = vmatpush1.msra.mxu0 %v1492
        %1526 = vmatprep.subr.mxu0 %v1495
        %1527 = vmatpush1.msra.mxu0 %v1494
        %1528 = vmatprep.subr.mxu0 %v1497
        %1529 = vmatpush1.msra.mxu0 %v1496
        %1530 = vmatprep.subr.mxu0 %v1499
        %1531 = vmatpush1.msra.mxu0 %v1498
        %1532 = vmatprep.subr.mxu0 %v1501
        %1533 = vmatpush1.msra.mxu0 %v1500
        %1534 = vmatprep.subr.mxu0 %v1503
        %1535 = vmatpush1.msra.mxu0 %v1502
        %1536 = vmatprep.subr.mxu0 0.0
        %1537 = vmatpush1.msra.mxu0 0.0
        %1538 = vmatprep.subr.mxu0 0.0
        %1539 = vmatpush1.msra.mxu0 0.0
        %1540 = vmatprep.subr.mxu0 0.0
        %1541 = vmatpush1.msra.mxu0 0.0
        %1542 = vmatprep.subr.mxu0 0.0
        %1543 = vmatpush1.msra.mxu0 0.0
        %1544 = vmatprep.subr.mxu0 0.0
        %1545 = vmatpush1.msra.mxu0 0.0
        %1546 = vmatprep.subr.mxu0 0.0
        %1547 = vmatpush1.msra.mxu0 0.0
        %1548 = vmatprep.subr.mxu0 0.0
        %1549 = vmatpush1.msra.mxu0 0.0
        %1550 = vmatprep.subr.mxu0 0.0
        %1551 = vmatpush1.msra.mxu0 0.0
        %1552 = vmatprep.subr.mxu0 0.0
        %1553 = vmatpush1.msra.mxu0 0.0
        %1554 = vmatprep.subr.mxu0 0.0
        %1555 = vmatpush1.msra.mxu0 0.0
        %1556 = vmatprep.subr.mxu0 0.0
        %1557 = vmatpush1.msra.mxu0 0.0
        %1558 = vmatprep.subr.mxu0 0.0
        %1559 = vmatpush1.msra.mxu0 0.0
        %1560 = vmatprep.subr.mxu0 0.0
        %1561 = vmatpush1.msra.mxu0 0.0
        %1562 = vmatprep.subr.mxu0 0.0
        %1563 = vmatpush1.msra.mxu0 0.0
        %1564 = vmatprep.subr.mxu0 0.0
        %1565 = vmatpush1.msra.mxu0 0.0
        %1566 = vmatprep.subr.mxu0 0.0
        %1567 = vmatpush1.msra.mxu0 0.0
        %1568 = vmatprep.mubr.f32.mxu0 0.0
        %1569 = vmatmul.mubr.f32.gmra.mrb[0].mxu0 %v1451
        %v1570 = vpop.f32.mrb[0].mxu0
        %v1571 = vadd.f32 0.0, %v1570
        %v1572 = vpop.f32.mrb[0].mxu0
        %v1573 = vadd.f32 0.0, %v1572
        %1574 = vmatprep.mubr.f32.mxu0 0.0
        %1575 = vmatmul.mubr.f32.gmra.mrb[0].mxu0 %v1453
        %v1576 = vpop.f32.mrb[0].mxu0
        %v1577 = vadd.f32 0.0, %v1576
        %v1578 = vpop.f32.mrb[0].mxu0
        %v1579 = vadd.f32 0.0, %v1578
        %1580 = vmatprep.mubr.f32.mxu0 0.0
        %1581 = vmatmul.mubr.f32.gmra.mrb[0].mxu0 %v1455
        %v1582 = vpop.f32.mrb[0].mxu0
        %v1583 = vadd.f32 0.0, %v1582
        %v1584 = vpop.f32.mrb[0].mxu0
        %v1585 = vadd.f32 0.0, %v1584
        %1586 = vmatprep.mubr.f32.mxu0 0.0
        %1587 = vmatmul.mubr.f32.gmra.mrb[0].mxu0 %v1457
        %v1588 = vpop.f32.mrb[0].mxu0
        %v1589 = vadd.f32 0.0, %v1588
        %v1590 = vpop.f32.mrb[0].mxu0
        %v1591 = vadd.f32 0.0, %v1590
        %1592 = vmatprep.mubr.f32.mxu0 0.0
        %1593 = vmatmul.mubr.f32.gmra.mrb[0].mxu0 %v1459
        %v1594 = vpop.f32.mrb[0].mxu0
        %v1595 = vadd.f32 0.0, %v1594
        %v1596 = vpop.f32.mrb[0].mxu0
        %v1597 = vadd.f32 0.0, %v1596
        %1598 = vmatprep.mubr.f32.mxu0 0.0
        %1599 = vmatmul.mubr.f32.gmra.mrb[0].mxu0 %v1461
        %v1600 = vpop.f32.mrb[0].mxu0
        %v1601 = vadd.f32 0.0, %v1600
        %v1602 = vpop.f32.mrb[0].mxu0
        %v1603 = vadd.f32 0.0, %v1602
        %1604 = vmatprep.mubr.f32.mxu0 0.0
        %1605 = vmatmul.mubr.f32.gmra.mrb[0].mxu0 %v1463
        %v1606 = vpop.f32.mrb[0].mxu0
        %v1607 = vadd.f32 0.0, %v1606
        %v1608 = vpop.f32.mrb[0].mxu0
        %v1609 = vadd.f32 0.0, %v1608
        %1610 = vmatprep.mubr.f32.mxu0 0.0
        %1611 = vmatmul.mubr.f32.gmra.mrb[0].mxu0 %v1465
        %v1612 = vpop.f32.mrb[0].mxu0
        %v1613 = vadd.f32 0.0, %v1612
        %v1614 = vpop.f32.mrb[0].mxu0
        %v1615 = vadd.f32 0.0, %v1614
        %1616 = vdwg.mxu0
        %v1617 = vmax.f32 %v1573, 1e-30
        %v1618 = vmax.f32 %v1579, 1e-30
        %v1619 = vmax.f32 %v1585, 1e-30
        %v1620 = vmax.f32 %v1591, 1e-30
        %v1621 = vmax.f32 %v1597, 1e-30
        %v1622 = vmax.f32 %v1603, 1e-30
        %v1623 = vmax.f32 %v1609, 1e-30
        %v1624 = vmax.f32 %v1615, 1e-30
        %v1625 = vrcp.pop %v1617
        %v1626 = vmul.f32 %v1571, %v1625
        %v1627 = vrcp.pop %v1618
        %v1628 = vmul.f32 %v1577, %v1627
        %v1629 = vrcp.pop %v1619
        %v1630 = vmul.f32 %v1583, %v1629
        %v1631 = vrcp.pop %v1620
        %v1632 = vmul.f32 %v1589, %v1631
        %v1633 = vrcp.pop %v1621
        %v1634 = vmul.f32 %v1595, %v1633
        %v1635 = vrcp.pop %v1622
        %v1636 = vmul.f32 %v1601, %v1635
        %v1637 = vrcp.pop %v1623
        %v1638 = vmul.f32 %v1607, %v1637
        %v1639 = vrcp.pop %v1624
        %v1640 = vmul.f32 %v1613, %v1639
        %1641 = vst [vmem:[%s324 + $0x10] sm:$0xff] %v1626
        %1642 = vst [vmem:[%s324 + $0x50] sm:$0xff] %v1628
        %1643 = vst [vmem:[%s324 + $0x90] sm:$0xff] %v1630
        %1644 = vst [vmem:[%s324 + $0xd0] sm:$0xff] %v1632
        %1645 = vst [vmem:[%s324 + $0x110] sm:$0xff] %v1634
        %1646 = vst [vmem:[%s324 + $0x150] sm:$0xff] %v1636
        %1647 = vst [vmem:[%s324 + $0x190] sm:$0xff] %v1638
        %1648 = vst [vmem:[%s324 + $0x1d0] sm:$0xff] %v1640
        %1649 = vmax.xlane.f32.xlu0 %v679
        %v1650 = vpop.xlane.xlu0 %1649
        %1651 = vmax.xlane.f32.xlu0 %v685
        %v1652 = vpop.xlane.xlu0 %1651
        %1653 = vmax.xlane.f32.xlu0 %v691
        %v1654 = vpop.xlane.xlu0 %1653
        %1655 = vmax.xlane.f32.xlu0 %v697
        %v1656 = vpop.xlane.xlu0 %1655
        %1657 = vmax.xlane.f32.xlu0 %v703
        %v1658 = vpop.xlane.xlu0 %1657
        %1659 = vmax.xlane.f32.xlu0 %v709
        %v1660 = vpop.xlane.xlu0 %1659
        %1661 = vmax.xlane.f32.xlu0 %v715
        %v1662 = vpop.xlane.xlu0 %1661
        %1663 = vmax.xlane.f32.xlu0 %v721
        %v1664 = vpop.xlane.xlu0 %1663
        %v1665 = vsub.f32 %v679, %v1650
        %v1666 = vsub.f32 %v685, %v1652
        %v1667 = vsub.f32 %v691, %v1654
        %v1668 = vsub.f32 %v697, %v1656
        %v1669 = vsub.f32 %v703, %v1658
        %v1670 = vsub.f32 %v709, %v1660
        %v1671 = vsub.f32 %v715, %v1662
        %v1672 = vsub.f32 %v721, %v1664
        %v1673 = vmul.f32 %v1665, 1.442695
        %v1674 = vpow.pop %v1673
        %v1675 = vmul.f32 %v1666, 1.442695
        %v1676 = vpow.pop %v1675
        %v1677 = vmul.f32 %v1667, 1.442695
        %v1678 = vpow.pop %v1677
        %v1679 = vmul.f32 %v1668, 1.442695
        %v1680 = vpow.pop %v1679
        %v1681 = vmul.f32 %v1669, 1.442695
        %v1682 = vpow.pop %v1681
        %v1683 = vmul.f32 %v1670, 1.442695
        %v1684 = vpow.pop %v1683
        %v1685 = vmul.f32 %v1671, 1.442695
        %v1686 = vpow.pop %v1685
        %v1687 = vmul.f32 %v1672, 1.442695
        %v1688 = vpow.pop %v1687
        %s1689 = scalar_lea.vmem %s289, 96 [#allocation8]
        %v1690 = vld [vmem:[%s1689] sm:$0xff]
        %v1691 = vld [vmem:[%s1689 + $0x8] sm:$0xff]
        %s1692 = scalar_lea.vmem %s289, 112 [#allocation8]
        %v1693 = vld [vmem:[%s1692] sm:$0xff]
        %v1694 = vld [vmem:[%s1692 + $0x8] sm:$0xff]
        %v1695 = vmul.f32 %v1690, %v949
        %v1696 = vmul.f32 %v1691, %v950
        %v1697 = vmul.f32 %v1690, %v951
        %v1698 = vmul.f32 %v1691, %v952
        %v1699 = vmul.f32 %v1690, %v953
        %v1700 = vmul.f32 %v1691, %v954
        %v1701 = vmul.f32 %v1690, %v955
        %v1702 = vmul.f32 %v1691, %v956
        %v1703 = vmul.f32 %v1690, %v957
        %v1704 = vmul.f32 %v1691, %v958
        %v1705 = vmul.f32 %v1690, %v959
        %v1706 = vmul.f32 %v1691, %v960
        %v1707 = vmul.f32 %v1690, %v961
        %v1708 = vmul.f32 %v1691, %v962
        %v1709 = vmul.f32 %v1690, %v963
        %v1710 = vmul.f32 %v1691, %v964
        %v1711 = vmul.f32 %v1693, %v965
        %v1712 = vmul.f32 %v1694, %v966
        %v1713 = vmul.f32 %v1693, %v967
        %v1714 = vmul.f32 %v1694, %v968
        %v1715 = vmul.f32 %v1693, %v969
        %v1716 = vmul.f32 %v1694, %v970
        %v1717 = vmul.f32 %v1693, %v971
        %v1718 = vmul.f32 %v1694, %v972
        %v1719 = vmul.f32 %v1693, %v973
        %v1720 = vmul.f32 %v1694, %v974
        %v1721 = vmul.f32 %v1693, %v975
        %v1722 = vmul.f32 %v1694, %v976
        %v1723 = vmul.f32 %v1693, %v977
        %v1724 = vmul.f32 %v1694, %v978
        %v1725 = vmul.f32 %v1693, %v979
        %v1726 = vmul.f32 %v1694, %v980
        %1727 = vmatprep.subr.mxu0 %v1696
        %1728 = vmatpush1.msra.mxu0 %v1695
        %1729 = vmatprep.subr.mxu0 %v1698
        %1730 = vmatpush1.msra.mxu0 %v1697
        %1731 = vmatprep.subr.mxu0 %v1700
        %1732 = vmatpush1.msra.mxu0 %v1699
        %1733 = vmatprep.subr.mxu0 %v1702
        %1734 = vmatpush1.msra.mxu0 %v1701
        %1735 = vmatprep.subr.mxu0 %v1704
        %1736 = vmatpush1.msra.mxu0 %v1703
        %1737 = vmatprep.subr.mxu0 %v1706
        %1738 = vmatpush1.msra.mxu0 %v1705
        %1739 = vmatprep.subr.mxu0 %v1708
        %1740 = vmatpush1.msra.mxu0 %v1707
        %1741 = vmatprep.subr.mxu0 %v1710
        %1742 = vmatpush1.msra.mxu0 %v1709
        %1743 = vmatprep.subr.mxu0 %v1712
        %1744 = vmatpush1.msra.mxu0 %v1711
        %1745 = vmatprep.subr.mxu0 %v1714
        %1746 = vmatpush1.msra.mxu0 %v1713
        %1747 = vmatprep.subr.mxu0 %v1716
        %1748 = vmatpush1.msra.mxu0 %v1715
        %1749 = vmatprep.subr.mxu0 %v1718
        %1750 = vmatpush1.msra.mxu0 %v1717
        %1751 = vmatprep.subr.mxu0 %v1720
        %1752 = vmatpush1.msra.mxu0 %v1719
        %1753 = vmatprep.subr.mxu0 %v1722
        %1754 = vmatpush1.msra.mxu0 %v1721
        %1755 = vmatprep.subr.mxu0 %v1724
        %1756 = vmatpush1.msra.mxu0 %v1723
        %1757 = vmatprep.subr.mxu0 %v1726
        %1758 = vmatpush1.msra.mxu0 %v1725
        %1759 = vmatprep.subr.mxu0 0.0
        %1760 = vmatpush1.msra.mxu0 0.0
        %1761 = vmatprep.subr.mxu0 0.0
        %1762 = vmatpush1.msra.mxu0 0.0
        %1763 = vmatprep.subr.mxu0 0.0
        %1764 = vmatpush1.msra.mxu0 0.0
        %1765 = vmatprep.subr.mxu0 0.0
        %1766 = vmatpush1.msra.mxu0 0.0
        %1767 = vmatprep.subr.mxu0 0.0
        %1768 = vmatpush1.msra.mxu0 0.0
        %1769 = vmatprep.subr.mxu0 0.0
        %1770 = vmatpush1.msra.mxu0 0.0
        %1771 = vmatprep.subr.mxu0 0.0
        %1772 = vmatpush1.msra.mxu0 0.0
        %1773 = vmatprep.subr.mxu0 0.0
        %1774 = vmatpush1.msra.mxu0 0.0
        %1775 = vmatprep.subr.mxu0 0.0
        %1776 = vmatpush1.msra.mxu0 0.0
        %1777 = vmatprep.subr.mxu0 0.0
        %1778 = vmatpush1.msra.mxu0 0.0
        %1779 = vmatprep.subr.mxu0 0.0
        %1780 = vmatpush1.msra.mxu0 0.0
        %1781 = vmatprep.subr.mxu0 0.0
        %1782 = vmatpush1.msra.mxu0 0.0
        %1783 = vmatprep.subr.mxu0 0.0
        %1784 = vmatpush1.msra.mxu0 0.0
        %1785 = vmatprep.subr.mxu0 0.0
        %1786 = vmatpush1.msra.mxu0 0.0
        %1787 = vmatprep.subr.mxu0 0.0
        %1788 = vmatpush1.msra.mxu0 0.0
        %1789 = vmatprep.subr.mxu0 0.0
        %1790 = vmatpush1.msra.mxu0 0.0
        %1791 = vmatprep.mubr.f32.mxu0 0.0
        %1792 = vmatmul.mubr.f32.gmra.mrb[0].mxu0 %v1674
        %v1793 = vpop.f32.mrb[0].mxu0
        %v1794 = vadd.f32 0.0, %v1793
        %v1795 = vpop.f32.mrb[0].mxu0
        %v1796 = vadd.f32 0.0, %v1795
        %1797 = vmatprep.mubr.f32.mxu0 0.0
        %1798 = vmatmul.mubr.f32.gmra.mrb[0].mxu0 %v1676
        %v1799 = vpop.f32.mrb[0].mxu0
        %v1800 = vadd.f32 0.0, %v1799
        %v1801 = vpop.f32.mrb[0].mxu0
        %v1802 = vadd.f32 0.0, %v1801
        %1803 = vmatprep.mubr.f32.mxu0 0.0
        %1804 = vmatmul.mubr.f32.gmra.mrb[0].mxu0 %v1678
        %v1805 = vpop.f32.mrb[0].mxu0
        %v1806 = vadd.f32 0.0, %v1805
        %v1807 = vpop.f32.mrb[0].mxu0
        %v1808 = vadd.f32 0.0, %v1807
        %1809 = vmatprep.mubr.f32.mxu0 0.0
        %1810 = vmatmul.mubr.f32.gmra.mrb[0].mxu0 %v1680
        %v1811 = vpop.f32.mrb[0].mxu0
        %v1812 = vadd.f32 0.0, %v1811
        %v1813 = vpop.f32.mrb[0].mxu0
        %v1814 = vadd.f32 0.0, %v1813
        %1815 = vmatprep.mubr.f32.mxu0 0.0
        %1816 = vmatmul.mubr.f32.gmra.mrb[0].mxu0 %v1682
        %v1817 = vpop.f32.mrb[0].mxu0
        %v1818 = vadd.f32 0.0, %v1817
        %v1819 = vpop.f32.mrb[0].mxu0
        %v1820 = vadd.f32 0.0, %v1819
        %1821 = vmatprep.mubr.f32.mxu0 0.0
        %1822 = vmatmul.mubr.f32.gmra.mrb[0].mxu0 %v1684
        %v1823 = vpop.f32.mrb[0].mxu0
        %v1824 = vadd.f32 0.0, %v1823
        %v1825 = vpop.f32.mrb[0].mxu0
        %v1826 = vadd.f32 0.0, %v1825
        %1827 = vmatprep.mubr.f32.mxu0 0.0
        %1828 = vmatmul.mubr.f32.gmra.mrb[0].mxu0 %v1686
        %v1829 = vpop.f32.mrb[0].mxu0
        %v1830 = vadd.f32 0.0, %v1829
        %v1831 = vpop.f32.mrb[0].mxu0
        %v1832 = vadd.f32 0.0, %v1831
        %1833 = vmatprep.mubr.f32.mxu0 0.0
        %1834 = vmatmul.mubr.f32.gmra.mrb[0].mxu0 %v1688
        %v1835 = vpop.f32.mrb[0].mxu0
        %v1836 = vadd.f32 0.0, %v1835
        %v1837 = vpop.f32.mrb[0].mxu0
        %v1838 = vadd.f32 0.0, %v1837
        %1839 = vdwg.mxu0
        %v1840 = vmax.f32 %v1796, 1e-30
        %v1841 = vmax.f32 %v1802, 1e-30
        %v1842 = vmax.f32 %v1808, 1e-30
        %v1843 = vmax.f32 %v1814, 1e-30
        %v1844 = vmax.f32 %v1820, 1e-30
        %v1845 = vmax.f32 %v1826, 1e-30
        %v1846 = vmax.f32 %v1832, 1e-30
        %v1847 = vmax.f32 %v1838, 1e-30
        %v1848 = vrcp.pop %v1840
        %v1849 = vmul.f32 %v1794, %v1848
        %v1850 = vrcp.pop %v1841
        %v1851 = vmul.f32 %v1800, %v1850
        %v1852 = vrcp.pop %v1842
        %v1853 = vmul.f32 %v1806, %v1852
        %v1854 = vrcp.pop %v1843
        %v1855 = vmul.f32 %v1812, %v1854
        %v1856 = vrcp.pop %v1844
        %v1857 = vmul.f32 %v1818, %v1856
        %v1858 = vrcp.pop %v1845
        %v1859 = vmul.f32 %v1824, %v1858
        %v1860 = vrcp.pop %v1846
        %v1861 = vmul.f32 %v1830, %v1860
        %v1862 = vrcp.pop %v1847
        %v1863 = vmul.f32 %v1836, %v1862
        %1864 = vst [vmem:[%s324 + $0x18] sm:$0xff] %v1849
        %1865 = vst [vmem:[%s324 + $0x58] sm:$0xff] %v1851
        %1866 = vst [vmem:[%s324 + $0x98] sm:$0xff] %v1853
        %1867 = vst [vmem:[%s324 + $0xd8] sm:$0xff] %v1855
        %1868 = vst [vmem:[%s324 + $0x118] sm:$0xff] %v1857
        %1869 = vst [vmem:[%s324 + $0x158] sm:$0xff] %v1859
        %1870 = vst [vmem:[%s324 + $0x198] sm:$0xff] %v1861
        %1871 = vst [vmem:[%s324 + $0x1d8] sm:$0xff] %v1863
        %1872 = vmax.xlane.f32.xlu0 %v790
        %v1873 = vpop.xlane.xlu0 %1872
        %1874 = vmax.xlane.f32.xlu0 %v796
        %v1875 = vpop.xlane.xlu0 %1874
        %1876 = vmax.xlane.f32.xlu0 %v802
        %v1877 = vpop.xlane.xlu0 %1876
        %1878 = vmax.xlane.f32.xlu0 %v808
        %v1879 = vpop.xlane.xlu0 %1878
        %1880 = vmax.xlane.f32.xlu0 %v814
        %v1881 = vpop.xlane.xlu0 %1880
        %1882 = vmax.xlane.f32.xlu0 %v820
        %v1883 = vpop.xlane.xlu0 %1882
        %1884 = vmax.xlane.f32.xlu0 %v826
        %v1885 = vpop.xlane.xlu0 %1884
        %1886 = vmax.xlane.f32.xlu0 %v832
        %v1887 = vpop.xlane.xlu0 %1886
        %v1888 = vsub.f32 %v790, %v1873
        %v1889 = vsub.f32 %v796, %v1875
        %v1890 = vsub.f32 %v802, %v1877
        %v1891 = vsub.f32 %v808, %v1879
        %v1892 = vsub.f32 %v814, %v1881
        %v1893 = vsub.f32 %v820, %v1883
        %v1894 = vsub.f32 %v826, %v1885
        %v1895 = vsub.f32 %v832, %v1887
        %v1896 = vmul.f32 %v1888, 1.442695
        %v1897 = vpow.pop %v1896
        %v1898 = vmul.f32 %v1889, 1.442695
        %v1899 = vpow.pop %v1898
        %v1900 = vmul.f32 %v1890, 1.442695
        %v1901 = vpow.pop %v1900
        %v1902 = vmul.f32 %v1891, 1.442695
        %v1903 = vpow.pop %v1902
        %v1904 = vmul.f32 %v1892, 1.442695
        %v1905 = vpow.pop %v1904
        %v1906 = vmul.f32 %v1893, 1.442695
        %v1907 = vpow.pop %v1906
        %v1908 = vmul.f32 %v1894, 1.442695
        %v1909 = vpow.pop %v1908
        %v1910 = vmul.f32 %v1895, 1.442695
        %v1911 = vpow.pop %v1910
        %s1912 = scalar_lea.vmem %s289, 128 [#allocation8]
        %v1913 = vld [vmem:[%s1912] sm:$0xff]
        %v1914 = vld [vmem:[%s1912 + $0x8] sm:$0xff]
        %s1915 = scalar_lea.vmem %s289, 144 [#allocation8]
        %v1916 = vld [vmem:[%s1915] sm:$0xff]
        %v1917 = vld [vmem:[%s1915 + $0x8] sm:$0xff]
        %v1918 = vmul.f32 %v1913, %v949
        %v1919 = vmul.f32 %v1914, %v950
        %v1920 = vmul.f32 %v1913, %v951
        %v1921 = vmul.f32 %v1914, %v952
        %v1922 = vmul.f32 %v1913, %v953
        %v1923 = vmul.f32 %v1914, %v954
        %v1924 = vmul.f32 %v1913, %v955
        %v1925 = vmul.f32 %v1914, %v956
        %v1926 = vmul.f32 %v1913, %v957
        %v1927 = vmul.f32 %v1914, %v958
        %v1928 = vmul.f32 %v1913, %v959
        %v1929 = vmul.f32 %v1914, %v960
        %v1930 = vmul.f32 %v1913, %v961
        %v1931 = vmul.f32 %v1914, %v962
        %v1932 = vmul.f32 %v1913, %v963
        %v1933 = vmul.f32 %v1914, %v964
        %v1934 = vmul.f32 %v1916, %v965
        %v1935 = vmul.f32 %v1917, %v966
        %v1936 = vmul.f32 %v1916, %v967
        %v1937 = vmul.f32 %v1917, %v968
        %v1938 = vmul.f32 %v1916, %v969
        %v1939 = vmul.f32 %v1917, %v970
        %v1940 = vmul.f32 %v1916, %v971
        %v1941 = vmul.f32 %v1917, %v972
        %v1942 = vmul.f32 %v1916, %v973
        %v1943 = vmul.f32 %v1917, %v974
        %v1944 = vmul.f32 %v1916, %v975
        %v1945 = vmul.f32 %v1917, %v976
        %v1946 = vmul.f32 %v1916, %v977
        %v1947 = vmul.f32 %v1917, %v978
        %v1948 = vmul.f32 %v1916, %v979
        %v1949 = vmul.f32 %v1917, %v980
        %1950 = vmatprep.subr.mxu0 %v1919
        %1951 = vmatpush1.msra.mxu0 %v1918
        %1952 = vmatprep.subr.mxu0 %v1921
        %1953 = vmatpush1.msra.mxu0 %v1920
        %1954 = vmatprep.subr.mxu0 %v1923
        %1955 = vmatpush1.msra.mxu0 %v1922
        %1956 = vmatprep.subr.mxu0 %v1925
        %1957 = vmatpush1.msra.mxu0 %v1924
        %1958 = vmatprep.subr.mxu0 %v1927
        %1959 = vmatpush1.msra.mxu0 %v1926
        %1960 = vmatprep.subr.mxu0 %v1929
        %1961 = vmatpush1.msra.mxu0 %v1928
        %1962 = vmatprep.subr.mxu0 %v1931
        %1963 = vmatpush1.msra.mxu0 %v1930
        %1964 = vmatprep.subr.mxu0 %v1933
        %1965 = vmatpush1.msra.mxu0 %v1932
        %1966 = vmatprep.subr.mxu0 %v1935
        %1967 = vmatpush1.msra.mxu0 %v1934
        %1968 = vmatprep.subr.mxu0 %v1937
        %1969 = vmatpush1.msra.mxu0 %v1936
        %1970 = vmatprep.subr.mxu0 %v1939
        %1971 = vmatpush1.msra.mxu0 %v1938
        %1972 = vmatprep.subr.mxu0 %v1941
        %1973 = vmatpush1.msra.mxu0 %v1940
        %1974 = vmatprep.subr.mxu0 %v1943
        %1975 = vmatpush1.msra.mxu0 %v1942
        %1976 = vmatprep.subr.mxu0 %v1945
        %1977 = vmatpush1.msra.mxu0 %v1944
        %1978 = vmatprep.subr.mxu0 %v1947
        %1979 = vmatpush1.msra.mxu0 %v1946
        %1980 = vmatprep.subr.mxu0 %v1949
        %1981 = vmatpush1.msra.mxu0 %v1948
        %1982 = vmatprep.subr.mxu0 0.0
        %1983 = vmatpush1.msra.mxu0 0.0
        %1984 = vmatprep.subr.mxu0 0.0
        %1985 = vmatpush1.msra.mxu0 0.0
        %1986 = vmatprep.subr.mxu0 0.0
        %1987 = vmatpush1.msra.mxu0 0.0
        %1988 = vmatprep.subr.mxu0 0.0
        %1989 = vmatpush1.msra.mxu0 0.0
        %1990 = vmatprep.subr.mxu0 0.0
        %1991 = vmatpush1.msra.mxu0 0.0
        %1992 = vmatprep.subr.mxu0 0.0
        %1993 = vmatpush1.msra.mxu0 0.0
        %1994 = vmatprep.subr.mxu0 0.0
        %1995 = vmatpush1.msra.mxu0 0.0
        %1996 = vmatprep.subr.mxu0 0.0
        %1997 = vmatpush1.msra.mxu0 0.0
        %1998 = vmatprep.subr.mxu0 0.0
        %1999 = vmatpush1.msra.mxu0 0.0
        %2000 = vmatprep.subr.mxu0 0.0
        %2001 = vmatpush1.msra.mxu0 0.0
        %2002 = vmatprep.subr.mxu0 0.0
        %2003 = vmatpush1.msra.mxu0 0.0
        %2004 = vmatprep.subr.mxu0 0.0
        %2005 = vmatpush1.msra.mxu0 0.0
        %2006 = vmatprep.subr.mxu0 0.0
        %2007 = vmatpush1.msra.mxu0 0.0
        %2008 = vmatprep.subr.mxu0 0.0
        %2009 = vmatpush1.msra.mxu0 0.0
        %2010 = vmatprep.subr.mxu0 0.0
        %2011 = vmatpush1.msra.mxu0 0.0
        %2012 = vmatprep.subr.mxu0 0.0
        %2013 = vmatpush1.msra.mxu0 0.0
        %2014 = vmatprep.mubr.f32.mxu0 0.0
        %2015 = vmatmul.mubr.f32.gmra.mrb[0].mxu0 %v1897
        %v2016 = vpop.f32.mrb[0].mxu0
        %v2017 = vadd.f32 0.0, %v2016
        %v2018 = vpop.f32.mrb[0].mxu0
        %v2019 = vadd.f32 0.0, %v2018
        %2020 = vmatprep.mubr.f32.mxu0 0.0
        %2021 = vmatmul.mubr.f32.gmra.mrb[0].mxu0 %v1899
        %v2022 = vpop.f32.mrb[0].mxu0
        %v2023 = vadd.f32 0.0, %v2022
        %v2024 = vpop.f32.mrb[0].mxu0
        %v2025 = vadd.f32 0.0, %v2024
        %2026 = vmatprep.mubr.f32.mxu0 0.0
        %2027 = vmatmul.mubr.f32.gmra.mrb[0].mxu0 %v1901
        %v2028 = vpop.f32.mrb[0].mxu0
        %v2029 = vadd.f32 0.0, %v2028
        %v2030 = vpop.f32.mrb[0].mxu0
        %v2031 = vadd.f32 0.0, %v2030
        %2032 = vmatprep.mubr.f32.mxu0 0.0
        %2033 = vmatmul.mubr.f32.gmra.mrb[0].mxu0 %v1903
        %v2034 = vpop.f32.mrb[0].mxu0
        %v2035 = vadd.f32 0.0, %v2034
        %v2036 = vpop.f32.mrb[0].mxu0
        %v2037 = vadd.f32 0.0, %v2036
        %2038 = vmatprep.mubr.f32.mxu0 0.0
        %2039 = vmatmul.mubr.f32.gmra.mrb[0].mxu0 %v1905
        %v2040 = vpop.f32.mrb[0].mxu0
        %v2041 = vadd.f32 0.0, %v2040
        %v2042 = vpop.f32.mrb[0].mxu0
        %v2043 = vadd.f32 0.0, %v2042
        %2044 = vmatprep.mubr.f32.mxu0 0.0
        %2045 = vmatmul.mubr.f32.gmra.mrb[0].mxu0 %v1907
        %v2046 = vpop.f32.mrb[0].mxu0
        %v2047 = vadd.f32 0.0, %v2046
        %v2048 = vpop.f32.mrb[0].mxu0
        %v2049 = vadd.f32 0.0, %v2048
        %2050 = vmatprep.mubr.f32.mxu0 0.0
        %2051 = vmatmul.mubr.f32.gmra.mrb[0].mxu0 %v1909
        %v2052 = vpop.f32.mrb[0].mxu0
        %v2053 = vadd.f32 0.0, %v2052
        %v2054 = vpop.f32.mrb[0].mxu0
        %v2055 = vadd.f32 0.0, %v2054
        %2056 = vmatprep.mubr.f32.mxu0 0.0
        %2057 = vmatmul.mubr.f32.gmra.mrb[0].mxu0 %v1911
        %v2058 = vpop.f32.mrb[0].mxu0
        %v2059 = vadd.f32 0.0, %v2058
        %v2060 = vpop.f32.mrb[0].mxu0
        %v2061 = vadd.f32 0.0, %v2060
        %2062 = vdwg.mxu0
        %v2063 = vmax.f32 %v2019, 1e-30
        %v2064 = vmax.f32 %v2025, 1e-30
        %v2065 = vmax.f32 %v2031, 1e-30
        %v2066 = vmax.f32 %v2037, 1e-30
        %v2067 = vmax.f32 %v2043, 1e-30
        %v2068 = vmax.f32 %v2049, 1e-30
        %v2069 = vmax.f32 %v2055, 1e-30
        %v2070 = vmax.f32 %v2061, 1e-30
        %v2071 = vrcp.pop %v2063
        %v2072 = vmul.f32 %v2017, %v2071
        %v2073 = vrcp.pop %v2064
        %v2074 = vmul.f32 %v2023, %v2073
        %v2075 = vrcp.pop %v2065
        %v2076 = vmul.f32 %v2029, %v2075
        %v2077 = vrcp.pop %v2066
        %v2078 = vmul.f32 %v2035, %v2077
        %v2079 = vrcp.pop %v2067
        %v2080 = vmul.f32 %v2041, %v2079
        %v2081 = vrcp.pop %v2068
        %v2082 = vmul.f32 %v2047, %v2081
        %v2083 = vrcp.pop %v2069
        %v2084 = vmul.f32 %v2053, %v2083
        %v2085 = vrcp.pop %v2070
        %v2086 = vmul.f32 %v2059, %v2085
        %2087 = vst [vmem:[%s324 + $0x20] sm:$0xff] %v2072
        %2088 = vst [vmem:[%s324 + $0x60] sm:$0xff] %v2074
        %2089 = vst [vmem:[%s324 + $0xa0] sm:$0xff] %v2076
        %2090 = vst [vmem:[%s324 + $0xe0] sm:$0xff] %v2078
        %2091 = vst [vmem:[%s324 + $0x120] sm:$0xff] %v2080
        %2092 = vst [vmem:[%s324 + $0x160] sm:$0xff] %v2082
        %2093 = vst [vmem:[%s324 + $0x1a0] sm:$0xff] %v2084
        %2094 = vst [vmem:[%s324 + $0x1e0] sm:$0xff] %v2086
        %2095 = vmax.xlane.f32.xlu0 %v792
        %v2096 = vpop.xlane.xlu0 %2095
        %2097 = vmax.xlane.f32.xlu0 %v798
        %v2098 = vpop.xlane.xlu0 %2097
        %2099 = vmax.xlane.f32.xlu0 %v804
        %v2100 = vpop.xlane.xlu0 %2099
        %2101 = vmax.xlane.f32.xlu0 %v810
        %v2102 = vpop.xlane.xlu0 %2101
        %2103 = vmax.xlane.f32.xlu0 %v816
        %v2104 = vpop.xlane.xlu0 %2103
        %2105 = vmax.xlane.f32.xlu0 %v822
        %v2106 = vpop.xlane.xlu0 %2105
        %2107 = vmax.xlane.f32.xlu0 %v828
        %v2108 = vpop.xlane.xlu0 %2107
        %2109 = vmax.xlane.f32.xlu0 %v834
        %v2110 = vpop.xlane.xlu0 %2109
        %v2111 = vsub.f32 %v792, %v2096
        %v2112 = vsub.f32 %v798, %v2098
        %v2113 = vsub.f32 %v804, %v2100
        %v2114 = vsub.f32 %v810, %v2102
        %v2115 = vsub.f32 %v816, %v2104
        %v2116 = vsub.f32 %v822, %v2106
        %v2117 = vsub.f32 %v828, %v2108
        %v2118 = vsub.f32 %v834, %v2110
        %v2119 = vmul.f32 %v2111, 1.442695
        %v2120 = vpow.pop %v2119
        %v2121 = vmul.f32 %v2112, 1.442695
        %v2122 = vpow.pop %v2121
        %v2123 = vmul.f32 %v2113, 1.442695
        %v2124 = vpow.pop %v2123
        %v2125 = vmul.f32 %v2114, 1.442695
        %v2126 = vpow.pop %v2125
        %v2127 = vmul.f32 %v2115, 1.442695
        %v2128 = vpow.pop %v2127
        %v2129 = vmul.f32 %v2116, 1.442695
        %v2130 = vpow.pop %v2129
        %v2131 = vmul.f32 %v2117, 1.442695
        %v2132 = vpow.pop %v2131
        %v2133 = vmul.f32 %v2118, 1.442695
        %v2134 = vpow.pop %v2133
        %s2135 = scalar_lea.vmem %s289, 160 [#allocation8]
        %v2136 = vld [vmem:[%s2135] sm:$0xff]
        %v2137 = vld [vmem:[%s2135 + $0x8] sm:$0xff]
        %s2138 = scalar_lea.vmem %s289, 176 [#allocation8]
        %v2139 = vld [vmem:[%s2138] sm:$0xff]
        %v2140 = vld [vmem:[%s2138 + $0x8] sm:$0xff]
        %v2141 = vmul.f32 %v2136, %v949
        %v2142 = vmul.f32 %v2137, %v950
        %v2143 = vmul.f32 %v2136, %v951
        %v2144 = vmul.f32 %v2137, %v952
        %v2145 = vmul.f32 %v2136, %v953
        %v2146 = vmul.f32 %v2137, %v954
        %v2147 = vmul.f32 %v2136, %v955
        %v2148 = vmul.f32 %v2137, %v956
        %v2149 = vmul.f32 %v2136, %v957
        %v2150 = vmul.f32 %v2137, %v958
        %v2151 = vmul.f32 %v2136, %v959
        %v2152 = vmul.f32 %v2137, %v960
        %v2153 = vmul.f32 %v2136, %v961
        %v2154 = vmul.f32 %v2137, %v962
        %v2155 = vmul.f32 %v2136, %v963
        %v2156 = vmul.f32 %v2137, %v964
        %v2157 = vmul.f32 %v2139, %v965
        %v2158 = vmul.f32 %v2140, %v966
        %v2159 = vmul.f32 %v2139, %v967
        %v2160 = vmul.f32 %v2140, %v968
        %v2161 = vmul.f32 %v2139, %v969
        %v2162 = vmul.f32 %v2140, %v970
        %v2163 = vmul.f32 %v2139, %v971
        %v2164 = vmul.f32 %v2140, %v972
        %v2165 = vmul.f32 %v2139, %v973
        %v2166 = vmul.f32 %v2140, %v974
        %v2167 = vmul.f32 %v2139, %v975
        %v2168 = vmul.f32 %v2140, %v976
        %v2169 = vmul.f32 %v2139, %v977
        %v2170 = vmul.f32 %v2140, %v978
        %v2171 = vmul.f32 %v2139, %v979
        %v2172 = vmul.f32 %v2140, %v980
        %2173 = vmatprep.subr.mxu0 %v2142
        %2174 = vmatpush1.msra.mxu0 %v2141
        %2175 = vmatprep.subr.mxu0 %v2144
        %2176 = vmatpush1.msra.mxu0 %v2143
        %2177 = vmatprep.subr.mxu0 %v2146
        %2178 = vmatpush1.msra.mxu0 %v2145
        %2179 = vmatprep.subr.mxu0 %v2148
        %2180 = vmatpush1.msra.mxu0 %v2147
        %2181 = vmatprep.subr.mxu0 %v2150
        %2182 = vmatpush1.msra.mxu0 %v2149
        %2183 = vmatprep.subr.mxu0 %v2152
        %2184 = vmatpush1.msra.mxu0 %v2151
        %2185 = vmatprep.subr.mxu0 %v2154
        %2186 = vmatpush1.msra.mxu0 %v2153
        %2187 = vmatprep.subr.mxu0 %v2156
        %2188 = vmatpush1.msra.mxu0 %v2155
        %2189 = vmatprep.subr.mxu0 %v2158
        %2190 = vmatpush1.msra.mxu0 %v2157
        %2191 = vmatprep.subr.mxu0 %v2160
        %2192 = vmatpush1.msra.mxu0 %v2159
        %2193 = vmatprep.subr.mxu0 %v2162
        %2194 = vmatpush1.msra.mxu0 %v2161
        %2195 = vmatprep.subr.mxu0 %v2164
        %2196 = vmatpush1.msra.mxu0 %v2163
        %2197 = vmatprep.subr.mxu0 %v2166
        %2198 = vmatpush1.msra.mxu0 %v2165
        %2199 = vmatprep.subr.mxu0 %v2168
        %2200 = vmatpush1.msra.mxu0 %v2167
        %2201 = vmatprep.subr.mxu0 %v2170
        %2202 = vmatpush1.msra.mxu0 %v2169
        %2203 = vmatprep.subr.mxu0 %v2172
        %2204 = vmatpush1.msra.mxu0 %v2171
        %2205 = vmatprep.subr.mxu0 0.0
        %2206 = vmatpush1.msra.mxu0 0.0
        %2207 = vmatprep.subr.mxu0 0.0
        %2208 = vmatpush1.msra.mxu0 0.0
        %2209 = vmatprep.subr.mxu0 0.0
        %2210 = vmatpush1.msra.mxu0 0.0
        %2211 = vmatprep.subr.mxu0 0.0
        %2212 = vmatpush1.msra.mxu0 0.0
        %2213 = vmatprep.subr.mxu0 0.0
        %2214 = vmatpush1.msra.mxu0 0.0
        %2215 = vmatprep.subr.mxu0 0.0
        %2216 = vmatpush1.msra.mxu0 0.0
        %2217 = vmatprep.subr.mxu0 0.0
        %2218 = vmatpush1.msra.mxu0 0.0
        %2219 = vmatprep.subr.mxu0 0.0
        %2220 = vmatpush1.msra.mxu0 0.0
        %2221 = vmatprep.subr.mxu0 0.0
        %2222 = vmatpush1.msra.mxu0 0.0
        %2223 = vmatprep.subr.mxu0 0.0
        %2224 = vmatpush1.msra.mxu0 0.0
        %2225 = vmatprep.subr.mxu0 0.0
        %2226 = vmatpush1.msra.mxu0 0.0
        %2227 = vmatprep.subr.mxu0 0.0
        %2228 = vmatpush1.msra.mxu0 0.0
        %2229 = vmatprep.subr.mxu0 0.0
        %2230 = vmatpush1.msra.mxu0 0.0
        %2231 = vmatprep.subr.mxu0 0.0
        %2232 = vmatpush1.msra.mxu0 0.0
        %2233 = vmatprep.subr.mxu0 0.0
        %2234 = vmatpush1.msra.mxu0 0.0
        %2235 = vmatprep.subr.mxu0 0.0
        %2236 = vmatpush1.msra.mxu0 0.0
        %2237 = vmatprep.mubr.f32.mxu0 0.0
        %2238 = vmatmul.mubr.f32.gmra.mrb[0].mxu0 %v2120
        %v2239 = vpop.f32.mrb[0].mxu0
        %v2240 = vadd.f32 0.0, %v2239
        %v2241 = vpop.f32.mrb[0].mxu0
        %v2242 = vadd.f32 0.0, %v2241
        %2243 = vmatprep.mubr.f32.mxu0 0.0
        %2244 = vmatmul.mubr.f32.gmra.mrb[0].mxu0 %v2122
        %v2245 = vpop.f32.mrb[0].mxu0
        %v2246 = vadd.f32 0.0, %v2245
        %v2247 = vpop.f32.mrb[0].mxu0
        %v2248 = vadd.f32 0.0, %v2247
        %2249 = vmatprep.mubr.f32.mxu0 0.0
        %2250 = vmatmul.mubr.f32.gmra.mrb[0].mxu0 %v2124
        %v2251 = vpop.f32.mrb[0].mxu0
        %v2252 = vadd.f32 0.0, %v2251
        %v2253 = vpop.f32.mrb[0].mxu0
        %v2254 = vadd.f32 0.0, %v2253
        %2255 = vmatprep.mubr.f32.mxu0 0.0
        %2256 = vmatmul.mubr.f32.gmra.mrb[0].mxu0 %v2126
        %v2257 = vpop.f32.mrb[0].mxu0
        %v2258 = vadd.f32 0.0, %v2257
        %v2259 = vpop.f32.mrb[0].mxu0
        %v2260 = vadd.f32 0.0, %v2259
        %2261 = vmatprep.mubr.f32.mxu0 0.0
        %2262 = vmatmul.mubr.f32.gmra.mrb[0].mxu0 %v2128
        %v2263 = vpop.f32.mrb[0].mxu0
        %v2264 = vadd.f32 0.0, %v2263
        %v2265 = vpop.f32.mrb[0].mxu0
        %v2266 = vadd.f32 0.0, %v2265
        %2267 = vmatprep.mubr.f32.mxu0 0.0
        %2268 = vmatmul.mubr.f32.gmra.mrb[0].mxu0 %v2130
        %v2269 = vpop.f32.mrb[0].mxu0
        %v2270 = vadd.f32 0.0, %v2269
        %v2271 = vpop.f32.mrb[0].mxu0
        %v2272 = vadd.f32 0.0, %v2271
        %2273 = vmatprep.mubr.f32.mxu0 0.0
        %2274 = vmatmul.mubr.f32.gmra.mrb[0].mxu0 %v2132
        %v2275 = vpop.f32.mrb[0].mxu0
        %v2276 = vadd.f32 0.0, %v2275
        %v2277 = vpop.f32.mrb[0].mxu0
        %v2278 = vadd.f32 0.0, %v2277
        %2279 = vmatprep.mubr.f32.mxu0 0.0
        %2280 = vmatmul.mubr.f32.gmra.mrb[0].mxu0 %v2134
        %v2281 = vpop.f32.mrb[0].mxu0
        %v2282 = vadd.f32 0.0, %v2281
        %v2283 = vpop.f32.mrb[0].mxu0
        %v2284 = vadd.f32 0.0, %v2283
        %2285 = vdwg.mxu0
        %v2286 = vmax.f32 %v2242, 1e-30
        %v2287 = vmax.f32 %v2248, 1e-30
        %v2288 = vmax.f32 %v2254, 1e-30
        %v2289 = vmax.f32 %v2260, 1e-30
        %v2290 = vmax.f32 %v2266, 1e-30
        %v2291 = vmax.f32 %v2272, 1e-30
        %v2292 = vmax.f32 %v2278, 1e-30
        %v2293 = vmax.f32 %v2284, 1e-30
        %v2294 = vrcp.pop %v2286
        %v2295 = vmul.f32 %v2240, %v2294
        %v2296 = vrcp.pop %v2287
        %v2297 = vmul.f32 %v2246, %v2296
        %v2298 = vrcp.pop %v2288
        %v2299 = vmul.f32 %v2252, %v2298
        %v2300 = vrcp.pop %v2289
        %v2301 = vmul.f32 %v2258, %v2300
        %v2302 = vrcp.pop %v2290
        %v2303 = vmul.f32 %v2264, %v2302
        %v2304 = vrcp.pop %v2291
        %v2305 = vmul.f32 %v2270, %v2304
        %v2306 = vrcp.pop %v2292
        %v2307 = vmul.f32 %v2276, %v2306
        %v2308 = vrcp.pop %v2293
        %v2309 = vmul.f32 %v2282, %v2308
        %2310 = vst [vmem:[%s324 + $0x28] sm:$0xff] %v2295
        %2311 = vst [vmem:[%s324 + $0x68] sm:$0xff] %v2297
        %2312 = vst [vmem:[%s324 + $0xa8] sm:$0xff] %v2299
        %2313 = vst [vmem:[%s324 + $0xe8] sm:$0xff] %v2301
        %2314 = vst [vmem:[%s324 + $0x128] sm:$0xff] %v2303
        %2315 = vst [vmem:[%s324 + $0x168] sm:$0xff] %v2305
        %2316 = vst [vmem:[%s324 + $0x1a8] sm:$0xff] %v2307
        %2317 = vst [vmem:[%s324 + $0x1e8] sm:$0xff] %v2309
        %2318 = vmax.xlane.f32.xlu0 %v903
        %v2319 = vpop.xlane.xlu0 %2318
        %2320 = vmax.xlane.f32.xlu0 %v909
        %v2321 = vpop.xlane.xlu0 %2320
        %2322 = vmax.xlane.f32.xlu0 %v915
        %v2323 = vpop.xlane.xlu0 %2322
        %2324 = vmax.xlane.f32.xlu0 %v921
        %v2325 = vpop.xlane.xlu0 %2324
        %2326 = vmax.xlane.f32.xlu0 %v927
        %v2327 = vpop.xlane.xlu0 %2326
        %2328 = vmax.xlane.f32.xlu0 %v933
        %v2329 = vpop.xlane.xlu0 %2328
        %2330 = vmax.xlane.f32.xlu0 %v939
        %v2331 = vpop.xlane.xlu0 %2330
        %2332 = vmax.xlane.f32.xlu0 %v945
        %v2333 = vpop.xlane.xlu0 %2332
        %v2334 = vsub.f32 %v903, %v2319
        %v2335 = vsub.f32 %v909, %v2321
        %v2336 = vsub.f32 %v915, %v2323
        %v2337 = vsub.f32 %v921, %v2325
        %v2338 = vsub.f32 %v927, %v2327
        %v2339 = vsub.f32 %v933, %v2329
        %v2340 = vsub.f32 %v939, %v2331
        %v2341 = vsub.f32 %v945, %v2333
        %v2342 = vmul.f32 %v2334, 1.442695
        %v2343 = vpow.pop %v2342
        %v2344 = vmul.f32 %v2335, 1.442695
        %v2345 = vpow.pop %v2344
        %v2346 = vmul.f32 %v2336, 1.442695
        %v2347 = vpow.pop %v2346
        %v2348 = vmul.f32 %v2337, 1.442695
        %v2349 = vpow.pop %v2348
        %v2350 = vmul.f32 %v2338, 1.442695
        %v2351 = vpow.pop %v2350
        %v2352 = vmul.f32 %v2339, 1.442695
        %v2353 = vpow.pop %v2352
        %v2354 = vmul.f32 %v2340, 1.442695
        %v2355 = vpow.pop %v2354
        %v2356 = vmul.f32 %v2341, 1.442695
        %v2357 = vpow.pop %v2356
        %s2358 = scalar_lea.vmem %s289, 192 [#allocation8]
        %v2359 = vld [vmem:[%s2358] sm:$0xff]
        %v2360 = vld [vmem:[%s2358 + $0x8] sm:$0xff]
        %s2361 = scalar_lea.vmem %s289, 208 [#allocation8]
        %v2362 = vld [vmem:[%s2361] sm:$0xff]
        %v2363 = vld [vmem:[%s2361 + $0x8] sm:$0xff]
        %v2364 = vmul.f32 %v2359, %v949
        %v2365 = vmul.f32 %v2360, %v950
        %v2366 = vmul.f32 %v2359, %v951
        %v2367 = vmul.f32 %v2360, %v952
        %v2368 = vmul.f32 %v2359, %v953
        %v2369 = vmul.f32 %v2360, %v954
        %v2370 = vmul.f32 %v2359, %v955
        %v2371 = vmul.f32 %v2360, %v956
        %v2372 = vmul.f32 %v2359, %v957
        %v2373 = vmul.f32 %v2360, %v958
        %v2374 = vmul.f32 %v2359, %v959
        %v2375 = vmul.f32 %v2360, %v960
        %v2376 = vmul.f32 %v2359, %v961
        %v2377 = vmul.f32 %v2360, %v962
        %v2378 = vmul.f32 %v2359, %v963
        %v2379 = vmul.f32 %v2360, %v964
        %v2380 = vmul.f32 %v2362, %v965
        %v2381 = vmul.f32 %v2363, %v966
        %v2382 = vmul.f32 %v2362, %v967
        %v2383 = vmul.f32 %v2363, %v968
        %v2384 = vmul.f32 %v2362, %v969
        %v2385 = vmul.f32 %v2363, %v970
        %v2386 = vmul.f32 %v2362, %v971
        %v2387 = vmul.f32 %v2363, %v972
        %v2388 = vmul.f32 %v2362, %v973
        %v2389 = vmul.f32 %v2363, %v974
        %v2390 = vmul.f32 %v2362, %v975
        %v2391 = vmul.f32 %v2363, %v976
        %v2392 = vmul.f32 %v2362, %v977
        %v2393 = vmul.f32 %v2363, %v978
        %v2394 = vmul.f32 %v2362, %v979
        %v2395 = vmul.f32 %v2363, %v980
        %2396 = vmatprep.subr.mxu0 %v2365
        %2397 = vmatpush1.msra.mxu0 %v2364
        %2398 = vmatprep.subr.mxu0 %v2367
        %2399 = vmatpush1.msra.mxu0 %v2366
        %2400 = vmatprep.subr.mxu0 %v2369
        %2401 = vmatpush1.msra.mxu0 %v2368
        %2402 = vmatprep.subr.mxu0 %v2371
        %2403 = vmatpush1.msra.mxu0 %v2370
        %2404 = vmatprep.subr.mxu0 %v2373
        %2405 = vmatpush1.msra.mxu0 %v2372
        %2406 = vmatprep.subr.mxu0 %v2375
        %2407 = vmatpush1.msra.mxu0 %v2374
        %2408 = vmatprep.subr.mxu0 %v2377
        %2409 = vmatpush1.msra.mxu0 %v2376
        %2410 = vmatprep.subr.mxu0 %v2379
        %2411 = vmatpush1.msra.mxu0 %v2378
        %2412 = vmatprep.subr.mxu0 %v2381
        %2413 = vmatpush1.msra.mxu0 %v2380
        %2414 = vmatprep.subr.mxu0 %v2383
        %2415 = vmatpush1.msra.mxu0 %v2382
        %2416 = vmatprep.subr.mxu0 %v2385
        %2417 = vmatpush1.msra.mxu0 %v2384
        %2418 = vmatprep.subr.mxu0 %v2387
        %2419 = vmatpush1.msra.mxu0 %v2386
        %2420 = vmatprep.subr.mxu0 %v2389
        %2421 = vmatpush1.msra.mxu0 %v2388
        %2422 = vmatprep.subr.mxu0 %v2391
        %2423 = vmatpush1.msra.mxu0 %v2390
        %2424 = vmatprep.subr.mxu0 %v2393
        %2425 = vmatpush1.msra.mxu0 %v2392
        %2426 = vmatprep.subr.mxu0 %v2395
        %2427 = vmatpush1.msra.mxu0 %v2394
        %2428 = vmatprep.subr.mxu0 0.0
        %2429 = vmatpush1.msra.mxu0 0.0
        %2430 = vmatprep.subr.mxu0 0.0
        %2431 = vmatpush1.msra.mxu0 0.0
        %2432 = vmatprep.subr.mxu0 0.0
        %2433 = vmatpush1.msra.mxu0 0.0
        %2434 = vmatprep.subr.mxu0 0.0
        %2435 = vmatpush1.msra.mxu0 0.0
        %2436 = vmatprep.subr.mxu0 0.0
        %2437 = vmatpush1.msra.mxu0 0.0
        %2438 = vmatprep.subr.mxu0 0.0
        %2439 = vmatpush1.msra.mxu0 0.0
        %2440 = vmatprep.subr.mxu0 0.0
        %2441 = vmatpush1.msra.mxu0 0.0
        %2442 = vmatprep.subr.mxu0 0.0
        %2443 = vmatpush1.msra.mxu0 0.0
        %2444 = vmatprep.subr.mxu0 0.0
        %2445 = vmatpush1.msra.mxu0 0.0
        %2446 = vmatprep.subr.mxu0 0.0
        %2447 = vmatpush1.msra.mxu0 0.0
        %2448 = vmatprep.subr.mxu0 0.0
        %2449 = vmatpush1.msra.mxu0 0.0
        %2450 = vmatprep.subr.mxu0 0.0
        %2451 = vmatpush1.msra.mxu0 0.0
        %2452 = vmatprep.subr.mxu0 0.0
        %2453 = vmatpush1.msra.mxu0 0.0
        %2454 = vmatprep.subr.mxu0 0.0
        %2455 = vmatpush1.msra.mxu0 0.0
        %2456 = vmatprep.subr.mxu0 0.0
        %2457 = vmatpush1.msra.mxu0 0.0
        %2458 = vmatprep.subr.mxu0 0.0
        %2459 = vmatpush1.msra.mxu0 0.0
        %2460 = vmatprep.mubr.f32.mxu0 0.0
        %2461 = vmatmul.mubr.f32.gmra.mrb[0].mxu0 %v2343
        %v2462 = vpop.f32.mrb[0].mxu0
        %v2463 = vadd.f32 0.0, %v2462
        %v2464 = vpop.f32.mrb[0].mxu0
        %v2465 = vadd.f32 0.0, %v2464
        %2466 = vmatprep.mubr.f32.mxu0 0.0
        %2467 = vmatmul.mubr.f32.gmra.mrb[0].mxu0 %v2345
        %v2468 = vpop.f32.mrb[0].mxu0
        %v2469 = vadd.f32 0.0, %v2468
        %v2470 = vpop.f32.mrb[0].mxu0
        %v2471 = vadd.f32 0.0, %v2470
        %2472 = vmatprep.mubr.f32.mxu0 0.0
        %2473 = vmatmul.mubr.f32.gmra.mrb[0].mxu0 %v2347
        %v2474 = vpop.f32.mrb[0].mxu0
        %v2475 = vadd.f32 0.0, %v2474
        %v2476 = vpop.f32.mrb[0].mxu0
        %v2477 = vadd.f32 0.0, %v2476
        %2478 = vmatprep.mubr.f32.mxu0 0.0
        %2479 = vmatmul.mubr.f32.gmra.mrb[0].mxu0 %v2349
        %v2480 = vpop.f32.mrb[0].mxu0
        %v2481 = vadd.f32 0.0, %v2480
        %v2482 = vpop.f32.mrb[0].mxu0
        %v2483 = vadd.f32 0.0, %v2482
        %2484 = vmatprep.mubr.f32.mxu0 0.0
        %2485 = vmatmul.mubr.f32.gmra.mrb[0].mxu0 %v2351
        %v2486 = vpop.f32.mrb[0].mxu0
        %v2487 = vadd.f32 0.0, %v2486
        %v2488 = vpop.f32.mrb[0].mxu0
        %v2489 = vadd.f32 0.0, %v2488
        %2490 = vmatprep.mubr.f32.mxu0 0.0
        %2491 = vmatmul.mubr.f32.gmra.mrb[0].mxu0 %v2353
        %v2492 = vpop.f32.mrb[0].mxu0
        %v2493 = vadd.f32 0.0, %v2492
        %v2494 = vpop.f32.mrb[0].mxu0
        %v2495 = vadd.f32 0.0, %v2494
        %2496 = vmatprep.mubr.f32.mxu0 0.0
        %2497 = vmatmul.mubr.f32.gmra.mrb[0].mxu0 %v2355
        %v2498 = vpop.f32.mrb[0].mxu0
        %v2499 = vadd.f32 0.0, %v2498
        %v2500 = vpop.f32.mrb[0].mxu0
        %v2501 = vadd.f32 0.0, %v2500
        %2502 = vmatprep.mubr.f32.mxu0 0.0
        %2503 = vmatmul.mubr.f32.gmra.mrb[0].mxu0 %v2357
        %v2504 = vpop.f32.mrb[0].mxu0
        %v2505 = vadd.f32 0.0, %v2504
        %v2506 = vpop.f32.mrb[0].mxu0
        %v2507 = vadd.f32 0.0, %v2506
        %2508 = vdwg.mxu0
        %v2509 = vmax.f32 %v2465, 1e-30
        %v2510 = vmax.f32 %v2471, 1e-30
        %v2511 = vmax.f32 %v2477, 1e-30
        %v2512 = vmax.f32 %v2483, 1e-30
        %v2513 = vmax.f32 %v2489, 1e-30
        %v2514 = vmax.f32 %v2495, 1e-30
        %v2515 = vmax.f32 %v2501, 1e-30
        %v2516 = vmax.f32 %v2507, 1e-30
        %v2517 = vrcp.pop %v2509
        %v2518 = vmul.f32 %v2463, %v2517
        %v2519 = vrcp.pop %v2510
        %v2520 = vmul.f32 %v2469, %v2519
        %v2521 = vrcp.pop %v2511
        %v2522 = vmul.f32 %v2475, %v2521
        %v2523 = vrcp.pop %v2512
        %v2524 = vmul.f32 %v2481, %v2523
        %v2525 = vrcp.pop %v2513
        %v2526 = vmul.f32 %v2487, %v2525
        %v2527 = vrcp.pop %v2514
        %v2528 = vmul.f32 %v2493, %v2527
        %v2529 = vrcp.pop %v2515
        %v2530 = vmul.f32 %v2499, %v2529
        %v2531 = vrcp.pop %v2516
        %v2532 = vmul.f32 %v2505, %v2531
        %2533 = vst [vmem:[%s324 + $0x30] sm:$0xff] %v2518
        %2534 = vst [vmem:[%s324 + $0x70] sm:$0xff] %v2520
        %2535 = vst [vmem:[%s324 + $0xb0] sm:$0xff] %v2522
        %2536 = vst [vmem:[%s324 + $0xf0] sm:$0xff] %v2524
        %2537 = vst [vmem:[%s324 + $0x130] sm:$0xff] %v2526
        %2538 = vst [vmem:[%s324 + $0x170] sm:$0xff] %v2528
        %2539 = vst [vmem:[%s324 + $0x1b0] sm:$0xff] %v2530
        %2540 = vst [vmem:[%s324 + $0x1f0] sm:$0xff] %v2532
        %2541 = vmax.xlane.f32.xlu0 %v905
        %v2542 = vpop.xlane.xlu0 %2541
        %2543 = vmax.xlane.f32.xlu0 %v911
        %v2544 = vpop.xlane.xlu0 %2543
        %2545 = vmax.xlane.f32.xlu0 %v917
        %v2546 = vpop.xlane.xlu0 %2545
        %2547 = vmax.xlane.f32.xlu0 %v923
        %v2548 = vpop.xlane.xlu0 %2547
        %2549 = vmax.xlane.f32.xlu0 %v929
        %v2550 = vpop.xlane.xlu0 %2549
        %2551 = vmax.xlane.f32.xlu0 %v935
        %v2552 = vpop.xlane.xlu0 %2551
        %2553 = vmax.xlane.f32.xlu0 %v941
        %v2554 = vpop.xlane.xlu0 %2553
        %2555 = vmax.xlane.f32.xlu0 %v947
        %v2556 = vpop.xlane.xlu0 %2555
        %v2557 = vsub.f32 %v905, %v2542
        %v2558 = vsub.f32 %v911, %v2544
        %v2559 = vsub.f32 %v917, %v2546
        %v2560 = vsub.f32 %v923, %v2548
        %v2561 = vsub.f32 %v929, %v2550
        %v2562 = vsub.f32 %v935, %v2552
        %v2563 = vsub.f32 %v941, %v2554
        %v2564 = vsub.f32 %v947, %v2556
        %v2565 = vmul.f32 %v2557, 1.442695
        %v2566 = vpow.pop %v2565
        %v2567 = vmul.f32 %v2558, 1.442695
        %v2568 = vpow.pop %v2567
        %v2569 = vmul.f32 %v2559, 1.442695
        %v2570 = vpow.pop %v2569
        %v2571 = vmul.f32 %v2560, 1.442695
        %v2572 = vpow.pop %v2571
        %v2573 = vmul.f32 %v2561, 1.442695
        %v2574 = vpow.pop %v2573
        %v2575 = vmul.f32 %v2562, 1.442695
        %v2576 = vpow.pop %v2575
        %v2577 = vmul.f32 %v2563, 1.442695
        %v2578 = vpow.pop %v2577
        %v2579 = vmul.f32 %v2564, 1.442695
        %v2580 = vpow.pop %v2579
        %s2581 = scalar_lea.vmem %s289, 224 [#allocation8]
        %v2582 = vld [vmem:[%s2581] sm:$0xff]
        %v2583 = vld [vmem:[%s2581 + $0x8] sm:$0xff]
        %s2584 = scalar_lea.vmem %s289, 240 [#allocation8]
        %v2585 = vld [vmem:[%s2584] sm:$0xff]
        %v2586 = vld [vmem:[%s2584 + $0x8] sm:$0xff]
        %v2587 = vmul.f32 %v2582, %v949
        %v2588 = vmul.f32 %v2583, %v950
        %v2589 = vmul.f32 %v2582, %v951
        %v2590 = vmul.f32 %v2583, %v952
        %v2591 = vmul.f32 %v2582, %v953
        %v2592 = vmul.f32 %v2583, %v954
        %v2593 = vmul.f32 %v2582, %v955
        %v2594 = vmul.f32 %v2583, %v956
        %v2595 = vmul.f32 %v2582, %v957
        %v2596 = vmul.f32 %v2583, %v958
        %v2597 = vmul.f32 %v2582, %v959
        %v2598 = vmul.f32 %v2583, %v960
        %v2599 = vmul.f32 %v2582, %v961
        %v2600 = vmul.f32 %v2583, %v962
        %v2601 = vmul.f32 %v2582, %v963
        %v2602 = vmul.f32 %v2583, %v964
        %v2603 = vmul.f32 %v2585, %v965
        %v2604 = vmul.f32 %v2586, %v966
        %v2605 = vmul.f32 %v2585, %v967
        %v2606 = vmul.f32 %v2586, %v968
        %v2607 = vmul.f32 %v2585, %v969
        %v2608 = vmul.f32 %v2586, %v970
        %v2609 = vmul.f32 %v2585, %v971
        %v2610 = vmul.f32 %v2586, %v972
        %v2611 = vmul.f32 %v2585, %v973
        %v2612 = vmul.f32 %v2586, %v974
        %v2613 = vmul.f32 %v2585, %v975
        %v2614 = vmul.f32 %v2586, %v976
        %v2615 = vmul.f32 %v2585, %v977
        %v2616 = vmul.f32 %v2586, %v978
        %v2617 = vmul.f32 %v2585, %v979
        %v2618 = vmul.f32 %v2586, %v980
        %2619 = vmatprep.subr.mxu0 %v2588
        %2620 = vmatpush1.msra.mxu0 %v2587
        %2621 = vmatprep.subr.mxu0 %v2590
        %2622 = vmatpush1.msra.mxu0 %v2589
        %2623 = vmatprep.subr.mxu0 %v2592
        %2624 = vmatpush1.msra.mxu0 %v2591
        %2625 = vmatprep.subr.mxu0 %v2594
        %2626 = vmatpush1.msra.mxu0 %v2593
        %2627 = vmatprep.subr.mxu0 %v2596
        %2628 = vmatpush1.msra.mxu0 %v2595
        %2629 = vmatprep.subr.mxu0 %v2598
        %2630 = vmatpush1.msra.mxu0 %v2597
        %2631 = vmatprep.subr.mxu0 %v2600
        %2632 = vmatpush1.msra.mxu0 %v2599
        %2633 = vmatprep.subr.mxu0 %v2602
        %2634 = vmatpush1.msra.mxu0 %v2601
        %2635 = vmatprep.subr.mxu0 %v2604
        %2636 = vmatpush1.msra.mxu0 %v2603
        %2637 = vmatprep.subr.mxu0 %v2606
        %2638 = vmatpush1.msra.mxu0 %v2605
        %2639 = vmatprep.subr.mxu0 %v2608
        %2640 = vmatpush1.msra.mxu0 %v2607
        %2641 = vmatprep.subr.mxu0 %v2610
        %2642 = vmatpush1.msra.mxu0 %v2609
        %2643 = vmatprep.subr.mxu0 %v2612
        %2644 = vmatpush1.msra.mxu0 %v2611
        %2645 = vmatprep.subr.mxu0 %v2614
        %2646 = vmatpush1.msra.mxu0 %v2613
        %2647 = vmatprep.subr.mxu0 %v2616
        %2648 = vmatpush1.msra.mxu0 %v2615
        %2649 = vmatprep.subr.mxu0 %v2618
        %2650 = vmatpush1.msra.mxu0 %v2617
        %2651 = vmatprep.subr.mxu0 0.0
        %2652 = vmatpush1.msra.mxu0 0.0
        %2653 = vmatprep.subr.mxu0 0.0
        %2654 = vmatpush1.msra.mxu0 0.0
        %2655 = vmatprep.subr.mxu0 0.0
        %2656 = vmatpush1.msra.mxu0 0.0
        %2657 = vmatprep.subr.mxu0 0.0
        %2658 = vmatpush1.msra.mxu0 0.0
        %2659 = vmatprep.subr.mxu0 0.0
        %2660 = vmatpush1.msra.mxu0 0.0
        %2661 = vmatprep.subr.mxu0 0.0
        %2662 = vmatpush1.msra.mxu0 0.0
        %2663 = vmatprep.subr.mxu0 0.0
        %2664 = vmatpush1.msra.mxu0 0.0
        %2665 = vmatprep.subr.mxu0 0.0
        %2666 = vmatpush1.msra.mxu0 0.0
        %2667 = vmatprep.subr.mxu0 0.0
        %2668 = vmatpush1.msra.mxu0 0.0
        %2669 = vmatprep.subr.mxu0 0.0
        %2670 = vmatpush1.msra.mxu0 0.0
        %2671 = vmatprep.subr.mxu0 0.0
        %2672 = vmatpush1.msra.mxu0 0.0
        %2673 = vmatprep.subr.mxu0 0.0
        %2674 = vmatpush1.msra.mxu0 0.0
        %2675 = vmatprep.subr.mxu0 0.0
        %2676 = vmatpush1.msra.mxu0 0.0
        %2677 = vmatprep.subr.mxu0 0.0
        %2678 = vmatpush1.msra.mxu0 0.0
        %2679 = vmatprep.subr.mxu0 0.0
        %2680 = vmatpush1.msra.mxu0 0.0
        %2681 = vmatprep.subr.mxu0 0.0
        %2682 = vmatpush1.msra.mxu0 0.0
        %2683 = vmatprep.mubr.f32.mxu0 0.0
        %2684 = vmatmul.mubr.f32.gmra.mrb[0].mxu0 %v2566
        %v2685 = vpop.f32.mrb[0].mxu0
        %v2686 = vadd.f32 0.0, %v2685
        %v2687 = vpop.f32.mrb[0].mxu0
        %v2688 = vadd.f32 0.0, %v2687
        %2689 = vmatprep.mubr.f32.mxu0 0.0
        %2690 = vmatmul.mubr.f32.gmra.mrb[0].mxu0 %v2568
        %v2691 = vpop.f32.mrb[0].mxu0
        %v2692 = vadd.f32 0.0, %v2691
        %v2693 = vpop.f32.mrb[0].mxu0
        %v2694 = vadd.f32 0.0, %v2693
        %2695 = vmatprep.mubr.f32.mxu0 0.0
        %2696 = vmatmul.mubr.f32.gmra.mrb[0].mxu0 %v2570
        %v2697 = vpop.f32.mrb[0].mxu0
        %v2698 = vadd.f32 0.0, %v2697
        %v2699 = vpop.f32.mrb[0].mxu0
        %v2700 = vadd.f32 0.0, %v2699
        %2701 = vmatprep.mubr.f32.mxu0 0.0
        %2702 = vmatmul.mubr.f32.gmra.mrb[0].mxu0 %v2572
        %v2703 = vpop.f32.mrb[0].mxu0
        %v2704 = vadd.f32 0.0, %v2703
        %v2705 = vpop.f32.mrb[0].mxu0
        %v2706 = vadd.f32 0.0, %v2705
        %2707 = vmatprep.mubr.f32.mxu0 0.0
        %2708 = vmatmul.mubr.f32.gmra.mrb[0].mxu0 %v2574
        %v2709 = vpop.f32.mrb[0].mxu0
        %v2710 = vadd.f32 0.0, %v2709
        %v2711 = vpop.f32.mrb[0].mxu0
        %v2712 = vadd.f32 0.0, %v2711
        %2713 = vmatprep.mubr.f32.mxu0 0.0
        %2714 = vmatmul.mubr.f32.gmra.mrb[0].mxu0 %v2576
        %v2715 = vpop.f32.mrb[0].mxu0
        %v2716 = vadd.f32 0.0, %v2715
        %v2717 = vpop.f32.mrb[0].mxu0
        %v2718 = vadd.f32 0.0, %v2717
        %2719 = vmatprep.mubr.f32.mxu0 0.0
        %2720 = vmatmul.mubr.f32.gmra.mrb[0].mxu0 %v2578
        %v2721 = vpop.f32.mrb[0].mxu0
        %v2722 = vadd.f32 0.0, %v2721
        %v2723 = vpop.f32.mrb[0].mxu0
        %v2724 = vadd.f32 0.0, %v2723
        %2725 = vmatprep.mubr.f32.mxu0 0.0
        %2726 = vmatmul.mubr.f32.gmra.mrb[0].mxu0 %v2580
        %v2727 = vpop.f32.mrb[0].mxu0
        %v2728 = vadd.f32 0.0, %v2727
        %v2729 = vpop.f32.mrb[0].mxu0
        %v2730 = vadd.f32 0.0, %v2729
        %2731 = vdwg.mxu0
        %v2732 = vmax.f32 %v2688, 1e-30
        %v2733 = vmax.f32 %v2694, 1e-30
        %v2734 = vmax.f32 %v2700, 1e-30
        %v2735 = vmax.f32 %v2706, 1e-30
        %v2736 = vmax.f32 %v2712, 1e-30
        %v2737 = vmax.f32 %v2718, 1e-30
        %v2738 = vmax.f32 %v2724, 1e-30
        %v2739 = vmax.f32 %v2730, 1e-30
        %v2740 = vrcp.pop %v2732
        %v2741 = vmul.f32 %v2686, %v2740
        %v2742 = vrcp.pop %v2733
        %v2743 = vmul.f32 %v2692, %v2742
        %v2744 = vrcp.pop %v2734
        %v2745 = vmul.f32 %v2698, %v2744
        %v2746 = vrcp.pop %v2735
        %v2747 = vmul.f32 %v2704, %v2746
        %v2748 = vrcp.pop %v2736
        %v2749 = vmul.f32 %v2710, %v2748
        %v2750 = vrcp.pop %v2737
        %v2751 = vmul.f32 %v2716, %v2750
        %v2752 = vrcp.pop %v2738
        %v2753 = vmul.f32 %v2722, %v2752
        %v2754 = vrcp.pop %v2739
        %v2755 = vmul.f32 %v2728, %v2754
        %2756 = vst [vmem:[%s324 + $0x38] sm:$0xff] %v2741
        %2757 = vst [vmem:[%s324 + $0x78] sm:$0xff] %v2743
        %2758 = vst [vmem:[%s324 + $0xb8] sm:$0xff] %v2745
        %2759 = vst [vmem:[%s324 + $0xf8] sm:$0xff] %v2747
        %2760 = vst [vmem:[%s324 + $0x138] sm:$0xff] %v2749
        %2761 = vst [vmem:[%s324 + $0x178] sm:$0xff] %v2751
        %2762 = vst [vmem:[%s324 + $0x1b8] sm:$0xff] %v2753
        %2763 = vst [vmem:[%s324 + $0x1f8] sm:$0xff] %v2755
        %s2764 = sand.u32 %s149, 1
        %s2765 = scalar_lea.sflag [#allocation4], %s2764
        %s2766 = sand.u32 %s149, 1
        %s2767 = smul.addr %s2766, 512
        %s2768 = scalar_lea.vmem [#allocation11], %s2767
        // Predicated region
        $region61: #{tpu_custom_call.1} parent=39 // pred_check
          %p2769 = pneg %p159
        $region62: #{tpu_custom_call.1} parent=39 // pred_check_branch
          %2771 = sbr.rel (%p2769) target = $region64
        $region63: #{tpu_custom_call.1} parent=39 // pred_region
          %s2772 = smul.u32 8, %s26
          %s2774 = ssub.s32 8192, 8192
          %2775 = vsyncadd %s2765, %s2774
          %s2776 = smul.addr %s2772, 128
          %s2777 = scalar_lea.hbm %s5, %s2776
          %s2778 = sshll.u32 %s2768, 4
          %s2779 = int_to_ptr.vmem [resolvable:$true] %s2778
          %2784 = dma.vmem_to_hbm [thread:$0]  %s2779, 8192, %s2777, %s2765, 1024, 4096, 64
        $region64: #{tpu_custom_call.1} parent=39 // pred_fallthru
          _
      $region40: #{tpu_custom_call.1} parent=5 // pred_fallthru
        _
      %p2785 = scmp.le.s32.totalorder 2, %s21
      // Predicated region
      $region65: #{tpu_custom_call.1} parent=5 // pred_check
        %p2786 = pneg %p2785
      $region66: #{tpu_custom_call.1} parent=5 // pred_check_branch
        %2788 = sbr.rel (%p2786) target = $region68
      $region67: #{tpu_custom_call.1} parent=5 // pred_region
        %s2789 = ssub.s32 %s21, 2
        // Predicated region
        $region69: #{tpu_custom_call.1} parent=67 // pred_check
          %p2790 = pneg %p165
        $region70: #{tpu_custom_call.1} parent=67 // pred_check_branch
          %2792 = sbr.rel (%p2790) target = $region72
        $region71: #{tpu_custom_call.1} parent=67 // pred_region
          %s2793 = sand.u32 %s150, 1
          %s2794 = scalar_lea.sflag [#allocation4], %s2793
          %s2795 = sand.u32 %s150, 1
          %s2796 = smul.addr %s2795, 512
          %s2797 = scalar_lea.vmem [#allocation11], %s2796
          %2798 = dma.done %s2794, 8192
        $region72: #{tpu_custom_call.1} parent=67 // pred_fallthru
          _
      $region68: #{tpu_custom_call.1} parent=5 // pred_fallthru
        _
    $region6: #{tpu_custom_call.1} parent=1 // loop_footer
      %s25 = sadd.s32 1, %s21
    $region7: #{tpu_custom_call.1} parent=1 // loop_footer_branch
      %20 = sbr.rel target = $region3
    $region8: #{tpu_custom_call.1} parent=1 // loop_exit
      _
    %2799 = vsyncpa [#allocation3], 1
    %s2800 = scalar_lea.sflag [#allocation3], 1
    %2801 = vsyncpa %s2800, 1
    %2802 = vsyncpa [#allocation6], 1
    %s2803 = scalar_lea.sflag [#allocation6], 1
    %2804 = vsyncpa %s2803, 1
    %2805 = vsyncpa [#allocation9], 1
    %s2806 = scalar_lea.sflag [#allocation9], 1
    %2807 = vsyncpa %s2806, 1
    %2808 = vsyncpa [#allocation4], 1
    %s2809 = scalar_lea.sflag [#allocation4], 1
    %2810 = vsyncpa %s2809, 1

</llo_original>
